<compile_context>
chip_gen: v5e
topology: v5e:2x2
jax: 0.10.0
libtpu: 0.0.40
codegen_flags: <defaults>
</compile_context>

<pallas_src>
import functools

import jax
import jax.numpy as jnp
from jax import lax
from jax.experimental import pallas as pl
from jax.experimental.pallas import tpu as pltpu


_VMEM_LIMIT = 64 * 1024 * 1024  # explicit budget, safe on v5e/v6e/v7x


# --------------------------- pointwise matmul -------------------------------

def _mm_kernel(x_ref, w_ref, o_ref):
    o_ref[...] = jnp.dot(x_ref[...], w_ref[...],
                         preferred_element_type=jnp.float32).astype(o_ref.dtype)


def _mm_bias_kernel(x_ref, w_ref, b_ref, o_ref):
    acc = jnp.dot(x_ref[...], w_ref[...], preferred_element_type=jnp.float32)
    o_ref[...] = (acc + b_ref[...].astype(jnp.float32)).astype(o_ref.dtype)


def pallas_matmul(x, w, bias=None, *, tm=512, tn=512):
    """x: (M, K), w: (K, N), optional bias: (N,) -> (M, N).

    Tiled over M and N (both 'parallel'); K stays fully resident per tile
    (K here is a channel count, small).
    """
    M, K = x.shape
    N = w.shape[1]
    tm = M if M <= tm else tm                      # tm=512 is a multiple of 8
    tn = N if N <= tn else tn                      # tn=512 is a multiple of 128
    grid = (pl.cdiv(M, tm), pl.cdiv(N, tn))

    cost = pl.CostEstimate(
        flops=2 * M * K * N,
        transcendentals=0,
        bytes_accessed=4 * (M * K + K * N + M * N),
    )

    in_specs = [
        pl.BlockSpec((tm, K), lambda i, j: (i, 0)),
        pl.BlockSpec((K, tn), lambda i, j: (0, j)),
    ]
    args = [x, w]
    kernel = _mm_kernel
    if bias is not None:
        in_specs.append(pl.BlockSpec((1, tn), lambda i, j: (0, j)))
        args.append(bias.reshape(1, N))
        kernel = _mm_bias_kernel

    return pl.pallas_call(
        kernel,
        out_shape=jax.ShapeDtypeStruct((M, N), x.dtype),
        grid=grid,
        in_specs=in_specs,
        out_specs=pl.BlockSpec((tm, tn), lambda i, j: (i, j)),
        compiler_params=pltpu.CompilerParams(
            dimension_semantics=("parallel", "parallel"),
            vmem_limit_bytes=_VMEM_LIMIT),
        cost_estimate=cost,
    )(*args)


# ----------------------------- cross attention ------------------------------

def _cross_attn_kernel(q_ref, k_ref, v_ref, o_ref, m_sc, l_sc, acc_sc,
                       *, heads, dim_head, scale):
    """One (batch, q-tile) block, all heads, one kv-tile per grid step.

    I/O blocks are lane-dense: (1, tile, heads*dim_head).  Online (flash-style)
    softmax accumulators live in VMEM scratch, indexed per head.
    """
    j = pl.program_id(2)

    @pl.when(j == 0)
    def _():
        m_sc[...] = jnp.full(m_sc.shape, -jnp.inf, m_sc.dtype)
        l_sc[...] = jnp.zeros(l_sc.shape, l_sc.dtype)
        acc_sc[...] = jnp.zeros(acc_sc.shape, acc_sc.dtype)

    q = q_ref[0].astype(jnp.float32) * scale     # (tq, heads*dim_head)
    k = k_ref[0].astype(jnp.float32)             # (tk, heads*dim_head)
    v = v_ref[0].astype(jnp.float32)             # (tk, heads*dim_head)

    for h in range(heads):                       # heads is small & static
        sl = slice(h * dim_head, (h + 1) * dim_head)
        qh = q[:, sl]                            # (tq, d)
        kh = k[:, sl]                            # (tk, d)
        vh = v[:, sl]                            # (tk, d)

        # s = q @ k^T  (contract on d)
        s = lax.dot_general(qh, kh, (((1,), (1,)), ((), ())),
                            preferred_element_type=jnp.float32)   # (tq, tk)

        m_prev = m_sc[h]                         # (tq, 1)
        m_new = jnp.maximum(m_prev, jnp.max(s, axis=-1, keepdims=True))
        alpha = jnp.exp(m_prev - m_new)
        p = jnp.exp(s - m_new)
        l_sc[h] = alpha * l_sc[h] + jnp.sum(p, axis=-1, keepdims=True)
        acc_sc[h] = alpha * acc_sc[h] + jnp.dot(
            p, vh, preferred_element_type=jnp.float32)
        m_sc[h] = m_new

    @pl.when(j == pl.num_programs(2) - 1)
    def _():
        outs = []
        for h in range(heads):
            inv_l = pl.reciprocal(l_sc[h], approx=True)   # EUP, ~free
            outs.append(acc_sc[h] * inv_l)                # (tq, d)
        o_ref[0] = jnp.concatenate(outs, axis=-1).astype(o_ref.dtype)


def pallas_cross_attention(q, k, v, *, heads, dim_head, scale,
                           tq=512, tk=512):
    """q: (B, Nq, heads*dim_head); k, v: (B, Nk, heads*dim_head)."""
    B, Nq, inner = q.shape
    Nk = k.shape[1]
    tq = Nq if (Nq <= tq or Nq % tq) else tq
    tk = Nk if (Nk <= tk or Nk % tk) else tk
    grid = (B, Nq // tq, Nk // tk)

    kernel = functools.partial(_cross_attn_kernel, heads=heads,
                               dim_head=dim_head, scale=scale)
    cost = pl.CostEstimate(
        flops=4 * B * heads * Nq * Nk * dim_head,
        transcendentals=B * heads * Nq * Nk,
        bytes_accessed=4 * (q.size + k.size + v.size + q.size),
    )

    return pl.pallas_call(
        kernel,
        out_shape=jax.ShapeDtypeStruct((B, Nq, inner), q.dtype),
        grid=grid,
        in_specs=[
            pl.BlockSpec((1, tq, inner), lambda b, i, j: (b, i, 0)),
            pl.BlockSpec((1, tk, inner), lambda b, i, j: (b, j, 0)),
            pl.BlockSpec((1, tk, inner), lambda b, i, j: (b, j, 0)),
        ],
        out_specs=pl.BlockSpec((1, tq, inner), lambda b, i, j: (b, i, 0)),
        scratch_shapes=[
            pltpu.VMEM((heads, tq, 1), jnp.float32),        # m
            pltpu.VMEM((heads, tq, 1), jnp.float32),        # l
            pltpu.VMEM((heads, tq, dim_head), jnp.float32),  # acc
        ],
        compiler_params=pltpu.CompilerParams(
            dimension_semantics=("parallel", "parallel", "arbitrary"),
            vmem_limit_bytes=_VMEM_LIMIT),
        cost_estimate=cost,
    )(q, k, v)


# ------------------------------ JAX glue -------------------------------------

def _depthwise_conv(x_nchw, dw_w, stride, padding):
    # TODO(synk): 3x3 depthwise spatial stencil + BatchNorm kept as lax/jnp
    # glue; the matmul / softmax hot paths live in the Pallas kernels above.
    C = x_nchw.shape[1]
    return lax.conv_general_dilated(
        x_nchw, dw_w, window_strides=(stride, stride),
        padding=[(padding, padding), (padding, padding)],
        dimension_numbers=("NCHW", "OIHW", "NCHW"),
        feature_group_count=C)


def _batchnorm_train(y, gamma, beta, eps=1e-5):
    # PyTorch BatchNorm2d (fresh module => train mode): biased batch stats.
    mean = jnp.mean(y, axis=(0, 2, 3), keepdims=True)
    var = jnp.var(y, axis=(0, 2, 3), keepdims=True)
    yhat = (y - mean) / jnp.sqrt(var + eps)
    return yhat * gamma.reshape(1, -1, 1, 1) + beta.reshape(1, -1, 1, 1)


def depthwise_conv2d_block(x_nchw, params, stride, padding, use_pallas=True):
    """DepthWiseConv2d: depthwise conv -> BN -> 1x1 pointwise (bias=False).
    Returns NHWC (lane-dense channels last)."""
    y = _depthwise_conv(x_nchw, params["dw_w"], stride, padding)
    y = _batchnorm_train(y, params["bn_gamma"], params["bn_beta"])
    b, c, h, w = y.shape
    y_flat = jnp.transpose(y, (0, 2, 3, 1)).reshape(b * h * w, c)
    pw_w = params["pw_w"]                                   # (C_in, C_out)
    if use_pallas:
        out = pallas_matmul(y_flat, pw_w)                   # no bias DMA
    else:
        out = y_flat @ pw_w
    return out.reshape(b, h, w, pw_w.shape[1])              # NHWC


def conv_cross_attention_forward(params, x1, x2, *, heads, dim_head,
                                 proj_kernel, kv_proj_stride, use_pallas=True):
    b, dim, H, W = x1.shape
    pad = proj_kernel // 2
    scale = dim_head ** -0.5
    inner = heads * dim_head

    q1 = depthwise_conv2d_block(x1, params["to_q1"], 1, pad, use_pallas)
    kv1 = depthwise_conv2d_block(x1, params["to_kv1"], kv_proj_stride, pad, use_pallas)
    q2 = depthwise_conv2d_block(x2, params["to_q2"], 1, pad, use_pallas)
    kv2 = depthwise_conv2d_block(x2, params["to_kv2"], kv_proj_stride, pad, use_pallas)
    k1, v1 = kv1[..., :inner], kv1[..., inner:]             # chunk(2, dim=1) in NCHW
    k2, v2 = kv2[..., :inner], kv2[..., inner:]

    def to_seq(t):      # NHWC (b, x, y, h*d) -> (b, x*y, h*d); no transpose
        bb, xx, yy, cc = t.shape
        return t.reshape(bb, xx * yy, cc)

    q1s, k1s, v1s = to_seq(q1), to_seq(k1), to_seq(v1)
    q2s, k2s, v2s = to_seq(q2), to_seq(k2), to_seq(v2)

    if use_pallas:
        out1 = pallas_cross_attention(q1s, k2s, v2s, heads=heads,
                                      dim_head=dim_head, scale=scale)
        out2 = pallas_cross_attention(q2s, k1s, v1s, heads=heads,
                                      dim_head=dim_head, scale=scale)
    else:
        def ref_attn(q, k, v):
            B, Nq, _ = q.shape
            Nk = k.shape[1]
            qh = q.reshape(B, Nq, heads, dim_head)
            kh = k.reshape(B, Nk, heads, dim_head)
            vh = v.reshape(B, Nk, heads, dim_head)
            d = jnp.einsum("bqhd,bkhd->bhqk", qh, kh) * scale
            a = jax.nn.softmax(d, axis=-1)
            o = jnp.einsum("bhqk,bkhd->bqhd", a, vh)
            return o.reshape(B, Nq, heads * dim_head)
        out1 = ref_attn(q1s, k2s, v2s)
        out2 = ref_attn(q2s, k1s, v1s)

    o1 = out1.reshape(b * H * W, inner)                     # channels stay (h d)
    o2 = out2.reshape(b * H * W, inner)
    if use_pallas:
        y1 = pallas_matmul(o1, params["out1_w"], params["out1_b"])
        y2 = pallas_matmul(o2, params["out2_w"], params["out2_b"])
    else:
        y1 = o1 @ params["out1_w"] + params["out1_b"]
        y2 = o2 @ params["out2_w"] + params["out2_b"]
    # dropout(p=0.0) is identity. Return NCHW like PyTorch.
    y1 = jnp.transpose(y1.reshape(b, H, W, dim), (0, 3, 1, 2))
    y2 = jnp.transpose(y2.reshape(b, H, W, dim), (0, 3, 1, 2))
    return y1, y2


def init_params(key, dim, heads, dim_head, proj_kernel):
    inner = heads * dim_head
    keys = jax.random.split(key, 8)

    def dw_block(k, cout):
        k1, k2 = jax.random.split(k)
        return {
            # depthwise weight: (C, 1, k, k)   (groups = C, OIHW)
            "dw_w": 0.2 * jax.random.normal(
                k1, (dim, 1, proj_kernel, proj_kernel), jnp.float32),
            "bn_gamma": jnp.ones((dim,), jnp.float32),
            "bn_beta": jnp.zeros((dim,), jnp.float32),
            # 1x1 pointwise weight stored as (C_in, C_out) for the matmul kernel
            "pw_w": 0.2 * jax.random.normal(k2, (dim, cout), jnp.float32),
        }

    return {
        "to_q1": dw_block(keys[0], inner),
        "to_kv1": dw_block(keys[1], 2 * inner),
        "to_q2": dw_block(keys[2], inner),
        "to_kv2": dw_block(keys[3], 2 * inner),
        "out1_w": 0.2 * jax.random.normal(keys[4], (inner, dim), jnp.float32),
        "out1_b": 0.1 * jax.random.normal(keys[5], (dim,), jnp.float32),
        "out2_w": 0.2 * jax.random.normal(keys[6], (inner, dim), jnp.float32),
        "out2_b": 0.1 * jax.random.normal(keys[7], (dim,), jnp.float32),
    }


if __name__ == "__main__":
    # Small, module-consistent shapes; inner = heads*dim_head = 128 (lane-dense).
    dim, heads, dim_head = 8, 2, 64
    proj_kernel, kv_proj_stride = 3, 2
    b, H, W = 2, 16, 16                      # q seq = 256, kv seq = 64

    root = jax.random.PRNGKey(0)
    kx1, kx2, kp = jax.random.split(root, 3)
    x1 = jax.random.normal(kx1, (b, dim, H, W), jnp.float32)
    x2 = jax.random.normal(kx2, (b, dim, H, W), jnp.float32)
    params = init_params(kp, dim, heads, dim_head, proj_kernel)

    fwd = functools.partial(conv_cross_attention_forward,
                            heads=heads, dim_head=dim_head,
                            proj_kernel=proj_kernel,
                            kv_proj_stride=kv_proj_stride)

    y1, y2 = jax.jit(functools.partial(fwd, use_pallas=True))(params, x1, x2)
    jax.block_until_ready((y1, y2))

    # Pure-JAX reference (same glue, jnp matmuls/softmax) for a sanity check.
    r1, r2 = jax.jit(functools.partial(fwd, use_pallas=False))(params, x1, x2)
    jax.block_until_ready((r1, r2))
    err = max(float(jnp.max(jnp.abs(y1 - r1))), float(jnp.max(jnp.abs(y2 - r2))))
    assert err < 1e-2, f"Pallas vs reference mismatch: max abs err = {err}"
    assert y1.shape == (b, dim, H, W) and y2.shape == (b, dim, H, W)

    print("KERNEL_OK")
</pallas_src>

<mosaic_0001>
module attributes {stable_mosaic.version = 11 : i64} {
  func.func @_mm_kernel(%arg0: i32, %arg1: i32, %arg2: memref<128x8xf32, #tpu.memory_space<vmem>>, %arg3: memref<8x256xf32, #tpu.memory_space<vmem>>, %arg4: memref<128x256xf32, #tpu.memory_space<vmem>>) attributes {dimension_semantics = [#tpu.dimension_semantics<parallel>, #tpu.dimension_semantics<parallel>], iteration_bounds = array<i64: 1, 1>, scalar_prefetch = 0 : i64, scratch_operands = 0 : i64, tpu.core_type = #tpu.core_type<tc>, window_params = [{transform_indices = @transform_0, window_bounds = array<i64: 128, 8>}, {transform_indices = @transform_1, window_bounds = array<i64: 8, 256>}, {transform_indices = @transform_2, window_bounds = array<i64: 128, 256>}]} {
    %c0 = arith.constant 0 : index
    %c0_0 = arith.constant 0 : index
    %0 = vector.load %arg2[%c0, %c0_0] : memref<128x8xf32, #tpu.memory_space<vmem>>, vector<128x8xf32>
    %c0_1 = arith.constant 0 : index
    %c0_2 = arith.constant 0 : index
    %1 = vector.load %arg3[%c0_1, %c0_2] : memref<8x256xf32, #tpu.memory_space<vmem>>, vector<8x256xf32>
    %cst = arith.constant dense<0.000000e+00> : vector<128x256xf32>
    %2 = tpu.matmul %0, %1, %cst {dimension_numbers = #tpu.dot_dimension_numbers<[1], [0], [0], [1], [0, 0, 1, 1], [], []>} : vector<128x8xf32>, vector<8x256xf32>, vector<128x256xf32> -> vector<128x256xf32>
    %c0_3 = arith.constant 0 : index
    %c0_4 = arith.constant 0 : index
    %3 = vector.load %arg4[%c0_3, %c0_4] : memref<128x256xf32, #tpu.memory_space<vmem>>, vector<128x256xf32>
    tpu.vector_store %arg4[%c0_3, %c0_4], %2 {strides = array<i32>} : memref<128x256xf32, #tpu.memory_space<vmem>>, vector<128x256xf32>,
    return
  }
  func.func @transform_0(%arg0: i32, %arg1: i32) -> (i32, i32) {
    %c0_i32 = arith.constant 0 : i32
    %c0_i32_0 = arith.constant 0 : i32
    return %arg0, %c0_i32 : i32, i32
  }
  func.func @transform_1(%arg0: i32, %arg1: i32) -> (i32, i32) {
    %c0_i32 = arith.constant 0 : i32
    %c0_i32_0 = arith.constant 0 : i32
    return %c0_i32, %arg1 : i32, i32
  }
  func.func @transform_2(%arg0: i32, %arg1: i32) -> (i32, i32) {
    %c0_i32 = arith.constant 0 : i32
    return %arg0, %arg1 : i32, i32
  }
}

module attributes {stable_mosaic.version = 11 : i64} {
  func.func @_mm_kernel(%arg0: i32, %arg1: i32, %arg2: memref<512x8xf32, #tpu.memory_space<vmem>>, %arg3: memref<8x128xf32, #tpu.memory_space<vmem>>, %arg4: memref<512x128xf32, #tpu.memory_space<vmem>>) attributes {dimension_semantics = [#tpu.dimension_semantics<parallel>, #tpu.dimension_semantics<parallel>], iteration_bounds = array<i64: 1, 1>, scalar_prefetch = 0 : i64, scratch_operands = 0 : i64, tpu.core_type = #tpu.core_type<tc>, window_params = [{transform_indices = @transform_0, window_bounds = array<i64: 512, 8>}, {transform_indices = @transform_1, window_bounds = array<i64: 8, 128>}, {transform_indices = @transform_2, window_bounds = array<i64: 512, 128>}]} {
    %c0 = arith.constant 0 : index
    %c0_0 = arith.constant 0 : index
    %0 = vector.load %arg2[%c0, %c0_0] : memref<512x8xf32, #tpu.memory_space<vmem>>, vector<512x8xf32>
    %c0_1 = arith.constant 0 : index
    %c0_2 = arith.constant 0 : index
    %1 = vector.load %arg3[%c0_1, %c0_2] : memref<8x128xf32, #tpu.memory_space<vmem>>, vector<8x128xf32>
    %cst = arith.constant dense<0.000000e+00> : vector<512x128xf32>
    %2 = tpu.matmul %0, %1, %cst {dimension_numbers = #tpu.dot_dimension_numbers<[1], [0], [0], [1], [0, 0, 1, 1], [], []>} : vector<512x8xf32>, vector<8x128xf32>, vector<512x128xf32> -> vector<512x128xf32>
    %c0_3 = arith.constant 0 : index
    %c0_4 = arith.constant 0 : index
    %3 = vector.load %arg4[%c0_3, %c0_4] : memref<512x128xf32, #tpu.memory_space<vmem>>, vector<512x128xf32>
    tpu.vector_store %arg4[%c0_3, %c0_4], %2 {strides = array<i32>} : memref<512x128xf32, #tpu.memory_space<vmem>>, vector<512x128xf32>,
    return
  }
  func.func @transform_0(%arg0: i32, %arg1: i32) -> (i32, i32) {
    %c0_i32 = arith.constant 0 : i32
    %c0_i32_0 = arith.constant 0 : i32
    return %arg0, %c0_i32 : i32, i32
  }
  func.func @transform_1(%arg0: i32, %arg1: i32) -> (i32, i32) {
    %c0_i32 = arith.constant 0 : i32
    %c0_i32_0 = arith.constant 0 : i32
    return %c0_i32, %arg1 : i32, i32
  }
  func.func @transform_2(%arg0: i32, %arg1: i32) -> (i32, i32) {
    %c0_i32 = arith.constant 0 : i32
    return %arg0, %arg1 : i32, i32
  }
}

module attributes {stable_mosaic.version = 11 : i64} {
  func.func @_cross_attn_kernel(%arg0: i32, %arg1: i32, %arg2: i32, %arg3: memref<1x256x128xf32, #tpu.memory_space<vmem>>, %arg4: memref<1x64x128xf32, #tpu.memory_space<vmem>>, %arg5: memref<1x64x128xf32, #tpu.memory_space<vmem>>, %arg6: memref<1x256x128xf32, #tpu.memory_space<vmem>>, %arg7: memref<2x256x1xf32, #tpu.memory_space<vmem>>, %arg8: memref<2x256x1xf32, #tpu.memory_space<vmem>>, %arg9: memref<2x256x64xf32, #tpu.memory_space<vmem>>) attributes {dimension_semantics = [#tpu.dimension_semantics<parallel>, #tpu.dimension_semantics<parallel>, #tpu.dimension_semantics<arbitrary>], iteration_bounds = array<i64: 2, 1, 1>, scalar_prefetch = 0 : i64, scratch_operands = 3 : i64, tpu.core_type = #tpu.core_type<tc>, window_params = [{transform_indices = @transform_0, window_bounds = array<i64: 1, 256, 128>}, {transform_indices = @transform_1, window_bounds = array<i64: 1, 64, 128>}, {transform_indices = @transform_2, window_bounds = array<i64: 1, 64, 128>}, {transform_indices = @transform_3, window_bounds = array<i64: 1, 256, 128>}]} {
    %c0_i32 = arith.constant 0 : i32
    %0 = arith.cmpi eq, %arg2, %c0_i32 : i32
    %1 = arith.extui %0 : i1 to i32
    %c0_i32_0 = arith.constant 0 : i32
    %2 = arith.cmpi ne, %1, %c0_i32_0 : i32
    scf.if %2 {
      %cst_54 = arith.constant 0xFF800000 : f32
      %84 = vector.broadcast %cst_54 : f32 to vector<2x256x1xf32>
      %c0_55 = arith.constant 0 : index
      %c0_56 = arith.constant 0 : index
      %c0_57 = arith.constant 0 : index
      %85 = vector.load %arg7[%c0_55, %c0_56, %c0_57] : memref<2x256x1xf32, #tpu.memory_space<vmem>>, vector<2x256x1xf32>
      tpu.vector_store %arg7[%c0_55, %c0_56, %c0_57], %84 {strides = array<i32>} : memref<2x256x1xf32, #tpu.memory_space<vmem>>, vector<2x256x1xf32>,
      %cst_58 = arith.constant 0.000000e+00 : f32
      %86 = vector.broadcast %cst_58 : f32 to vector<2x256x1xf32>
      %c0_59 = arith.constant 0 : index
      %c0_60 = arith.constant 0 : index
      %c0_61 = arith.constant 0 : index
      %87 = vector.load %arg8[%c0_59, %c0_60, %c0_61] : memref<2x256x1xf32, #tpu.memory_space<vmem>>, vector<2x256x1xf32>
      tpu.vector_store %arg8[%c0_59, %c0_60, %c0_61], %86 {strides = array<i32>} : memref<2x256x1xf32, #tpu.memory_space<vmem>>, vector<2x256x1xf32>,
      %cst_62 = arith.constant 0.000000e+00 : f32
      %88 = vector.broadcast %cst_62 : f32 to vector<2x256x64xf32>
      %c0_63 = arith.constant 0 : index
      %c0_64 = arith.constant 0 : index
      %c0_65 = arith.constant 0 : index
      %89 = vector.load %arg9[%c0_63, %c0_64, %c0_65] : memref<2x256x64xf32, #tpu.memory_space<vmem>>, vector<2x256x64xf32>
      tpu.vector_store %arg9[%c0_63, %c0_64, %c0_65], %88 {strides = array<i32>} : memref<2x256x64xf32, #tpu.memory_space<vmem>>, vector<2x256x64xf32>,
    } else {
    }
    %c0 = arith.constant 0 : index
    %c0_1 = arith.constant 0 : index
    %c0_2 = arith.constant 0 : index
    %3 = vector.load %arg3[%c0, %c0_1, %c0_2] : memref<1x256x128xf32, #tpu.memory_space<vmem>>, vector<1x256x128xf32>
    %4 = vector.shape_cast %3 : vector<1x256x128xf32> to vector<256x128xf32>
    %cst = arith.constant 1.250000e-01 : f32
    %5 = vector.broadcast %cst : f32 to vector<256x128xf32>
    %6 = arith.mulf %4, %5 : vector<256x128xf32>
    %c0_3 = arith.constant 0 : index
    %c0_4 = arith.constant 0 : index
    %c0_5 = arith.constant 0 : index
    %7 = vector.load %arg4[%c0_3, %c0_4, %c0_5] : memref<1x64x128xf32, #tpu.memory_space<vmem>>, vector<1x64x128xf32>
    %8 = vector.shape_cast %7 : vector<1x64x128xf32> to vector<64x128xf32>
    %c0_6 = arith.constant 0 : index
    %c0_7 = arith.constant 0 : index
    %c0_8 = arith.constant 0 : index
    %9 = vector.load %arg5[%c0_6, %c0_7, %c0_8] : memref<1x64x128xf32, #tpu.memory_space<vmem>>, vector<1x64x128xf32>
    %10 = vector.shape_cast %9 : vector<1x64x128xf32> to vector<64x128xf32>
    %11 = vector.extract_strided_slice %6 {offsets = [0, 0], sizes = [256, 64], strides = [1, 1]} : vector<256x128xf32> to vector<256x64xf32>
    %12 = vector.extract_strided_slice %8 {offsets = [0, 0], sizes = [64, 64], strides = [1, 1]} : vector<64x128xf32> to vector<64x64xf32>
    %13 = vector.extract_strided_slice %10 {offsets = [0, 0], sizes = [64, 64], strides = [1, 1]} : vector<64x128xf32> to vector<64x64xf32>
    %cst_9 = arith.constant dense<0.000000e+00> : vector<256x64xf32>
    %14 = tpu.matmul %11, %12, %cst_9 {dimension_numbers = #tpu.dot_dimension_numbers<[1], [1], [0], [0], [0, 0, 1, 0], [], []>} : vector<256x64xf32>, vector<64x64xf32>, vector<256x64xf32> -> vector<256x64xf32>
    %c0_10 = arith.constant 0 : index
    %c0_11 = arith.constant 0 : index
    %c0_12 = arith.constant 0 : index
    %15 = vector.load %arg7[%c0_10, %c0_11, %c0_12] : memref<2x256x1xf32, #tpu.memory_space<vmem>>, vector<1x256x1xf32>
    %16 = vector.shape_cast %15 : vector<1x256x1xf32> to vector<256x1xf32>
    %cst_13 = arith.constant dense<0xFF800000> : vector<256xf32>
    %17 = vector.multi_reduction <maximumf>, %14, %cst_13 [1] : vector<256x64xf32> to vector<256xf32>
    %18 = vector.shape_cast %17 : vector<256xf32> to vector<256x1xf32>
    %19 = arith.maximumf %16, %18 : vector<256x1xf32>
    %20 = arith.subf %16, %19 : vector<256x1xf32>
    %21 = math.exp %20 : vector<256x1xf32>
    %22 = vector.broadcast %19 : vector<256x1xf32> to vector<256x64xf32>
    %23 = arith.subf %14, %22 : vector<256x64xf32>
    %24 = math.exp %23 : vector<256x64xf32>
    %c0_14 = arith.constant 0 : index
    %c0_15 = arith.constant 0 : index
    %c0_16 = arith.constant 0 : index
    %25 = vector.load %arg8[%c0_14, %c0_15, %c0_16] : memref<2x256x1xf32, #tpu.memory_space<vmem>>, vector<1x256x1xf32>
    %26 = vector.shape_cast %25 : vector<1x256x1xf32> to vector<256x1xf32>
    %27 = arith.mulf %21, %26 : vector<256x1xf32>
    %cst_17 = arith.constant dense<0.000000e+00> : vector<256xf32>
    %28 = vector.multi_reduction <add>, %24, %cst_17 [1] : vector<256x64xf32> to vector<256xf32>
    %29 = vector.shape_cast %28 : vector<256xf32> to vector<256x1xf32>
    %30 = arith.addf %27, %29 : vector<256x1xf32>
    %c0_18 = arith.constant 0 : index
    %c0_19 = arith.constant 0 : index
    %c0_20 = arith.constant 0 : index
    %31 = vector.load %arg8[%c0_18, %c0_19, %c0_20] : memref<2x256x1xf32, #tpu.memory_space<vmem>>, vector<1x256x1xf32>
    %32 = vector.shape_cast %31 : vector<1x256x1xf32> to vector<256x1xf32>
    %33 = vector.shape_cast %30 : vector<256x1xf32> to vector<1x256x1xf32>
    tpu.vector_store %arg8[%c0_18, %c0_19, %c0_20], %33 {strides = array<i32>} : memref<2x256x1xf32, #tpu.memory_space<vmem>>, vector<1x256x1xf32>,
    %c0_21 = arith.constant 0 : index
    %c0_22 = arith.constant 0 : index
    %c0_23 = arith.constant 0 : index
    %34 = vector.load %arg9[%c0_21, %c0_22, %c0_23] : memref<2x256x64xf32, #tpu.memory_space<vmem>>, vector<1x256x64xf32>
    %35 = vector.shape_cast %34 : vector<1x256x64xf32> to vector<256x64xf32>
    %36 = vector.broadcast %21 : vector<256x1xf32> to vector<256x64xf32>
    %37 = arith.mulf %36, %35 : vector<256x64xf32>
    %cst_24 = arith.constant dense<0.000000e+00> : vector<256x64xf32>
    %38 = tpu.matmul %24, %13, %cst_24 {dimension_numbers = #tpu.dot_dimension_numbers<[1], [0], [0], [1], [0, 0, 1, 1], [], []>} : vector<256x64xf32>, vector<64x64xf32>, vector<256x64xf32> -> vector<256x64xf32>
    %39 = arith.addf %37, %38 : vector<256x64xf32>
    %c0_25 = arith.constant 0 : index
    %c0_26 = arith.constant 0 : index
    %c0_27 = arith.constant 0 : index
    %40 = vector.load %arg9[%c0_25, %c0_26, %c0_27] : memref<2x256x64xf32, #tpu.memory_space<vmem>>, vector<1x256x64xf32>
    %41 = vector.shape_cast %40 : vector<1x256x64xf32> to vector<256x64xf32>
    %42 = vector.shape_cast %39 : vector<256x64xf32> to vector<1x256x64xf32>
    tpu.vector_store %arg9[%c0_25, %c0_26, %c0_27], %42 {strides = array<i32>} : memref<2x256x64xf32, #tpu.memory_space<vmem>>, vector<1x256x64xf32>,
    %c0_28 = arith.constant 0 : index
    %c0_29 = arith.constant 0 : index
    %c0_30 = arith.constant 0 : index
    %43 = vector.load %arg7[%c0_28, %c0_29, %c0_30] : memref<2x256x1xf32, #tpu.memory_space<vmem>>, vector<1x256x1xf32>
    %44 = vector.shape_cast %43 : vector<1x256x1xf32> to vector<256x1xf32>
    %45 = vector.shape_cast %19 : vector<256x1xf32> to vector<1x256x1xf32>
    tpu.vector_store %arg7[%c0_28, %c0_29, %c0_30], %45 {strides = array<i32>} : memref<2x256x1xf32, #tpu.memory_space<vmem>>, vector<1x256x1xf32>,
    %46 = vector.extract_strided_slice %6 {offsets = [0, 64], sizes = [256, 64], strides = [1, 1]} : vector<256x128xf32> to vector<256x64xf32>
    %47 = vector.extract_strided_slice %8 {offsets = [0, 64], sizes = [64, 64], strides = [1, 1]} : vector<64x128xf32> to vector<64x64xf32>
    %48 = vector.extract_strided_slice %10 {offsets = [0, 64], sizes = [64, 64], strides = [1, 1]} : vector<64x128xf32> to vector<64x64xf32>
    %cst_31 = arith.constant dense<0.000000e+00> : vector<256x64xf32>
    %49 = tpu.matmul %46, %47, %cst_31 {dimension_numbers = #tpu.dot_dimension_numbers<[1], [1], [0], [0], [0, 0, 1, 0], [], []>} : vector<256x64xf32>, vector<64x64xf32>, vector<256x64xf32> -> vector<256x64xf32>
    %c1 = arith.constant 1 : index
    %c0_32 = arith.constant 0 : index
    %c0_33 = arith.constant 0 : index
    %50 = vector.load %arg7[%c1, %c0_32, %c0_33] : memref<2x256x1xf32, #tpu.memory_space<vmem>>, vector<1x256x1xf32>
    %51 = vector.shape_cast %50 : vector<1x256x1xf32> to vector<256x1xf32>
    %cst_34 = arith.constant dense<0xFF800000> : vector<256xf32>
    %52 = vector.multi_reduction <maximumf>, %49, %cst_34 [1] : vector<256x64xf32> to vector<256xf32>
    %53 = vector.shape_cast %52 : vector<256xf32> to vector<256x1xf32>
    %54 = arith.maximumf %51, %53 : vector<256x1xf32>
    %55 = arith.subf %51, %54 : vector<256x1xf32>
    %56 = math.exp %55 : vector<256x1xf32>
    %57 = vector.broadcast %54 : vector<256x1xf32> to vector<256x64xf32>
    %58 = arith.subf %49, %57 : vector<256x64xf32>
    %59 = math.exp %58 : vector<256x64xf32>
    %c1_35 = arith.constant 1 : index
    %c0_36 = arith.constant 0 : index
    %c0_37 = arith.constant 0 : index
    %60 = vector.load %arg8[%c1_35, %c0_36, %c0_37] : memref<2x256x1xf32, #tpu.memory_space<vmem>>, vector<1x256x1xf32>
    %61 = vector.shape_cast %60 : vector<1x256x1xf32> to vector<256x1xf32>
    %62 = arith.mulf %56, %61 : vector<256x1xf32>
    %cst_38 = arith.constant dense<0.000000e+00> : vector<256xf32>
    %63 = vector.multi_reduction <add>, %59, %cst_38 [1] : vector<256x64xf32> to vector<256xf32>
    %64 = vector.shape_cast %63 : vector<256xf32> to vector<256x1xf32>
    %65 = arith.addf %62, %64 : vector<256x1xf32>
    %c1_39 = arith.constant 1 : index
    %c0_40 = arith.constant 0 : index
    %c0_41 = arith.constant 0 : index
    %66 = vector.load %arg8[%c1_39, %c0_40, %c0_41] : memref<2x256x1xf32, #tpu.memory_space<vmem>>, vector<1x256x1xf32>
    %67 = vector.shape_cast %66 : vector<1x256x1xf32> to vector<256x1xf32>
    %68 = vector.shape_cast %65 : vector<256x1xf32> to vector<1x256x1xf32>
    tpu.vector_store %arg8[%c1_39, %c0_40, %c0_41], %68 {strides = array<i32>} : memref<2x256x1xf32, #tpu.memory_space<vmem>>, vector<1x256x1xf32>,
    %c1_42 = arith.constant 1 : index
    %c0_43 = arith.constant 0 : index
    %c0_44 = arith.constant 0 : index
    %69 = vector.load %arg9[%c1_42, %c0_43, %c0_44] : memref<2x256x64xf32, #tpu.memory_space<vmem>>, vector<1x256x64xf32>
    %70 = vector.shape_cast %69 : vector<1x256x64xf32> to vector<256x64xf32>
    %71 = vector.broadcast %56 : vector<256x1xf32> to vector<256x64xf32>
    %72 = arith.mulf %71, %70 : vector<256x64xf32>
    %cst_45 = arith.constant dense<0.000000e+00> : vector<256x64xf32>
    %73 = tpu.matmul %59, %48, %cst_45 {dimension_numbers = #tpu.dot_dimension_numbers<[1], [0], [0], [1], [0, 0, 1, 1], [], []>} : vector<256x64xf32>, vector<64x64xf32>, vector<256x64xf32> -> vector<256x64xf32>
    %74 = arith.addf %72, %73 : vector<256x64xf32>
    %c1_46 = arith.constant 1 : index
    %c0_47 = arith.constant 0 : index
    %c0_48 = arith.constant 0 : index
    %75 = vector.load %arg9[%c1_46, %c0_47, %c0_48] : memref<2x256x64xf32, #tpu.memory_space<vmem>>, vector<1x256x64xf32>
    %76 = vector.shape_cast %75 : vector<1x256x64xf32> to vector<256x64xf32>
    %77 = vector.shape_cast %74 : vector<256x64xf32> to vector<1x256x64xf32>
    tpu.vector_store %arg9[%c1_46, %c0_47, %c0_48], %77 {strides = array<i32>} : memref<2x256x64xf32, #tpu.memory_space<vmem>>, vector<1x256x64xf32>,
    %c1_49 = arith.constant 1 : index
    %c0_50 = arith.constant 0 : index
    %c0_51 = arith.constant 0 : index
    %78 = vector.load %arg7[%c1_49, %c0_50, %c0_51] : memref<2x256x1xf32, #tpu.memory_space<vmem>>, vector<1x256x1xf32>
    %79 = vector.shape_cast %78 : vector<1x256x1xf32> to vector<256x1xf32>
    %80 = vector.shape_cast %54 : vector<256x1xf32> to vector<1x256x1xf32>
    tpu.vector_store %arg7[%c1_49, %c0_50, %c0_51], %80 {strides = array<i32>} : memref<2x256x1xf32, #tpu.memory_space<vmem>>, vector<1x256x1xf32>,
    %c0_i32_52 = arith.constant 0 : i32
    %81 = arith.cmpi eq, %arg2, %c0_i32_52 : i32
    %82 = arith.extui %81 : i1 to i32
    %c0_i32_53 = arith.constant 0 : i32
    %83 = arith.cmpi ne, %82, %c0_i32_53 : i32
    scf.if %83 {
      %c0_54 = arith.constant 0 : index
      %c0_55 = arith.constant 0 : index
      %c0_56 = arith.constant 0 : index
      %84 = vector.load %arg8[%c0_54, %c0_55, %c0_56] : memref<2x256x1xf32, #tpu.memory_space<vmem>>, vector<1x256x1xf32>
      %85 = vector.shape_cast %84 : vector<1x256x1xf32> to vector<256x1xf32>
      %86 = tpu.reciprocal %85 {approx = true} : vector<256x1xf32> -> vector<256x1xf32>
      %c0_57 = arith.constant 0 : index
      %c0_58 = arith.constant 0 : index
      %c0_59 = arith.constant 0 : index
      %87 = vector.load %arg9[%c0_57, %c0_58, %c0_59] : memref<2x256x64xf32, #tpu.memory_space<vmem>>, vector<1x256x64xf32>
      %88 = vector.shape_cast %87 : vector<1x256x64xf32> to vector<256x64xf32>
      %89 = vector.broadcast %86 : vector<256x1xf32> to vector<256x64xf32>
      %90 = arith.mulf %88, %89 : vector<256x64xf32>
      %c1_60 = arith.constant 1 : index
      %c0_61 = arith.constant 0 : index
      %c0_62 = arith.constant 0 : index
      %91 = vector.load %arg8[%c1_60, %c0_61, %c0_62] : memref<2x256x1xf32, #tpu.memory_space<vmem>>, vector<1x256x1xf32>
      %92 = vector.shape_cast %91 : vector<1x256x1xf32> to vector<256x1xf32>
      %93 = tpu.reciprocal %92 {approx = true} : vector<256x1xf32> -> vector<256x1xf32>
      %c1_63 = arith.constant 1 : index
      %c0_64 = arith.constant 0 : index
      %c0_65 = arith.constant 0 : index
      %94 = vector.load %arg9[%c1_63, %c0_64, %c0_65] : memref<2x256x64xf32, #tpu.memory_space<vmem>>, vector<1x256x64xf32>
      %95 = vector.shape_cast %94 : vector<1x256x64xf32> to vector<256x64xf32>
      %96 = vector.broadcast %93 : vector<256x1xf32> to vector<256x64xf32>
      %97 = arith.mulf %95, %96 : vector<256x64xf32>
      %98 = tpu.concatenate %90, %97 in 1 : vector<256x64xf32>, vector<256x64xf32> -> vector<256x128xf32>
      %c0_66 = arith.constant 0 : index
      %c0_67 = arith.constant 0 : index
      %c0_68 = arith.constant 0 : index
      %99 = vector.load %arg6[%c0_66, %c0_67, %c0_68] : memref<1x256x128xf32, #tpu.memory_space<vmem>>, vector<1x256x128xf32>
      %100 = vector.shape_cast %99 : vector<1x256x128xf32> to vector<256x128xf32>
      %101 = vector.shape_cast %98 : vector<256x128xf32> to vector<1x256x128xf32>
      tpu.vector_store %arg6[%c0_66, %c0_67, %c0_68], %101 {strides = array<i32>} : memref<1x256x128xf32, #tpu.memory_space<vmem>>, vector<1x256x128xf32>,
    } else {
    }
    return
  }
  func.func @transform_0(%arg0: i32, %arg1: i32, %arg2: i32) -> (i32, i32, i32) {
    %c0_i32 = arith.constant 0 : i32
    %c0_i32_0 = arith.constant 0 : i32
    return %arg0, %arg1, %c0_i32 : i32, i32, i32
  }
  func.func @transform_1(%arg0: i32, %arg1: i32, %arg2: i32) -> (i32, i32, i32) {
    %c0_i32 = arith.constant 0 : i32
    %c0_i32_0 = arith.constant 0 : i32
    return %arg0, %arg2, %c0_i32 : i32, i32, i32
  }
  func.func @transform_2(%arg0: i32, %arg1: i32, %arg2: i32) -> (i32, i32, i32) {
    %c0_i32 = arith.constant 0 : i32
    %c0_i32_0 = arith.constant 0 : i32
    return %arg0, %arg2, %c0_i32 : i32, i32, i32
  }
  func.func @transform_3(%arg0: i32, %arg1: i32, %arg2: i32) -> (i32, i32, i32) {
    %c0_i32 = arith.constant 0 : i32
    %c0_i32_0 = arith.constant 0 : i32
    return %arg0, %arg1, %c0_i32 : i32, i32, i32
  }
}

module attributes {stable_mosaic.version = 11 : i64} {
  func.func @_mm_bias_kernel(%arg0: i32, %arg1: i32, %arg2: memref<512x128xf32, #tpu.memory_space<vmem>>, %arg3: memref<128x8xf32, #tpu.memory_space<vmem>>, %arg4: memref<1x8xf32, #tpu.memory_space<vmem>>, %arg5: memref<512x8xf32, #tpu.memory_space<vmem>>) attributes {dimension_semantics = [#tpu.dimension_semantics<parallel>, #tpu.dimension_semantics<parallel>], iteration_bounds = array<i64: 1, 1>, scalar_prefetch = 0 : i64, scratch_operands = 0 : i64, tpu.core_type = #tpu.core_type<tc>, window_params = [{transform_indices = @transform_0, window_bounds = array<i64: 512, 128>}, {transform_indices = @transform_1, window_bounds = array<i64: 128, 8>}, {transform_indices = @transform_2, window_bounds = array<i64: 1, 8>}, {transform_indices = @transform_3, window_bounds = array<i64: 512, 8>}]} {
    %c0 = arith.constant 0 : index
    %c0_0 = arith.constant 0 : index
    %0 = vector.load %arg2[%c0, %c0_0] : memref<512x128xf32, #tpu.memory_space<vmem>>, vector<512x128xf32>
    %c0_1 = arith.constant 0 : index
    %c0_2 = arith.constant 0 : index
    %1 = vector.load %arg3[%c0_1, %c0_2] : memref<128x8xf32, #tpu.memory_space<vmem>>, vector<128x8xf32>
    %cst = arith.constant dense<0.000000e+00> : vector<512x8xf32>
    %2 = tpu.matmul %0, %1, %cst {dimension_numbers = #tpu.dot_dimension_numbers<[1], [0], [0], [1], [0, 0, 1, 1], [], []>} : vector<512x128xf32>, vector<128x8xf32>, vector<512x8xf32> -> vector<512x8xf32>
    %c0_3 = arith.constant 0 : index
    %c0_4 = arith.constant 0 : index
    %3 = vector.load %arg4[%c0_3, %c0_4] : memref<1x8xf32, #tpu.memory_space<vmem>>, vector<1x8xf32>
    %4 = vector.broadcast %3 : vector<1x8xf32> to vector<512x8xf32>
    %5 = arith.addf %2, %4 : vector<512x8xf32>
    %c0_5 = arith.constant 0 : index
    %c0_6 = arith.constant 0 : index
    %6 = vector.load %arg5[%c0_5, %c0_6] : memref<512x8xf32, #tpu.memory_space<vmem>>, vector<512x8xf32>
    tpu.vector_store %arg5[%c0_5, %c0_6], %5 {strides = array<i32>} : memref<512x8xf32, #tpu.memory_space<vmem>>, vector<512x8xf32>,
    return
  }
  func.func @transform_0(%arg0: i32, %arg1: i32) -> (i32, i32) {
    %c0_i32 = arith.constant 0 : i32
    %c0_i32_0 = arith.constant 0 : i32
    return %arg0, %c0_i32 : i32, i32
  }
  func.func @transform_1(%arg0: i32, %arg1: i32) -> (i32, i32) {
    %c0_i32 = arith.constant 0 : i32
    %c0_i32_0 = arith.constant 0 : i32
    return %c0_i32, %arg1 : i32, i32
  }
  func.func @transform_2(%arg0: i32, %arg1: i32) -> (i32, i32) {
    %c0_i32 = arith.constant 0 : i32
    %c0_i32_0 = arith.constant 0 : i32
    return %c0_i32, %arg1 : i32, i32
  }
  func.func @transform_3(%arg0: i32, %arg1: i32) -> (i32, i32) {
    %c0_i32 = arith.constant 0 : i32
    return %arg0, %arg1 : i32, i32
  }
}

</mosaic_0001>

<llo_original>
// kernel: conv_cross_attention_forward.9
$region0: #{conv_cross_attention_forward.9}
  #allocation0 [shape = 'u32[]', space=smem, size = 0x4, offset = 0x4, fixed_abs, tag = 'smem constant byte address 0x4 - core index']
  #allocation1 [shape = 'u32[72,128]{1,0:T(1,128)}', space=vmem, size = 0x9000, scoped, tag = 'internal scratch']
  %s0 = inlined_call_operand.vmem [shape: f32[128,8], index: 0, kind: input, shape index: {}]
  %s1 = inlined_call_operand.vmem [shape: f32[8,256], index: 1, kind: input, shape index: {}]
  %s2 = inlined_call_operand.vmem [shape: f32[128,256], index: 2, kind: output, shape index: {}]
  %s3 = sld [smem:[#allocation0]]
  $region18: #{conv_cross_attention_forward.9} parent=0
    _
  %s5 = ssub.s32 1, %s3
  %s6 = scalar_select 0, %s5, %s3
  // Predicated region
  $region2: #{conv_cross_attention_forward.9} parent=0 // pred_check
    _
  $region3: #{conv_cross_attention_forward.9} parent=0 // pred_check_branch
    %8 = sbr.rel (0) target = $region5
  $region4: #{conv_cross_attention_forward.9} parent=0 // pred_region
    _
  $region5: #{conv_cross_attention_forward.9} parent=0 // pred_fallthru
    _
  // Predicated region
  $region6: #{conv_cross_attention_forward.9} parent=0 // pred_check
    _
  $region7: #{conv_cross_attention_forward.9} parent=0 // pred_check_branch
    %10 = sbr.rel (0) target = $region9
  $region8: #{conv_cross_attention_forward.9} parent=0 // pred_region
    _
  $region9: #{conv_cross_attention_forward.9} parent=0 // pred_fallthru
    _
  %v11 = vld [vmem:[%s0] sm:$0xff]
  %v12 = vld [vmem:[%s0 + $0x8] sm:$0xff]
  %v13 = vld [vmem:[%s0 + $0x10] sm:$0xff]
  %v14 = vld [vmem:[%s0 + $0x18] sm:$0xff]
  %v15 = vld [vmem:[%s0 + $0x20] sm:$0xff]
  %v16 = vld [vmem:[%s0 + $0x28] sm:$0xff]
  %v17 = vld [vmem:[%s0 + $0x30] sm:$0xff]
  %v18 = vld [vmem:[%s0 + $0x38] sm:$0xff]
  %v19 = vld [vmem:[%s0 + $0x40] sm:$0xff]
  %v20 = vld [vmem:[%s0 + $0x48] sm:$0xff]
  %v21 = vld [vmem:[%s0 + $0x50] sm:$0xff]
  %v22 = vld [vmem:[%s0 + $0x58] sm:$0xff]
  %v23 = vld [vmem:[%s0 + $0x60] sm:$0xff]
  %v24 = vld [vmem:[%s0 + $0x68] sm:$0xff]
  %v25 = vld [vmem:[%s0 + $0x70] sm:$0xff]
  %v26 = vld [vmem:[%s0 + $0x78] sm:$0xff]
  %v27 = vld [vmem:[%s1] sm:$0xff]
  %v28 = vld [vmem:[%s1 + $0x8] sm:$0xff]
  %vm29 = vcmask 64512
  %v31 = vsel %vm29, %v11, 0
  %v34 = vsel %vm29, %v12, 0
  %v37 = vsel %vm29, %v13, 0
  %v40 = vsel %vm29, %v14, 0
  %v43 = vsel %vm29, %v15, 0
  %v46 = vsel %vm29, %v16, 0
  %v49 = vsel %vm29, %v17, 0
  %v52 = vsel %vm29, %v18, 0
  %v55 = vsel %vm29, %v19, 0
  %v58 = vsel %vm29, %v20, 0
  %v61 = vsel %vm29, %v21, 0
  %v64 = vsel %vm29, %v22, 0
  %v67 = vsel %vm29, %v23, 0
  %v70 = vsel %vm29, %v24, 0
  %v73 = vsel %vm29, %v25, 0
  %v76 = vsel %vm29, %v26, 0
  %78 = vmatpush.msra.mxu0 0.0
  %79 = vmatpush.msra.mxu0 0.0
  %80 = vmatpush.msra.mxu0 0.0
  %81 = vmatpush.msra.mxu0 0.0
  %82 = vmatpush.msra.mxu0 0.0
  %83 = vmatpush.msra.mxu0 0.0
  %84 = vmatpush.msra.mxu0 0.0
  %85 = vmatpush.msra.mxu0 0.0
  %86 = vmatpush.msra.mxu0 0.0
  %87 = vmatpush.msra.mxu0 0.0
  %88 = vmatpush.msra.mxu0 0.0
  %89 = vmatpush.msra.mxu0 0.0
  %90 = vmatpush.msra.mxu0 0.0
  %91 = vmatpush.msra.mxu0 0.0
  %92 = vmatpush.msra.mxu0 0.0
  %93 = vmatpush.msra.mxu0 %v27
  %94 = vmatmul.f32.gmra.mxu0 %v31
  %v95 = vpop.f32.mrf.mxu0
  %v96 = vadd.f32 0.0, %v95
  %97 = vmatmul.f32.gmra.mxu0 %v34
  %v98 = vpop.f32.mrf.mxu0
  %v99 = vadd.f32 0.0, %v98
  %100 = vmatmul.f32.gmra.mxu0 %v37
  %v101 = vpop.f32.mrf.mxu0
  %v102 = vadd.f32 0.0, %v101
  %103 = vmatmul.f32.gmra.mxu0 %v40
  %v104 = vpop.f32.mrf.mxu0
  %v105 = vadd.f32 0.0, %v104
  %106 = vmatmul.f32.gmra.mxu0 %v43
  %v107 = vpop.f32.mrf.mxu0
  %v108 = vadd.f32 0.0, %v107
  %109 = vmatmul.f32.gmra.mxu0 %v46
  %v110 = vpop.f32.mrf.mxu0
  %v111 = vadd.f32 0.0, %v110
  %112 = vmatmul.f32.gmra.mxu0 %v49
  %v113 = vpop.f32.mrf.mxu0
  %v114 = vadd.f32 0.0, %v113
  %115 = vmatmul.f32.gmra.mxu0 %v52
  %v116 = vpop.f32.mrf.mxu0
  %v117 = vadd.f32 0.0, %v116
  %118 = vmatmul.f32.gmra.mxu0 %v55
  %v119 = vpop.f32.mrf.mxu0
  %v120 = vadd.f32 0.0, %v119
  %121 = vmatmul.f32.gmra.mxu0 %v58
  %v122 = vpop.f32.mrf.mxu0
  %v123 = vadd.f32 0.0, %v122
  %124 = vmatmul.f32.gmra.mxu0 %v61
  %v125 = vpop.f32.mrf.mxu0
  %v126 = vadd.f32 0.0, %v125
  %127 = vmatmul.f32.gmra.mxu0 %v64
  %v128 = vpop.f32.mrf.mxu0
  %v129 = vadd.f32 0.0, %v128
  %130 = vmatmul.f32.gmra.mxu0 %v67
  %v131 = vpop.f32.mrf.mxu0
  %v132 = vadd.f32 0.0, %v131
  %133 = vmatmul.f32.gmra.mxu0 %v70
  %v134 = vpop.f32.mrf.mxu0
  %v135 = vadd.f32 0.0, %v134
  %136 = vmatmul.f32.gmra.mxu0 %v73
  %v137 = vpop.f32.mrf.mxu0
  %v138 = vadd.f32 0.0, %v137
  %139 = vmatmul.f32.gmra.mxu0 %v76
  %v140 = vpop.f32.mrf.mxu0
  %v141 = vadd.f32 0.0, %v140
  %142 = vdwg.mxu0
  %143 = vmatpush.msra.mxu0 0.0
  %144 = vmatpush.msra.mxu0 0.0
  %145 = vmatpush.msra.mxu0 0.0
  %146 = vmatpush.msra.mxu0 0.0
  %147 = vmatpush.msra.mxu0 0.0
  %148 = vmatpush.msra.mxu0 0.0
  %149 = vmatpush.msra.mxu0 0.0
  %150 = vmatpush.msra.mxu0 0.0
  %151 = vmatpush.msra.mxu0 0.0
  %152 = vmatpush.msra.mxu0 0.0
  %153 = vmatpush.msra.mxu0 0.0
  %154 = vmatpush.msra.mxu0 0.0
  %155 = vmatpush.msra.mxu0 0.0
  %156 = vmatpush.msra.mxu0 0.0
  %157 = vmatpush.msra.mxu0 0.0
  %158 = vmatpush.msra.mxu0 %v28
  %159 = vmatmul.f32.gmra.mxu0 %v31
  %v160 = vpop.f32.mrf.mxu0
  %v161 = vadd.f32 0.0, %v160
  %162 = vmatmul.f32.gmra.mxu0 %v34
  %v163 = vpop.f32.mrf.mxu0
  %v164 = vadd.f32 0.0, %v163
  %165 = vmatmul.f32.gmra.mxu0 %v37
  %v166 = vpop.f32.mrf.mxu0
  %v167 = vadd.f32 0.0, %v166
  %168 = vmatmul.f32.gmra.mxu0 %v40
  %v169 = vpop.f32.mrf.mxu0
  %v170 = vadd.f32 0.0, %v169
  %171 = vmatmul.f32.gmra.mxu0 %v43
  %v172 = vpop.f32.mrf.mxu0
  %v173 = vadd.f32 0.0, %v172
  %174 = vmatmul.f32.gmra.mxu0 %v46
  %v175 = vpop.f32.mrf.mxu0
  %v176 = vadd.f32 0.0, %v175
  %177 = vmatmul.f32.gmra.mxu0 %v49
  %v178 = vpop.f32.mrf.mxu0
  %v179 = vadd.f32 0.0, %v178
  %180 = vmatmul.f32.gmra.mxu0 %v52
  %v181 = vpop.f32.mrf.mxu0
  %v182 = vadd.f32 0.0, %v181
  %183 = vmatmul.f32.gmra.mxu0 %v55
  %v184 = vpop.f32.mrf.mxu0
  %v185 = vadd.f32 0.0, %v184
  %186 = vmatmul.f32.gmra.mxu0 %v58
  %v187 = vpop.f32.mrf.mxu0
  %v188 = vadd.f32 0.0, %v187
  %189 = vmatmul.f32.gmra.mxu0 %v61
  %v190 = vpop.f32.mrf.mxu0
  %v191 = vadd.f32 0.0, %v190
  %192 = vmatmul.f32.gmra.mxu0 %v64
  %v193 = vpop.f32.mrf.mxu0
  %v194 = vadd.f32 0.0, %v193
  %195 = vmatmul.f32.gmra.mxu0 %v67
  %v196 = vpop.f32.mrf.mxu0
  %v197 = vadd.f32 0.0, %v196
  %198 = vmatmul.f32.gmra.mxu0 %v70
  %v199 = vpop.f32.mrf.mxu0
  %v200 = vadd.f32 0.0, %v199
  %201 = vmatmul.f32.gmra.mxu0 %v73
  %v202 = vpop.f32.mrf.mxu0
  %v203 = vadd.f32 0.0, %v202
  %204 = vmatmul.f32.gmra.mxu0 %v76
  %v205 = vpop.f32.mrf.mxu0
  %v206 = vadd.f32 0.0, %v205
  %207 = vdwg.mxu0
  %208 = vst [vmem:[%s2] sm:$0xff] %v96
  %209 = vst [vmem:[%s2 + $0x8] sm:$0xff] %v161
  %210 = vst [vmem:[%s2 + $0x10] sm:$0xff] %v99
  %211 = vst [vmem:[%s2 + $0x18] sm:$0xff] %v164
  %212 = vst [vmem:[%s2 + $0x20] sm:$0xff] %v102
  %213 = vst [vmem:[%s2 + $0x28] sm:$0xff] %v167
  %214 = vst [vmem:[%s2 + $0x30] sm:$0xff] %v105
  %215 = vst [vmem:[%s2 + $0x38] sm:$0xff] %v170
  %216 = vst [vmem:[%s2 + $0x40] sm:$0xff] %v108
  %217 = vst [vmem:[%s2 + $0x48] sm:$0xff] %v173
  %218 = vst [vmem:[%s2 + $0x50] sm:$0xff] %v111
  %219 = vst [vmem:[%s2 + $0x58] sm:$0xff] %v176
  %220 = vst [vmem:[%s2 + $0x60] sm:$0xff] %v114
  %221 = vst [vmem:[%s2 + $0x68] sm:$0xff] %v179
  %222 = vst [vmem:[%s2 + $0x70] sm:$0xff] %v117
  %223 = vst [vmem:[%s2 + $0x78] sm:$0xff] %v182
  %224 = vst [vmem:[%s2 + $0x80] sm:$0xff] %v120
  %225 = vst [vmem:[%s2 + $0x88] sm:$0xff] %v185
  %226 = vst [vmem:[%s2 + $0x90] sm:$0xff] %v123
  %227 = vst [vmem:[%s2 + $0x98] sm:$0xff] %v188
  %228 = vst [vmem:[%s2 + $0xa0] sm:$0xff] %v126
  %229 = vst [vmem:[%s2 + $0xa8] sm:$0xff] %v191
  %230 = vst [vmem:[%s2 + $0xb0] sm:$0xff] %v129
  %231 = vst [vmem:[%s2 + $0xb8] sm:$0xff] %v194
  %232 = vst [vmem:[%s2 + $0xc0] sm:$0xff] %v132
  %233 = vst [vmem:[%s2 + $0xc8] sm:$0xff] %v197
  %234 = vst [vmem:[%s2 + $0xd0] sm:$0xff] %v135
  %235 = vst [vmem:[%s2 + $0xd8] sm:$0xff] %v200
  %236 = vst [vmem:[%s2 + $0xe0] sm:$0xff] %v138
  %237 = vst [vmem:[%s2 + $0xe8] sm:$0xff] %v203
  %238 = vst [vmem:[%s2 + $0xf0] sm:$0xff] %v141
  %239 = vst [vmem:[%s2 + $0xf8] sm:$0xff] %v206
  // Predicated region
  $region10: #{conv_cross_attention_forward.9} parent=0 // pred_check
    _
  $region11: #{conv_cross_attention_forward.9} parent=0 // pred_check_branch
    %241 = sbr.rel (0) target = $region13
  $region12: #{conv_cross_attention_forward.9} parent=0 // pred_region
    _
  $region13: #{conv_cross_attention_forward.9} parent=0 // pred_fallthru
    _
  // Predicated region
  $region14: #{conv_cross_attention_forward.9} parent=0 // pred_check
    _
  $region15: #{conv_cross_attention_forward.9} parent=0 // pred_check_branch
    %243 = sbr.rel (0) target = $region17
  $region16: #{conv_cross_attention_forward.9} parent=0 // pred_region
    _
  $region17: #{conv_cross_attention_forward.9} parent=0 // pred_fallthru
    _

// kernel: conv_cross_attention_forward.10
$region0: #{conv_cross_attention_forward.10}
  #allocation0 [shape = 'u32[]', space=smem, size = 0x4, offset = 0x4, fixed_abs, tag = 'smem constant byte address 0x4 - core index']
  #allocation1 [shape = 'u32[72,128]{1,0:T(1,128)}', space=vmem, size = 0x9000, scoped, tag = 'internal scratch']
  %s0 = inlined_call_operand.vmem [shape: f32[512,8], index: 0, kind: input, shape index: {}]
  %s1 = inlined_call_operand.vmem [shape: f32[8,128], index: 1, kind: input, shape index: {}]
  %s2 = inlined_call_operand.vmem [shape: f32[512,128], index: 2, kind: output, shape index: {}]
  %s3 = sld [smem:[#allocation0]]
  $region18: #{conv_cross_attention_forward.10} parent=0
    _
  %s5 = ssub.s32 1, %s3
  %s6 = scalar_select 0, %s5, %s3
  // Predicated region
  $region2: #{conv_cross_attention_forward.10} parent=0 // pred_check
    _
  $region3: #{conv_cross_attention_forward.10} parent=0 // pred_check_branch
    %8 = sbr.rel (0) target = $region5
  $region4: #{conv_cross_attention_forward.10} parent=0 // pred_region
    _
  $region5: #{conv_cross_attention_forward.10} parent=0 // pred_fallthru
    _
  // Predicated region
  $region6: #{conv_cross_attention_forward.10} parent=0 // pred_check
    _
  $region7: #{conv_cross_attention_forward.10} parent=0 // pred_check_branch
    %10 = sbr.rel (0) target = $region9
  $region8: #{conv_cross_attention_forward.10} parent=0 // pred_region
    _
  $region9: #{conv_cross_attention_forward.10} parent=0 // pred_fallthru
    _
  %v11 = vld [vmem:[%s0] sm:$0xff]
  %v12 = vld [vmem:[%s0 + $0x8] sm:$0xff]
  %v13 = vld [vmem:[%s0 + $0x10] sm:$0xff]
  %v14 = vld [vmem:[%s0 + $0x18] sm:$0xff]
  %v15 = vld [vmem:[%s0 + $0x20] sm:$0xff]
  %v16 = vld [vmem:[%s0 + $0x28] sm:$0xff]
  %v17 = vld [vmem:[%s0 + $0x30] sm:$0xff]
  %v18 = vld [vmem:[%s0 + $0x38] sm:$0xff]
  %v19 = vld [vmem:[%s0 + $0x40] sm:$0xff]
  %v20 = vld [vmem:[%s0 + $0x48] sm:$0xff]
  %v21 = vld [vmem:[%s0 + $0x50] sm:$0xff]
  %v22 = vld [vmem:[%s0 + $0x58] sm:$0xff]
  %v23 = vld [vmem:[%s0 + $0x60] sm:$0xff]
  %v24 = vld [vmem:[%s0 + $0x68] sm:$0xff]
  %v25 = vld [vmem:[%s0 + $0x70] sm:$0xff]
  %v26 = vld [vmem:[%s0 + $0x78] sm:$0xff]
  %v27 = vld [vmem:[%s0 + $0x80] sm:$0xff]
  %v28 = vld [vmem:[%s0 + $0x88] sm:$0xff]
  %v29 = vld [vmem:[%s0 + $0x90] sm:$0xff]
  %v30 = vld [vmem:[%s0 + $0x98] sm:$0xff]
  %v31 = vld [vmem:[%s0 + $0xa0] sm:$0xff]
  %v32 = vld [vmem:[%s0 + $0xa8] sm:$0xff]
  %v33 = vld [vmem:[%s0 + $0xb0] sm:$0xff]
  %v34 = vld [vmem:[%s0 + $0xb8] sm:$0xff]
  %v35 = vld [vmem:[%s0 + $0xc0] sm:$0xff]
  %v36 = vld [vmem:[%s0 + $0xc8] sm:$0xff]
  %v37 = vld [vmem:[%s0 + $0xd0] sm:$0xff]
  %v38 = vld [vmem:[%s0 + $0xd8] sm:$0xff]
  %v39 = vld [vmem:[%s0 + $0xe0] sm:$0xff]
  %v40 = vld [vmem:[%s0 + $0xe8] sm:$0xff]
  %v41 = vld [vmem:[%s0 + $0xf0] sm:$0xff]
  %v42 = vld [vmem:[%s0 + $0xf8] sm:$0xff]
  %v43 = vld [vmem:[%s0 + $0x100] sm:$0xff]
  %v44 = vld [vmem:[%s0 + $0x108] sm:$0xff]
  %v45 = vld [vmem:[%s0 + $0x110] sm:$0xff]
  %v46 = vld [vmem:[%s0 + $0x118] sm:$0xff]
  %v47 = vld [vmem:[%s0 + $0x120] sm:$0xff]
  %v48 = vld [vmem:[%s0 + $0x128] sm:$0xff]
  %v49 = vld [vmem:[%s0 + $0x130] sm:$0xff]
  %v50 = vld [vmem:[%s0 + $0x138] sm:$0xff]
  %v51 = vld [vmem:[%s0 + $0x140] sm:$0xff]
  %v52 = vld [vmem:[%s0 + $0x148] sm:$0xff]
  %v53 = vld [vmem:[%s0 + $0x150] sm:$0xff]
  %v54 = vld [vmem:[%s0 + $0x158] sm:$0xff]
  %v55 = vld [vmem:[%s0 + $0x160] sm:$0xff]
  %v56 = vld [vmem:[%s0 + $0x168] sm:$0xff]
  %v57 = vld [vmem:[%s0 + $0x170] sm:$0xff]
  %v58 = vld [vmem:[%s0 + $0x178] sm:$0xff]
  %v59 = vld [vmem:[%s0 + $0x180] sm:$0xff]
  %v60 = vld [vmem:[%s0 + $0x188] sm:$0xff]
  %v61 = vld [vmem:[%s0 + $0x190] sm:$0xff]
  %v62 = vld [vmem:[%s0 + $0x198] sm:$0xff]
  %v63 = vld [vmem:[%s0 + $0x1a0] sm:$0xff]
  %v64 = vld [vmem:[%s0 + $0x1a8] sm:$0xff]
  %v65 = vld [vmem:[%s0 + $0x1b0] sm:$0xff]
  %v66 = vld [vmem:[%s0 + $0x1b8] sm:$0xff]
  %v67 = vld [vmem:[%s0 + $0x1c0] sm:$0xff]
  %v68 = vld [vmem:[%s0 + $0x1c8] sm:$0xff]
  %v69 = vld [vmem:[%s0 + $0x1d0] sm:$0xff]
  %v70 = vld [vmem:[%s0 + $0x1d8] sm:$0xff]
  %v71 = vld [vmem:[%s0 + $0x1e0] sm:$0xff]
  %v72 = vld [vmem:[%s0 + $0x1e8] sm:$0xff]
  %v73 = vld [vmem:[%s0 + $0x1f0] sm:$0xff]
  %v74 = vld [vmem:[%s0 + $0x1f8] sm:$0xff]
  %v75 = vld [vmem:[%s1] sm:$0xff]
  %vm76 = vcmask 64512
  %v78 = vsel %vm76, %v11, 0
  %v81 = vsel %vm76, %v12, 0
  %v84 = vsel %vm76, %v13, 0
  %v87 = vsel %vm76, %v14, 0
  %v90 = vsel %vm76, %v15, 0
  %v93 = vsel %vm76, %v16, 0
  %v96 = vsel %vm76, %v17, 0
  %v99 = vsel %vm76, %v18, 0
  %v102 = vsel %vm76, %v19, 0
  %v105 = vsel %vm76, %v20, 0
  %v108 = vsel %vm76, %v21, 0
  %v111 = vsel %vm76, %v22, 0
  %v114 = vsel %vm76, %v23, 0
  %v117 = vsel %vm76, %v24, 0
  %v120 = vsel %vm76, %v25, 0
  %v123 = vsel %vm76, %v26, 0
  %v126 = vsel %vm76, %v27, 0
  %v129 = vsel %vm76, %v28, 0
  %v132 = vsel %vm76, %v29, 0
  %v135 = vsel %vm76, %v30, 0
  %v138 = vsel %vm76, %v31, 0
  %v141 = vsel %vm76, %v32, 0
  %v144 = vsel %vm76, %v33, 0
  %v147 = vsel %vm76, %v34, 0
  %v150 = vsel %vm76, %v35, 0
  %v153 = vsel %vm76, %v36, 0
  %v156 = vsel %vm76, %v37, 0
  %v159 = vsel %vm76, %v38, 0
  %v162 = vsel %vm76, %v39, 0
  %v165 = vsel %vm76, %v40, 0
  %v168 = vsel %vm76, %v41, 0
  %v171 = vsel %vm76, %v42, 0
  %v174 = vsel %vm76, %v43, 0
  %v177 = vsel %vm76, %v44, 0
  %v180 = vsel %vm76, %v45, 0
  %v183 = vsel %vm76, %v46, 0
  %v186 = vsel %vm76, %v47, 0
  %v189 = vsel %vm76, %v48, 0
  %v192 = vsel %vm76, %v49, 0
  %v195 = vsel %vm76, %v50, 0
  %v198 = vsel %vm76, %v51, 0
  %v201 = vsel %vm76, %v52, 0
  %v204 = vsel %vm76, %v53, 0
  %v207 = vsel %vm76, %v54, 0
  %v210 = vsel %vm76, %v55, 0
  %v213 = vsel %vm76, %v56, 0
  %v216 = vsel %vm76, %v57, 0
  %v219 = vsel %vm76, %v58, 0
  %v222 = vsel %vm76, %v59, 0
  %v225 = vsel %vm76, %v60, 0
  %v228 = vsel %vm76, %v61, 0
  %v231 = vsel %vm76, %v62, 0
  %v234 = vsel %vm76, %v63, 0
  %v237 = vsel %vm76, %v64, 0
  %v240 = vsel %vm76, %v65, 0
  %v243 = vsel %vm76, %v66, 0
  %v246 = vsel %vm76, %v67, 0
  %v249 = vsel %vm76, %v68, 0
  %v252 = vsel %vm76, %v69, 0
  %v255 = vsel %vm76, %v70, 0
  %v258 = vsel %vm76, %v71, 0
  %v261 = vsel %vm76, %v72, 0
  %v264 = vsel %vm76, %v73, 0
  %v267 = vsel %vm76, %v74, 0
  %269 = vmatpush.msra.mxu0 0.0
  %270 = vmatpush.msra.mxu0 0.0
  %271 = vmatpush.msra.mxu0 0.0
  %272 = vmatpush.msra.mxu0 0.0
  %273 = vmatpush.msra.mxu0 0.0
  %274 = vmatpush.msra.mxu0 0.0
  %275 = vmatpush.msra.mxu0 0.0
  %276 = vmatpush.msra.mxu0 0.0
  %277 = vmatpush.msra.mxu0 0.0
  %278 = vmatpush.msra.mxu0 0.0
  %279 = vmatpush.msra.mxu0 0.0
  %280 = vmatpush.msra.mxu0 0.0
  %281 = vmatpush.msra.mxu0 0.0
  %282 = vmatpush.msra.mxu0 0.0
  %283 = vmatpush.msra.mxu0 0.0
  %284 = vmatpush.msra.mxu0 %v75
  %285 = vmatmul.f32.gmra.mxu0 %v78
  %v286 = vpop.f32.mrf.mxu0
  %v287 = vadd.f32 0.0, %v286
  %288 = vmatmul.f32.gmra.mxu0 %v81
  %v289 = vpop.f32.mrf.mxu0
  %v290 = vadd.f32 0.0, %v289
  %291 = vmatmul.f32.gmra.mxu0 %v84
  %v292 = vpop.f32.mrf.mxu0
  %v293 = vadd.f32 0.0, %v292
  %294 = vmatmul.f32.gmra.mxu0 %v87
  %v295 = vpop.f32.mrf.mxu0
  %v296 = vadd.f32 0.0, %v295
  %297 = vmatmul.f32.gmra.mxu0 %v90
  %v298 = vpop.f32.mrf.mxu0
  %v299 = vadd.f32 0.0, %v298
  %300 = vmatmul.f32.gmra.mxu0 %v93
  %v301 = vpop.f32.mrf.mxu0
  %v302 = vadd.f32 0.0, %v301
  %303 = vmatmul.f32.gmra.mxu0 %v96
  %v304 = vpop.f32.mrf.mxu0
  %v305 = vadd.f32 0.0, %v304
  %306 = vmatmul.f32.gmra.mxu0 %v99
  %v307 = vpop.f32.mrf.mxu0
  %v308 = vadd.f32 0.0, %v307
  %309 = vmatmul.f32.gmra.mxu0 %v102
  %v310 = vpop.f32.mrf.mxu0
  %v311 = vadd.f32 0.0, %v310
  %312 = vmatmul.f32.gmra.mxu0 %v105
  %v313 = vpop.f32.mrf.mxu0
  %v314 = vadd.f32 0.0, %v313
  %315 = vmatmul.f32.gmra.mxu0 %v108
  %v316 = vpop.f32.mrf.mxu0
  %v317 = vadd.f32 0.0, %v316
  %318 = vmatmul.f32.gmra.mxu0 %v111
  %v319 = vpop.f32.mrf.mxu0
  %v320 = vadd.f32 0.0, %v319
  %321 = vmatmul.f32.gmra.mxu0 %v114
  %v322 = vpop.f32.mrf.mxu0
  %v323 = vadd.f32 0.0, %v322
  %324 = vmatmul.f32.gmra.mxu0 %v117
  %v325 = vpop.f32.mrf.mxu0
  %v326 = vadd.f32 0.0, %v325
  %327 = vmatmul.f32.gmra.mxu0 %v120
  %v328 = vpop.f32.mrf.mxu0
  %v329 = vadd.f32 0.0, %v328
  %330 = vmatmul.f32.gmra.mxu0 %v123
  %v331 = vpop.f32.mrf.mxu0
  %v332 = vadd.f32 0.0, %v331
  %333 = vmatmul.f32.gmra.mxu0 %v126
  %v334 = vpop.f32.mrf.mxu0
  %v335 = vadd.f32 0.0, %v334
  %336 = vmatmul.f32.gmra.mxu0 %v129
  %v337 = vpop.f32.mrf.mxu0
  %v338 = vadd.f32 0.0, %v337
  %339 = vmatmul.f32.gmra.mxu0 %v132
  %v340 = vpop.f32.mrf.mxu0
  %v341 = vadd.f32 0.0, %v340
  %342 = vmatmul.f32.gmra.mxu0 %v135
  %v343 = vpop.f32.mrf.mxu0
  %v344 = vadd.f32 0.0, %v343
  %345 = vmatmul.f32.gmra.mxu0 %v138
  %v346 = vpop.f32.mrf.mxu0
  %v347 = vadd.f32 0.0, %v346
  %348 = vmatmul.f32.gmra.mxu0 %v141
  %v349 = vpop.f32.mrf.mxu0
  %v350 = vadd.f32 0.0, %v349
  %351 = vmatmul.f32.gmra.mxu0 %v144
  %v352 = vpop.f32.mrf.mxu0
  %v353 = vadd.f32 0.0, %v352
  %354 = vmatmul.f32.gmra.mxu0 %v147
  %v355 = vpop.f32.mrf.mxu0
  %v356 = vadd.f32 0.0, %v355
  %357 = vmatmul.f32.gmra.mxu0 %v150
  %v358 = vpop.f32.mrf.mxu0
  %v359 = vadd.f32 0.0, %v358
  %360 = vmatmul.f32.gmra.mxu0 %v153
  %v361 = vpop.f32.mrf.mxu0
  %v362 = vadd.f32 0.0, %v361
  %363 = vmatmul.f32.gmra.mxu0 %v156
  %v364 = vpop.f32.mrf.mxu0
  %v365 = vadd.f32 0.0, %v364
  %366 = vmatmul.f32.gmra.mxu0 %v159
  %v367 = vpop.f32.mrf.mxu0
  %v368 = vadd.f32 0.0, %v367
  %369 = vmatmul.f32.gmra.mxu0 %v162
  %v370 = vpop.f32.mrf.mxu0
  %v371 = vadd.f32 0.0, %v370
  %372 = vmatmul.f32.gmra.mxu0 %v165
  %v373 = vpop.f32.mrf.mxu0
  %v374 = vadd.f32 0.0, %v373
  %375 = vmatmul.f32.gmra.mxu0 %v168
  %v376 = vpop.f32.mrf.mxu0
  %v377 = vadd.f32 0.0, %v376
  %378 = vmatmul.f32.gmra.mxu0 %v171
  %v379 = vpop.f32.mrf.mxu0
  %v380 = vadd.f32 0.0, %v379
  %381 = vmatmul.f32.gmra.mxu0 %v174
  %v382 = vpop.f32.mrf.mxu0
  %v383 = vadd.f32 0.0, %v382
  %384 = vmatmul.f32.gmra.mxu0 %v177
  %v385 = vpop.f32.mrf.mxu0
  %v386 = vadd.f32 0.0, %v385
  %387 = vmatmul.f32.gmra.mxu0 %v180
  %v388 = vpop.f32.mrf.mxu0
  %v389 = vadd.f32 0.0, %v388
  %390 = vmatmul.f32.gmra.mxu0 %v183
  %v391 = vpop.f32.mrf.mxu0
  %v392 = vadd.f32 0.0, %v391
  %393 = vmatmul.f32.gmra.mxu0 %v186
  %v394 = vpop.f32.mrf.mxu0
  %v395 = vadd.f32 0.0, %v394
  %396 = vmatmul.f32.gmra.mxu0 %v189
  %v397 = vpop.f32.mrf.mxu0
  %v398 = vadd.f32 0.0, %v397
  %399 = vmatmul.f32.gmra.mxu0 %v192
  %v400 = vpop.f32.mrf.mxu0
  %v401 = vadd.f32 0.0, %v400
  %402 = vmatmul.f32.gmra.mxu0 %v195
  %v403 = vpop.f32.mrf.mxu0
  %v404 = vadd.f32 0.0, %v403
  %405 = vmatmul.f32.gmra.mxu0 %v198
  %v406 = vpop.f32.mrf.mxu0
  %v407 = vadd.f32 0.0, %v406
  %408 = vmatmul.f32.gmra.mxu0 %v201
  %v409 = vpop.f32.mrf.mxu0
  %v410 = vadd.f32 0.0, %v409
  %411 = vmatmul.f32.gmra.mxu0 %v204
  %v412 = vpop.f32.mrf.mxu0
  %v413 = vadd.f32 0.0, %v412
  %414 = vmatmul.f32.gmra.mxu0 %v207
  %v415 = vpop.f32.mrf.mxu0
  %v416 = vadd.f32 0.0, %v415
  %417 = vmatmul.f32.gmra.mxu0 %v210
  %v418 = vpop.f32.mrf.mxu0
  %v419 = vadd.f32 0.0, %v418
  %420 = vmatmul.f32.gmra.mxu0 %v213
  %v421 = vpop.f32.mrf.mxu0
  %v422 = vadd.f32 0.0, %v421
  %423 = vmatmul.f32.gmra.mxu0 %v216
  %v424 = vpop.f32.mrf.mxu0
  %v425 = vadd.f32 0.0, %v424
  %426 = vmatmul.f32.gmra.mxu0 %v219
  %v427 = vpop.f32.mrf.mxu0
  %v428 = vadd.f32 0.0, %v427
  %429 = vmatmul.f32.gmra.mxu0 %v222
  %v430 = vpop.f32.mrf.mxu0
  %v431 = vadd.f32 0.0, %v430
  %432 = vmatmul.f32.gmra.mxu0 %v225
  %v433 = vpop.f32.mrf.mxu0
  %v434 = vadd.f32 0.0, %v433
  %435 = vmatmul.f32.gmra.mxu0 %v228
  %v436 = vpop.f32.mrf.mxu0
  %v437 = vadd.f32 0.0, %v436
  %438 = vmatmul.f32.gmra.mxu0 %v231
  %v439 = vpop.f32.mrf.mxu0
  %v440 = vadd.f32 0.0, %v439
  %441 = vmatmul.f32.gmra.mxu0 %v234
  %v442 = vpop.f32.mrf.mxu0
  %v443 = vadd.f32 0.0, %v442
  %444 = vmatmul.f32.gmra.mxu0 %v237
  %v445 = vpop.f32.mrf.mxu0
  %v446 = vadd.f32 0.0, %v445
  %447 = vmatmul.f32.gmra.mxu0 %v240
  %v448 = vpop.f32.mrf.mxu0
  %v449 = vadd.f32 0.0, %v448
  %450 = vmatmul.f32.gmra.mxu0 %v243
  %v451 = vpop.f32.mrf.mxu0
  %v452 = vadd.f32 0.0, %v451
  %453 = vmatmul.f32.gmra.mxu0 %v246
  %v454 = vpop.f32.mrf.mxu0
  %v455 = vadd.f32 0.0, %v454
  %456 = vmatmul.f32.gmra.mxu0 %v249
  %v457 = vpop.f32.mrf.mxu0
  %v458 = vadd.f32 0.0, %v457
  %459 = vmatmul.f32.gmra.mxu0 %v252
  %v460 = vpop.f32.mrf.mxu0
  %v461 = vadd.f32 0.0, %v460
  %462 = vmatmul.f32.gmra.mxu0 %v255
  %v463 = vpop.f32.mrf.mxu0
  %v464 = vadd.f32 0.0, %v463
  %465 = vmatmul.f32.gmra.mxu0 %v258
  %v466 = vpop.f32.mrf.mxu0
  %v467 = vadd.f32 0.0, %v466
  %468 = vmatmul.f32.gmra.mxu0 %v261
  %v469 = vpop.f32.mrf.mxu0
  %v470 = vadd.f32 0.0, %v469
  %471 = vmatmul.f32.gmra.mxu0 %v264
  %v472 = vpop.f32.mrf.mxu0
  %v473 = vadd.f32 0.0, %v472
  %474 = vmatmul.f32.gmra.mxu0 %v267
  %v475 = vpop.f32.mrf.mxu0
  %v476 = vadd.f32 0.0, %v475
  %477 = vdwg.mxu0
  %478 = vst [vmem:[%s2] sm:$0xff] %v287
  %479 = vst [vmem:[%s2 + $0x8] sm:$0xff] %v290
  %480 = vst [vmem:[%s2 + $0x10] sm:$0xff] %v293
  %481 = vst [vmem:[%s2 + $0x18] sm:$0xff] %v296
  %482 = vst [vmem:[%s2 + $0x20] sm:$0xff] %v299
  %483 = vst [vmem:[%s2 + $0x28] sm:$0xff] %v302
  %484 = vst [vmem:[%s2 + $0x30] sm:$0xff] %v305
  %485 = vst [vmem:[%s2 + $0x38] sm:$0xff] %v308
  %486 = vst [vmem:[%s2 + $0x40] sm:$0xff] %v311
  %487 = vst [vmem:[%s2 + $0x48] sm:$0xff] %v314
  %488 = vst [vmem:[%s2 + $0x50] sm:$0xff] %v317
  %489 = vst [vmem:[%s2 + $0x58] sm:$0xff] %v320
  %490 = vst [vmem:[%s2 + $0x60] sm:$0xff] %v323
  %491 = vst [vmem:[%s2 + $0x68] sm:$0xff] %v326
  %492 = vst [vmem:[%s2 + $0x70] sm:$0xff] %v329
  %493 = vst [vmem:[%s2 + $0x78] sm:$0xff] %v332
  %494 = vst [vmem:[%s2 + $0x80] sm:$0xff] %v335
  %495 = vst [vmem:[%s2 + $0x88] sm:$0xff] %v338
  %496 = vst [vmem:[%s2 + $0x90] sm:$0xff] %v341
  %497 = vst [vmem:[%s2 + $0x98] sm:$0xff] %v344
  %498 = vst [vmem:[%s2 + $0xa0] sm:$0xff] %v347
  %499 = vst [vmem:[%s2 + $0xa8] sm:$0xff] %v350
  %500 = vst [vmem:[%s2 + $0xb0] sm:$0xff] %v353
  %501 = vst [vmem:[%s2 + $0xb8] sm:$0xff] %v356
  %502 = vst [vmem:[%s2 + $0xc0] sm:$0xff] %v359
  %503 = vst [vmem:[%s2 + $0xc8] sm:$0xff] %v362
  %504 = vst [vmem:[%s2 + $0xd0] sm:$0xff] %v365
  %505 = vst [vmem:[%s2 + $0xd8] sm:$0xff] %v368
  %506 = vst [vmem:[%s2 + $0xe0] sm:$0xff] %v371
  %507 = vst [vmem:[%s2 + $0xe8] sm:$0xff] %v374
  %508 = vst [vmem:[%s2 + $0xf0] sm:$0xff] %v377
  %509 = vst [vmem:[%s2 + $0xf8] sm:$0xff] %v380
  %510 = vst [vmem:[%s2 + $0x100] sm:$0xff] %v383
  %511 = vst [vmem:[%s2 + $0x108] sm:$0xff] %v386
  %512 = vst [vmem:[%s2 + $0x110] sm:$0xff] %v389
  %513 = vst [vmem:[%s2 + $0x118] sm:$0xff] %v392
  %514 = vst [vmem:[%s2 + $0x120] sm:$0xff] %v395
  %515 = vst [vmem:[%s2 + $0x128] sm:$0xff] %v398
  %516 = vst [vmem:[%s2 + $0x130] sm:$0xff] %v401
  %517 = vst [vmem:[%s2 + $0x138] sm:$0xff] %v404
  %518 = vst [vmem:[%s2 + $0x140] sm:$0xff] %v407
  %519 = vst [vmem:[%s2 + $0x148] sm:$0xff] %v410
  %520 = vst [vmem:[%s2 + $0x150] sm:$0xff] %v413
  %521 = vst [vmem:[%s2 + $0x158] sm:$0xff] %v416
  %522 = vst [vmem:[%s2 + $0x160] sm:$0xff] %v419
  %523 = vst [vmem:[%s2 + $0x168] sm:$0xff] %v422
  %524 = vst [vmem:[%s2 + $0x170] sm:$0xff] %v425
  %525 = vst [vmem:[%s2 + $0x178] sm:$0xff] %v428
  %526 = vst [vmem:[%s2 + $0x180] sm:$0xff] %v431
  %527 = vst [vmem:[%s2 + $0x188] sm:$0xff] %v434
  %528 = vst [vmem:[%s2 + $0x190] sm:$0xff] %v437
  %529 = vst [vmem:[%s2 + $0x198] sm:$0xff] %v440
  %530 = vst [vmem:[%s2 + $0x1a0] sm:$0xff] %v443
  %531 = vst [vmem:[%s2 + $0x1a8] sm:$0xff] %v446
  %532 = vst [vmem:[%s2 + $0x1b0] sm:$0xff] %v449
  %533 = vst [vmem:[%s2 + $0x1b8] sm:$0xff] %v452
  %534 = vst [vmem:[%s2 + $0x1c0] sm:$0xff] %v455
  %535 = vst [vmem:[%s2 + $0x1c8] sm:$0xff] %v458
  %536 = vst [vmem:[%s2 + $0x1d0] sm:$0xff] %v461
  %537 = vst [vmem:[%s2 + $0x1d8] sm:$0xff] %v464
  %538 = vst [vmem:[%s2 + $0x1e0] sm:$0xff] %v467
  %539 = vst [vmem:[%s2 + $0x1e8] sm:$0xff] %v470
  %540 = vst [vmem:[%s2 + $0x1f0] sm:$0xff] %v473
  %541 = vst [vmem:[%s2 + $0x1f8] sm:$0xff] %v476
  // Predicated region
  $region10: #{conv_cross_attention_forward.10} parent=0 // pred_check
    _
  $region11: #{conv_cross_attention_forward.10} parent=0 // pred_check_branch
    %543 = sbr.rel (0) target = $region13
  $region12: #{conv_cross_attention_forward.10} parent=0 // pred_region
    _
  $region13: #{conv_cross_attention_forward.10} parent=0 // pred_fallthru
    _
  // Predicated region
  $region14: #{conv_cross_attention_forward.10} parent=0 // pred_check
    _
  $region15: #{conv_cross_attention_forward.10} parent=0 // pred_check_branch
    %545 = sbr.rel (0) target = $region17
  $region16: #{conv_cross_attention_forward.10} parent=0 // pred_region
    _
  $region17: #{conv_cross_attention_forward.10} parent=0 // pred_fallthru
    _

// kernel: conv_cross_attention_forward.15
$region0: #{conv_cross_attention_forward.15}
  #allocation0 [shape = 'u32[]', space=smem, size = 0x4, offset = 0x4, fixed_abs, tag = 'smem constant byte address 0x4 - core index']
  #allocation1 [shape = 'u32[72,128]{1,0:T(1,128)}', space=vmem, size = 0x9000, scoped, tag = 'internal scratch']
  %s0 = inlined_call_operand.vmem [shape: f32[512,128], index: 0, kind: input, shape index: {}]
  %s1 = inlined_call_operand.vmem [shape: f32[128,8], index: 1, kind: input, shape index: {}]
  %s2 = inlined_call_operand.vmem [shape: f32[1,8], index: 2, kind: input, shape index: {}]
  %s3 = inlined_call_operand.vmem [shape: f32[512,8], index: 3, kind: output, shape index: {}]
  %s4 = sld [smem:[#allocation0]]
  $region22: #{conv_cross_attention_forward.15} parent=0
    _
  %s6 = ssub.s32 1, %s4
  %s7 = scalar_select 0, %s6, %s4
  // Predicated region
  $region2: #{conv_cross_attention_forward.15} parent=0 // pred_check
    _
  $region3: #{conv_cross_attention_forward.15} parent=0 // pred_check_branch
    %9 = sbr.rel (0) target = $region5
  $region4: #{conv_cross_attention_forward.15} parent=0 // pred_region
    _
  $region5: #{conv_cross_attention_forward.15} parent=0 // pred_fallthru
    _
  // Predicated region
  $region6: #{conv_cross_attention_forward.15} parent=0 // pred_check
    _
  $region7: #{conv_cross_attention_forward.15} parent=0 // pred_check_branch
    %11 = sbr.rel (0) target = $region9
  $region8: #{conv_cross_attention_forward.15} parent=0 // pred_region
    _
  $region9: #{conv_cross_attention_forward.15} parent=0 // pred_fallthru
    _
  // Predicated region
  $region10: #{conv_cross_attention_forward.15} parent=0 // pred_check
    _
  $region11: #{conv_cross_attention_forward.15} parent=0 // pred_check_branch
    %13 = sbr.rel (0) target = $region13
  $region12: #{conv_cross_attention_forward.15} parent=0 // pred_region
    _
  $region13: #{conv_cross_attention_forward.15} parent=0 // pred_fallthru
    _
  %v14 = vld [vmem:[%s0] sm:$0xff]
  %v15 = vld [vmem:[%s0 + $0x8] sm:$0xff]
  %v16 = vld [vmem:[%s0 + $0x10] sm:$0xff]
  %v17 = vld [vmem:[%s0 + $0x18] sm:$0xff]
  %v18 = vld [vmem:[%s0 + $0x20] sm:$0xff]
  %v19 = vld [vmem:[%s0 + $0x28] sm:$0xff]
  %v20 = vld [vmem:[%s0 + $0x30] sm:$0xff]
  %v21 = vld [vmem:[%s0 + $0x38] sm:$0xff]
  %v22 = vld [vmem:[%s0 + $0x40] sm:$0xff]
  %v23 = vld [vmem:[%s0 + $0x48] sm:$0xff]
  %v24 = vld [vmem:[%s0 + $0x50] sm:$0xff]
  %v25 = vld [vmem:[%s0 + $0x58] sm:$0xff]
  %v26 = vld [vmem:[%s0 + $0x60] sm:$0xff]
  %v27 = vld [vmem:[%s0 + $0x68] sm:$0xff]
  %v28 = vld [vmem:[%s0 + $0x70] sm:$0xff]
  %v29 = vld [vmem:[%s0 + $0x78] sm:$0xff]
  %v30 = vld [vmem:[%s0 + $0x80] sm:$0xff]
  %v31 = vld [vmem:[%s0 + $0x88] sm:$0xff]
  %v32 = vld [vmem:[%s0 + $0x90] sm:$0xff]
  %v33 = vld [vmem:[%s0 + $0x98] sm:$0xff]
  %v34 = vld [vmem:[%s0 + $0xa0] sm:$0xff]
  %v35 = vld [vmem:[%s0 + $0xa8] sm:$0xff]
  %v36 = vld [vmem:[%s0 + $0xb0] sm:$0xff]
  %v37 = vld [vmem:[%s0 + $0xb8] sm:$0xff]
  %v38 = vld [vmem:[%s0 + $0xc0] sm:$0xff]
  %v39 = vld [vmem:[%s0 + $0xc8] sm:$0xff]
  %v40 = vld [vmem:[%s0 + $0xd0] sm:$0xff]
  %v41 = vld [vmem:[%s0 + $0xd8] sm:$0xff]
  %v42 = vld [vmem:[%s0 + $0xe0] sm:$0xff]
  %v43 = vld [vmem:[%s0 + $0xe8] sm:$0xff]
  %v44 = vld [vmem:[%s0 + $0xf0] sm:$0xff]
  %v45 = vld [vmem:[%s0 + $0xf8] sm:$0xff]
  %v46 = vld [vmem:[%s0 + $0x100] sm:$0xff]
  %v47 = vld [vmem:[%s0 + $0x108] sm:$0xff]
  %v48 = vld [vmem:[%s0 + $0x110] sm:$0xff]
  %v49 = vld [vmem:[%s0 + $0x118] sm:$0xff]
  %v50 = vld [vmem:[%s0 + $0x120] sm:$0xff]
  %v51 = vld [vmem:[%s0 + $0x128] sm:$0xff]
  %v52 = vld [vmem:[%s0 + $0x130] sm:$0xff]
  %v53 = vld [vmem:[%s0 + $0x138] sm:$0xff]
  %v54 = vld [vmem:[%s0 + $0x140] sm:$0xff]
  %v55 = vld [vmem:[%s0 + $0x148] sm:$0xff]
  %v56 = vld [vmem:[%s0 + $0x150] sm:$0xff]
  %v57 = vld [vmem:[%s0 + $0x158] sm:$0xff]
  %v58 = vld [vmem:[%s0 + $0x160] sm:$0xff]
  %v59 = vld [vmem:[%s0 + $0x168] sm:$0xff]
  %v60 = vld [vmem:[%s0 + $0x170] sm:$0xff]
  %v61 = vld [vmem:[%s0 + $0x178] sm:$0xff]
  %v62 = vld [vmem:[%s0 + $0x180] sm:$0xff]
  %v63 = vld [vmem:[%s0 + $0x188] sm:$0xff]
  %v64 = vld [vmem:[%s0 + $0x190] sm:$0xff]
  %v65 = vld [vmem:[%s0 + $0x198] sm:$0xff]
  %v66 = vld [vmem:[%s0 + $0x1a0] sm:$0xff]
  %v67 = vld [vmem:[%s0 + $0x1a8] sm:$0xff]
  %v68 = vld [vmem:[%s0 + $0x1b0] sm:$0xff]
  %v69 = vld [vmem:[%s0 + $0x1b8] sm:$0xff]
  %v70 = vld [vmem:[%s0 + $0x1c0] sm:$0xff]
  %v71 = vld [vmem:[%s0 + $0x1c8] sm:$0xff]
  %v72 = vld [vmem:[%s0 + $0x1d0] sm:$0xff]
  %v73 = vld [vmem:[%s0 + $0x1d8] sm:$0xff]
  %v74 = vld [vmem:[%s0 + $0x1e0] sm:$0xff]
  %v75 = vld [vmem:[%s0 + $0x1e8] sm:$0xff]
  %v76 = vld [vmem:[%s0 + $0x1f0] sm:$0xff]
  %v77 = vld [vmem:[%s0 + $0x1f8] sm:$0xff]
  %v78 = vld [vmem:[%s1] sm:$0xff]
  %v79 = vld [vmem:[%s1 + $0x8] sm:$0xff]
  %v80 = vld [vmem:[%s1 + $0x10] sm:$0xff]
  %v81 = vld [vmem:[%s1 + $0x18] sm:$0xff]
  %v82 = vld [vmem:[%s1 + $0x20] sm:$0xff]
  %v83 = vld [vmem:[%s1 + $0x28] sm:$0xff]
  %v84 = vld [vmem:[%s1 + $0x30] sm:$0xff]
  %v85 = vld [vmem:[%s1 + $0x38] sm:$0xff]
  %v86 = vld [vmem:[%s1 + $0x40] sm:$0xff]
  %v87 = vld [vmem:[%s1 + $0x48] sm:$0xff]
  %v88 = vld [vmem:[%s1 + $0x50] sm:$0xff]
  %v89 = vld [vmem:[%s1 + $0x58] sm:$0xff]
  %v90 = vld [vmem:[%s1 + $0x60] sm:$0xff]
  %v91 = vld [vmem:[%s1 + $0x68] sm:$0xff]
  %v92 = vld [vmem:[%s1 + $0x70] sm:$0xff]
  %v93 = vld [vmem:[%s1 + $0x78] sm:$0xff]
  %v94 = vld [vmem:[%s2] sm:$0x1]
  %v96 = vperm.slane %v94, 0
  %98 = vmatpush.msra.mxu0 %v93
  %99 = vmatpush.msra.mxu0 %v92
  %100 = vmatpush.msra.mxu0 %v91
  %101 = vmatpush.msra.mxu0 %v90
  %102 = vmatpush.msra.mxu0 %v89
  %103 = vmatpush.msra.mxu0 %v88
  %104 = vmatpush.msra.mxu0 %v87
  %105 = vmatpush.msra.mxu0 %v86
  %106 = vmatpush.msra.mxu0 %v85
  %107 = vmatpush.msra.mxu0 %v84
  %108 = vmatpush.msra.mxu0 %v83
  %109 = vmatpush.msra.mxu0 %v82
  %110 = vmatpush.msra.mxu0 %v81
  %111 = vmatpush.msra.mxu0 %v80
  %112 = vmatpush.msra.mxu0 %v79
  %113 = vmatpush.msra.mxu0 %v78
  %114 = vmatmul.f32.gmra.mxu0 %v14
  %v115 = vpop.f32.mrf.mxu0
  %v116 = vadd.f32 %v96, %v115
  %117 = vmatmul.f32.gmra.mxu0 %v15
  %v118 = vpop.f32.mrf.mxu0
  %v119 = vadd.f32 %v96, %v118
  %120 = vmatmul.f32.gmra.mxu0 %v16
  %v121 = vpop.f32.mrf.mxu0
  %v122 = vadd.f32 %v96, %v121
  %123 = vmatmul.f32.gmra.mxu0 %v17
  %v124 = vpop.f32.mrf.mxu0
  %v125 = vadd.f32 %v96, %v124
  %126 = vmatmul.f32.gmra.mxu0 %v18
  %v127 = vpop.f32.mrf.mxu0
  %v128 = vadd.f32 %v96, %v127
  %129 = vmatmul.f32.gmra.mxu0 %v19
  %v130 = vpop.f32.mrf.mxu0
  %v131 = vadd.f32 %v96, %v130
  %132 = vmatmul.f32.gmra.mxu0 %v20
  %v133 = vpop.f32.mrf.mxu0
  %v134 = vadd.f32 %v96, %v133
  %135 = vmatmul.f32.gmra.mxu0 %v21
  %v136 = vpop.f32.mrf.mxu0
  %v137 = vadd.f32 %v96, %v136
  %138 = vmatmul.f32.gmra.mxu0 %v22
  %v139 = vpop.f32.mrf.mxu0
  %v140 = vadd.f32 %v96, %v139
  %141 = vmatmul.f32.gmra.mxu0 %v23
  %v142 = vpop.f32.mrf.mxu0
  %v143 = vadd.f32 %v96, %v142
  %144 = vmatmul.f32.gmra.mxu0 %v24
  %v145 = vpop.f32.mrf.mxu0
  %v146 = vadd.f32 %v96, %v145
  %147 = vmatmul.f32.gmra.mxu0 %v25
  %v148 = vpop.f32.mrf.mxu0
  %v149 = vadd.f32 %v96, %v148
  %150 = vmatmul.f32.gmra.mxu0 %v26
  %v151 = vpop.f32.mrf.mxu0
  %v152 = vadd.f32 %v96, %v151
  %153 = vmatmul.f32.gmra.mxu0 %v27
  %v154 = vpop.f32.mrf.mxu0
  %v155 = vadd.f32 %v96, %v154
  %156 = vmatmul.f32.gmra.mxu0 %v28
  %v157 = vpop.f32.mrf.mxu0
  %v158 = vadd.f32 %v96, %v157
  %159 = vmatmul.f32.gmra.mxu0 %v29
  %v160 = vpop.f32.mrf.mxu0
  %v161 = vadd.f32 %v96, %v160
  %162 = vmatmul.f32.gmra.mxu0 %v30
  %v163 = vpop.f32.mrf.mxu0
  %v164 = vadd.f32 %v96, %v163
  %165 = vmatmul.f32.gmra.mxu0 %v31
  %v166 = vpop.f32.mrf.mxu0
  %v167 = vadd.f32 %v96, %v166
  %168 = vmatmul.f32.gmra.mxu0 %v32
  %v169 = vpop.f32.mrf.mxu0
  %v170 = vadd.f32 %v96, %v169
  %171 = vmatmul.f32.gmra.mxu0 %v33
  %v172 = vpop.f32.mrf.mxu0
  %v173 = vadd.f32 %v96, %v172
  %174 = vmatmul.f32.gmra.mxu0 %v34
  %v175 = vpop.f32.mrf.mxu0
  %v176 = vadd.f32 %v96, %v175
  %177 = vmatmul.f32.gmra.mxu0 %v35
  %v178 = vpop.f32.mrf.mxu0
  %v179 = vadd.f32 %v96, %v178
  %180 = vmatmul.f32.gmra.mxu0 %v36
  %v181 = vpop.f32.mrf.mxu0
  %v182 = vadd.f32 %v96, %v181
  %183 = vmatmul.f32.gmra.mxu0 %v37
  %v184 = vpop.f32.mrf.mxu0
  %v185 = vadd.f32 %v96, %v184
  %186 = vmatmul.f32.gmra.mxu0 %v38
  %v187 = vpop.f32.mrf.mxu0
  %v188 = vadd.f32 %v96, %v187
  %189 = vmatmul.f32.gmra.mxu0 %v39
  %v190 = vpop.f32.mrf.mxu0
  %v191 = vadd.f32 %v96, %v190
  %192 = vmatmul.f32.gmra.mxu0 %v40
  %v193 = vpop.f32.mrf.mxu0
  %v194 = vadd.f32 %v96, %v193
  %195 = vmatmul.f32.gmra.mxu0 %v41
  %v196 = vpop.f32.mrf.mxu0
  %v197 = vadd.f32 %v96, %v196
  %198 = vmatmul.f32.gmra.mxu0 %v42
  %v199 = vpop.f32.mrf.mxu0
  %v200 = vadd.f32 %v96, %v199
  %201 = vmatmul.f32.gmra.mxu0 %v43
  %v202 = vpop.f32.mrf.mxu0
  %v203 = vadd.f32 %v96, %v202
  %204 = vmatmul.f32.gmra.mxu0 %v44
  %v205 = vpop.f32.mrf.mxu0
  %v206 = vadd.f32 %v96, %v205
  %207 = vmatmul.f32.gmra.mxu0 %v45
  %v208 = vpop.f32.mrf.mxu0
  %v209 = vadd.f32 %v96, %v208
  %210 = vmatmul.f32.gmra.mxu0 %v46
  %v211 = vpop.f32.mrf.mxu0
  %v212 = vadd.f32 %v96, %v211
  %213 = vmatmul.f32.gmra.mxu0 %v47
  %v214 = vpop.f32.mrf.mxu0
  %v215 = vadd.f32 %v96, %v214
  %216 = vmatmul.f32.gmra.mxu0 %v48
  %v217 = vpop.f32.mrf.mxu0
  %v218 = vadd.f32 %v96, %v217
  %219 = vmatmul.f32.gmra.mxu0 %v49
  %v220 = vpop.f32.mrf.mxu0
  %v221 = vadd.f32 %v96, %v220
  %222 = vmatmul.f32.gmra.mxu0 %v50
  %v223 = vpop.f32.mrf.mxu0
  %v224 = vadd.f32 %v96, %v223
  %225 = vmatmul.f32.gmra.mxu0 %v51
  %v226 = vpop.f32.mrf.mxu0
  %v227 = vadd.f32 %v96, %v226
  %228 = vmatmul.f32.gmra.mxu0 %v52
  %v229 = vpop.f32.mrf.mxu0
  %v230 = vadd.f32 %v96, %v229
  %231 = vmatmul.f32.gmra.mxu0 %v53
  %v232 = vpop.f32.mrf.mxu0
  %v233 = vadd.f32 %v96, %v232
  %234 = vmatmul.f32.gmra.mxu0 %v54
  %v235 = vpop.f32.mrf.mxu0
  %v236 = vadd.f32 %v96, %v235
  %237 = vmatmul.f32.gmra.mxu0 %v55
  %v238 = vpop.f32.mrf.mxu0
  %v239 = vadd.f32 %v96, %v238
  %240 = vmatmul.f32.gmra.mxu0 %v56
  %v241 = vpop.f32.mrf.mxu0
  %v242 = vadd.f32 %v96, %v241
  %243 = vmatmul.f32.gmra.mxu0 %v57
  %v244 = vpop.f32.mrf.mxu0
  %v245 = vadd.f32 %v96, %v244
  %246 = vmatmul.f32.gmra.mxu0 %v58
  %v247 = vpop.f32.mrf.mxu0
  %v248 = vadd.f32 %v96, %v247
  %249 = vmatmul.f32.gmra.mxu0 %v59
  %v250 = vpop.f32.mrf.mxu0
  %v251 = vadd.f32 %v96, %v250
  %252 = vmatmul.f32.gmra.mxu0 %v60
  %v253 = vpop.f32.mrf.mxu0
  %v254 = vadd.f32 %v96, %v253
  %255 = vmatmul.f32.gmra.mxu0 %v61
  %v256 = vpop.f32.mrf.mxu0
  %v257 = vadd.f32 %v96, %v256
  %258 = vmatmul.f32.gmra.mxu0 %v62
  %v259 = vpop.f32.mrf.mxu0
  %v260 = vadd.f32 %v96, %v259
  %261 = vmatmul.f32.gmra.mxu0 %v63
  %v262 = vpop.f32.mrf.mxu0
  %v263 = vadd.f32 %v96, %v262
  %264 = vmatmul.f32.gmra.mxu0 %v64
  %v265 = vpop.f32.mrf.mxu0
  %v266 = vadd.f32 %v96, %v265
  %267 = vmatmul.f32.gmra.mxu0 %v65
  %v268 = vpop.f32.mrf.mxu0
  %v269 = vadd.f32 %v96, %v268
  %270 = vmatmul.f32.gmra.mxu0 %v66
  %v271 = vpop.f32.mrf.mxu0
  %v272 = vadd.f32 %v96, %v271
  %273 = vmatmul.f32.gmra.mxu0 %v67
  %v274 = vpop.f32.mrf.mxu0
  %v275 = vadd.f32 %v96, %v274
  %276 = vmatmul.f32.gmra.mxu0 %v68
  %v277 = vpop.f32.mrf.mxu0
  %v278 = vadd.f32 %v96, %v277
  %279 = vmatmul.f32.gmra.mxu0 %v69
  %v280 = vpop.f32.mrf.mxu0
  %v281 = vadd.f32 %v96, %v280
  %282 = vmatmul.f32.gmra.mxu0 %v70
  %v283 = vpop.f32.mrf.mxu0
  %v284 = vadd.f32 %v96, %v283
  %285 = vmatmul.f32.gmra.mxu0 %v71
  %v286 = vpop.f32.mrf.mxu0
  %v287 = vadd.f32 %v96, %v286
  %288 = vmatmul.f32.gmra.mxu0 %v72
  %v289 = vpop.f32.mrf.mxu0
  %v290 = vadd.f32 %v96, %v289
  %291 = vmatmul.f32.gmra.mxu0 %v73
  %v292 = vpop.f32.mrf.mxu0
  %v293 = vadd.f32 %v96, %v292
  %294 = vmatmul.f32.gmra.mxu0 %v74
  %v295 = vpop.f32.mrf.mxu0
  %v296 = vadd.f32 %v96, %v295
  %297 = vmatmul.f32.gmra.mxu0 %v75
  %v298 = vpop.f32.mrf.mxu0
  %v299 = vadd.f32 %v96, %v298
  %300 = vmatmul.f32.gmra.mxu0 %v76
  %v301 = vpop.f32.mrf.mxu0
  %v302 = vadd.f32 %v96, %v301
  %303 = vmatmul.f32.gmra.mxu0 %v77
  %v304 = vpop.f32.mrf.mxu0
  %v305 = vadd.f32 %v96, %v304
  %306 = vdwg.mxu0
  %vm307 = vcmask 64512
  %308 = vst.msk [vmem:[%s3] sm:$0xff] %vm307, %v116
  %309 = vst.msk [vmem:[%s3 + $0x8] sm:$0xff] %vm307, %v119
  %310 = vst.msk [vmem:[%s3 + $0x10] sm:$0xff] %vm307, %v122
  %311 = vst.msk [vmem:[%s3 + $0x18] sm:$0xff] %vm307, %v125
  %312 = vst.msk [vmem:[%s3 + $0x20] sm:$0xff] %vm307, %v128
  %313 = vst.msk [vmem:[%s3 + $0x28] sm:$0xff] %vm307, %v131
  %314 = vst.msk [vmem:[%s3 + $0x30] sm:$0xff] %vm307, %v134
  %315 = vst.msk [vmem:[%s3 + $0x38] sm:$0xff] %vm307, %v137
  %316 = vst.msk [vmem:[%s3 + $0x40] sm:$0xff] %vm307, %v140
  %317 = vst.msk [vmem:[%s3 + $0x48] sm:$0xff] %vm307, %v143
  %318 = vst.msk [vmem:[%s3 + $0x50] sm:$0xff] %vm307, %v146
  %319 = vst.msk [vmem:[%s3 + $0x58] sm:$0xff] %vm307, %v149
  %320 = vst.msk [vmem:[%s3 + $0x60] sm:$0xff] %vm307, %v152
  %321 = vst.msk [vmem:[%s3 + $0x68] sm:$0xff] %vm307, %v155
  %322 = vst.msk [vmem:[%s3 + $0x70] sm:$0xff] %vm307, %v158
  %323 = vst.msk [vmem:[%s3 + $0x78] sm:$0xff] %vm307, %v161
  %324 = vst.msk [vmem:[%s3 + $0x80] sm:$0xff] %vm307, %v164
  %325 = vst.msk [vmem:[%s3 + $0x88] sm:$0xff] %vm307, %v167
  %326 = vst.msk [vmem:[%s3 + $0x90] sm:$0xff] %vm307, %v170
  %327 = vst.msk [vmem:[%s3 + $0x98] sm:$0xff] %vm307, %v173
  %328 = vst.msk [vmem:[%s3 + $0xa0] sm:$0xff] %vm307, %v176
  %329 = vst.msk [vmem:[%s3 + $0xa8] sm:$0xff] %vm307, %v179
  %330 = vst.msk [vmem:[%s3 + $0xb0] sm:$0xff] %vm307, %v182
  %331 = vst.msk [vmem:[%s3 + $0xb8] sm:$0xff] %vm307, %v185
  %332 = vst.msk [vmem:[%s3 + $0xc0] sm:$0xff] %vm307, %v188
  %333 = vst.msk [vmem:[%s3 + $0xc8] sm:$0xff] %vm307, %v191
  %334 = vst.msk [vmem:[%s3 + $0xd0] sm:$0xff] %vm307, %v194
  %335 = vst.msk [vmem:[%s3 + $0xd8] sm:$0xff] %vm307, %v197
  %336 = vst.msk [vmem:[%s3 + $0xe0] sm:$0xff] %vm307, %v200
  %337 = vst.msk [vmem:[%s3 + $0xe8] sm:$0xff] %vm307, %v203
  %338 = vst.msk [vmem:[%s3 + $0xf0] sm:$0xff] %vm307, %v206
  %339 = vst.msk [vmem:[%s3 + $0xf8] sm:$0xff] %vm307, %v209
  %340 = vst.msk [vmem:[%s3 + $0x100] sm:$0xff] %vm307, %v212
  %341 = vst.msk [vmem:[%s3 + $0x108] sm:$0xff] %vm307, %v215
  %342 = vst.msk [vmem:[%s3 + $0x110] sm:$0xff] %vm307, %v218
  %343 = vst.msk [vmem:[%s3 + $0x118] sm:$0xff] %vm307, %v221
  %344 = vst.msk [vmem:[%s3 + $0x120] sm:$0xff] %vm307, %v224
  %345 = vst.msk [vmem:[%s3 + $0x128] sm:$0xff] %vm307, %v227
  %346 = vst.msk [vmem:[%s3 + $0x130] sm:$0xff] %vm307, %v230
  %347 = vst.msk [vmem:[%s3 + $0x138] sm:$0xff] %vm307, %v233
  %348 = vst.msk [vmem:[%s3 + $0x140] sm:$0xff] %vm307, %v236
  %349 = vst.msk [vmem:[%s3 + $0x148] sm:$0xff] %vm307, %v239
  %350 = vst.msk [vmem:[%s3 + $0x150] sm:$0xff] %vm307, %v242
  %351 = vst.msk [vmem:[%s3 + $0x158] sm:$0xff] %vm307, %v245
  %352 = vst.msk [vmem:[%s3 + $0x160] sm:$0xff] %vm307, %v248
  %353 = vst.msk [vmem:[%s3 + $0x168] sm:$0xff] %vm307, %v251
  %354 = vst.msk [vmem:[%s3 + $0x170] sm:$0xff] %vm307, %v254
  %355 = vst.msk [vmem:[%s3 + $0x178] sm:$0xff] %vm307, %v257
  %356 = vst.msk [vmem:[%s3 + $0x180] sm:$0xff] %vm307, %v260
  %357 = vst.msk [vmem:[%s3 + $0x188] sm:$0xff] %vm307, %v263
  %358 = vst.msk [vmem:[%s3 + $0x190] sm:$0xff] %vm307, %v266
  %359 = vst.msk [vmem:[%s3 + $0x198] sm:$0xff] %vm307, %v269
  %360 = vst.msk [vmem:[%s3 + $0x1a0] sm:$0xff] %vm307, %v272
  %361 = vst.msk [vmem:[%s3 + $0x1a8] sm:$0xff] %vm307, %v275
  %362 = vst.msk [vmem:[%s3 + $0x1b0] sm:$0xff] %vm307, %v278
  %363 = vst.msk [vmem:[%s3 + $0x1b8] sm:$0xff] %vm307, %v281
  %364 = vst.msk [vmem:[%s3 + $0x1c0] sm:$0xff] %vm307, %v284
  %365 = vst.msk [vmem:[%s3 + $0x1c8] sm:$0xff] %vm307, %v287
  %366 = vst.msk [vmem:[%s3 + $0x1d0] sm:$0xff] %vm307, %v290
  %367 = vst.msk [vmem:[%s3 + $0x1d8] sm:$0xff] %vm307, %v293
  %368 = vst.msk [vmem:[%s3 + $0x1e0] sm:$0xff] %vm307, %v296
  %369 = vst.msk [vmem:[%s3 + $0x1e8] sm:$0xff] %vm307, %v299
  %370 = vst.msk [vmem:[%s3 + $0x1f0] sm:$0xff] %vm307, %v302
  %371 = vst.msk [vmem:[%s3 + $0x1f8] sm:$0xff] %vm307, %v305
  // Predicated region
  $region14: #{conv_cross_attention_forward.15} parent=0 // pred_check
    _
  $region15: #{conv_cross_attention_forward.15} parent=0 // pred_check_branch
    %373 = sbr.rel (0) target = $region17
  $region16: #{conv_cross_attention_forward.15} parent=0 // pred_region
    _
  $region17: #{conv_cross_attention_forward.15} parent=0 // pred_fallthru
    _
  // Predicated region
  $region18: #{conv_cross_attention_forward.15} parent=0 // pred_check
    _
  $region19: #{conv_cross_attention_forward.15} parent=0 // pred_check_branch
    %375 = sbr.rel (0) target = $region21
  $region20: #{conv_cross_attention_forward.15} parent=0 // pred_region
    _
  $region21: #{conv_cross_attention_forward.15} parent=0 // pred_fallthru
    _

// kernel: conv_cross_attention_forward.13
$region0: #{conv_cross_attention_forward.13}
  #allocation0 [shape = 'u32[]', space=smem, size = 0x4, offset = 0x4, fixed_abs, tag = 'smem constant byte address 0x4 - core index']
  #allocation1 [shape = 'u32[72,128]{1,0:T(1,128)}', space=vmem, size = 0x9000, scoped, tag = 'internal scratch']
  #allocation2 [shape = 'f32[2,256,1]{2,1,0:T(8,128)}', space=vmem, size = 0x40000, scoped, tag = 'scratch operand']
  #allocation3 [shape = 'f32[2,256,1]{2,1,0:T(8,128)}', space=vmem, size = 0x40000, scoped, tag = 'scratch operand']
  #allocation4 [shape = 'f32[2,256,64]{2,1,0:T(8,128)}', space=vmem, size = 0x40000, scoped, tag = 'scratch operand']
  %s0 = inlined_call_operand.vmem [shape: f32[2,256,128], index: 0, kind: input, shape index: {}]
  %s1 = inlined_call_operand.vmem [shape: f32[2,64,128], index: 1, kind: input, shape index: {}]
  %s2 = inlined_call_operand.vmem [shape: f32[2,64,128], index: 2, kind: input, shape index: {}]
  %s3 = inlined_call_operand.vmem [shape: f32[2,256,128], index: 3, kind: output, shape index: {}]
  %s4 = sld [smem:[#allocation0]]
  $region53: #{conv_cross_attention_forward.13} parent=0
    _
  %s6 = ssub.s32 1, %s4
  %s7 = scalar_select 0, %s6, %s4
  loop: start=0, step=1, limit=4
  $region2: #{conv_cross_attention_forward.13} parent=0 // loop_pre_header
    _
  $region3: #{conv_cross_attention_forward.13} parent=0 // loop_header
    %s9 = sphi 0, %s13
    %p10 = scmp.ge.s32.totalorder %s9, 4
    %s16 = sphi 0, %s35
    %s17 = sphi 0, %s31
    %s18 = sphi 0, %s27
    %s19 = sphi 0, %s16
    %s20 = sphi 0, %s17
    %s21 = sphi 0, %s18
    %s22 = sphi 0, %s19
    %s23 = sphi 0, %s20
    %s24 = sphi 0, %s21
    %s40 = sphi 0, %s42
    %s43 = sphi 0, %s40
    %s44 = sphi 0, %s43
    %s60 = sphi 0, %s44
    %s68 = sphi 0, %s70
    %s71 = sphi 0, %s68
    %s72 = sphi 0, %s71
    %s88 = sphi 0, %s72
    %s96 = sphi 0, %s98
    %s99 = sphi 0, %s96
    %s100 = sphi 0, %s99
    %s116 = sphi 0, %s100
    %s124 = sphi 0, %s126
    %s127 = sphi 0, %s124
    %s128 = sphi 0, %s127
    %s144 = sphi 0, %s128
  $region4: #{conv_cross_attention_forward.13} parent=0 // loop_header_branch
    %12 = sbr.rel (%p10) target = $region8
  $region5: #{conv_cross_attention_forward.13} parent=0 // loop_body
    %s14 = ssub.s32 %s9, 1
    %s15 = ssub.s32 %s9, 2
    %s25 = sadd.s32 1, %s18
    %p26 = scmp.ge.s32.totalorder %s25, 1
    %s27 = scalar_select %p26, 0, %s25
    %s28 = sadd.s32 1, %s17
    %s29 = scalar_select %p26, %s28, %s17
    %p30 = scmp.ge.s32.totalorder %s29, 1
    %s31 = scalar_select %p30, 0, %s29
    %s32 = sadd.s32 1, %s16
    %s33 = scalar_select %p30, %s32, %s16
    %p34 = scmp.ge.s32.totalorder %s33, 2
    %s35 = scalar_select %p34, 0, %s33
    %s36 = ssub.s32 %s16, %s35
    %s37 = ssub.s32 %s17, %s31
    %s38 = sor.u32 %s36, %s37
    %p39 = scmp.eq.s32.totalorder %s38, 0
    %s41 = sadd.s32 %s40, 1
    %s42 = scalar_select %p39, %s40, %s41
    %p45 = pneg %p39
    %p46 = scmp.eq.s32.totalorder %s9, 1
    %p47 = por %p45, %p46
    %p48 = scmp.ne.s32.totalorder %s40, %s43
    %p49 = scmp.eq.s32.totalorder %s9, 0
    %p50 = por %p48, %p49
    %p51 = scmp.ne.s32.totalorder %s40, %s43
    %p52 = scmp.eq.s32.totalorder %s14, 1
    %p53 = por %p51, %p52
    %p54 = scmp.ne.s32.totalorder %s43, %s44
    %p55 = scmp.eq.s32.totalorder %s14, 0
    %p56 = por %p54, %p55
    %p57 = scmp.ne.s32.totalorder %s43, %s44
    %p58 = scmp.eq.s32.totalorder %s15, 1
    %p59 = por %p57, %p58
    %p61 = scmp.ne.s32.totalorder %s44, %s60
    %p62 = scmp.eq.s32.totalorder %s15, 0
    %p63 = por %p61, %p62
    %s64 = ssub.s32 %s16, %s35
    %s65 = ssub.s32 %s18, %s27
    %s66 = sor.u32 %s64, %s65
    %p67 = scmp.eq.s32.totalorder %s66, 0
    %s69 = sadd.s32 %s68, 1
    %s70 = scalar_select %p67, %s68, %s69
    %p73 = pneg %p67
    %p74 = scmp.eq.s32.totalorder %s9, 1
    %p75 = por %p73, %p74
    %p76 = scmp.ne.s32.totalorder %s68, %s71
    %p77 = scmp.eq.s32.totalorder %s9, 0
    %p78 = por %p76, %p77
    %p79 = scmp.ne.s32.totalorder %s68, %s71
    %p80 = scmp.eq.s32.totalorder %s14, 1
    %p81 = por %p79, %p80
    %p82 = scmp.ne.s32.totalorder %s71, %s72
    %p83 = scmp.eq.s32.totalorder %s14, 0
    %p84 = por %p82, %p83
    %p85 = scmp.ne.s32.totalorder %s71, %s72
    %p86 = scmp.eq.s32.totalorder %s15, 1
    %p87 = por %p85, %p86
    %p89 = scmp.ne.s32.totalorder %s72, %s88
    %p90 = scmp.eq.s32.totalorder %s15, 0
    %p91 = por %p89, %p90
    %s92 = ssub.s32 %s16, %s35
    %s93 = ssub.s32 %s18, %s27
    %s94 = sor.u32 %s92, %s93
    %p95 = scmp.eq.s32.totalorder %s94, 0
    %s97 = sadd.s32 %s96, 1
    %s98 = scalar_select %p95, %s96, %s97
    %p101 = pneg %p95
    %p102 = scmp.eq.s32.totalorder %s9, 1
    %p103 = por %p101, %p102
    %p104 = scmp.ne.s32.totalorder %s96, %s99
    %p105 = scmp.eq.s32.totalorder %s9, 0
    %p106 = por %p104, %p105
    %p107 = scmp.ne.s32.totalorder %s96, %s99
    %p108 = scmp.eq.s32.totalorder %s14, 1
    %p109 = por %p107, %p108
    %p110 = scmp.ne.s32.totalorder %s99, %s100
    %p111 = scmp.eq.s32.totalorder %s14, 0
    %p112 = por %p110, %p111
    %p113 = scmp.ne.s32.totalorder %s99, %s100
    %p114 = scmp.eq.s32.totalorder %s15, 1
    %p115 = por %p113, %p114
    %p117 = scmp.ne.s32.totalorder %s100, %s116
    %p118 = scmp.eq.s32.totalorder %s15, 0
    %p119 = por %p117, %p118
    %s120 = ssub.s32 %s16, %s35
    %s121 = ssub.s32 %s17, %s31
    %s122 = sor.u32 %s120, %s121
    %p123 = scmp.eq.s32.totalorder %s122, 0
    %s125 = sadd.s32 %s124, 1
    %s126 = scalar_select %p123, %s124, %s125
    %p129 = pneg %p123
    %p130 = scmp.eq.s32.totalorder %s9, 1
    %p131 = por %p129, %p130
    %p132 = scmp.ne.s32.totalorder %s124, %s127
    %p133 = scmp.eq.s32.totalorder %s9, 0
    %p134 = por %p132, %p133
    %p135 = scmp.ne.s32.totalorder %s124, %s127
    %p136 = scmp.eq.s32.totalorder %s14, 1
    %p137 = por %p135, %p136
    %p138 = scmp.ne.s32.totalorder %s127, %s128
    %p139 = scmp.eq.s32.totalorder %s14, 0
    %p140 = por %p138, %p139
    %p141 = scmp.ne.s32.totalorder %s127, %s128
    %p142 = scmp.eq.s32.totalorder %s15, 1
    %p143 = por %p141, %p142
    %p145 = scmp.ne.s32.totalorder %s128, %s144
    %p146 = scmp.eq.s32.totalorder %s15, 0
    %p147 = por %p145, %p146
    %p148 = scmp.le.s32.totalorder 1, %s9
    %p149 = scmp.lt.s32.totalorder %s9, 3
    %p150 = pnand %p148, %p149
    %p151 = pneg %p150
    // Predicated region
    $region9: #{conv_cross_attention_forward.13} parent=5 // pred_check
      _
    $region10: #{conv_cross_attention_forward.13} parent=5 // pred_check_branch
      %153 = sbr.rel (%p150) target = $region12
    $region11: #{conv_cross_attention_forward.13} parent=5 // pred_region
      %s154 = ssub.s32 %s9, 1
    $region12: #{conv_cross_attention_forward.13} parent=5 // pred_fallthru
      _
    %p155 = scmp.lt.s32.totalorder %s9, 2
    // Predicated region
    $region13: #{conv_cross_attention_forward.13} parent=5 // pred_check
      %p156 = pneg %p155
    $region14: #{conv_cross_attention_forward.13} parent=5 // pred_check_branch
      %158 = sbr.rel (%p156) target = $region16
    $region15: #{conv_cross_attention_forward.13} parent=5 // pred_region
      // Predicated region
      $region17: #{conv_cross_attention_forward.13} parent=15 // pred_check
        %p159 = pneg %p50
      $region18: #{conv_cross_attention_forward.13} parent=15 // pred_check_branch
        %161 = sbr.rel (%p159) target = $region20
      $region19: #{conv_cross_attention_forward.13} parent=15 // pred_region
        %s162 = smul.u32 32, %s17
        %p163 = scmp.lt.s32.totalorder %s16, 1
        %s164 = scalar_select %p163, %s16, 1
        %p165 = scmp.lt.s32.totalorder %s162, 31
        %s166 = scalar_select %p165, %s162, 31
        %s167 = smul.addr %s164, 32
        %s168 = sadd.s32 %s166, %s167
        %s169 = smul.addr %s168, 8
        %s170 = scalar_lea.vmem %s0, %s169
        %s171 = smul.u32 32, %s17
      $region20: #{conv_cross_attention_forward.13} parent=15 // pred_fallthru
        _
      // Predicated region
      $region21: #{conv_cross_attention_forward.13} parent=15 // pred_check
        %p172 = pneg %p78
      $region22: #{conv_cross_attention_forward.13} parent=15 // pred_check_branch
        %174 = sbr.rel (%p172) target = $region24
      $region23: #{conv_cross_attention_forward.13} parent=15 // pred_region
        %s175 = smul.u32 8, %s18
        %p176 = scmp.lt.s32.totalorder %s16, 1
        %s177 = scalar_select %p176, %s16, 1
        %p178 = scmp.lt.s32.totalorder %s175, 7
        %s179 = scalar_select %p178, %s175, 7
        %s180 = smul.addr %s177, 8
        %s181 = sadd.s32 %s179, %s180
        %s182 = smul.addr %s181, 8
        %s183 = scalar_lea.vmem %s1, %s182
        %s184 = smul.u32 8, %s18
      $region24: #{conv_cross_attention_forward.13} parent=15 // pred_fallthru
        _
      // Predicated region
      $region25: #{conv_cross_attention_forward.13} parent=15 // pred_check
        %p185 = pneg %p106
      $region26: #{conv_cross_attention_forward.13} parent=15 // pred_check_branch
        %187 = sbr.rel (%p185) target = $region28
      $region27: #{conv_cross_attention_forward.13} parent=15 // pred_region
        %s188 = smul.u32 8, %s18
        %p189 = scmp.lt.s32.totalorder %s16, 1
        %s190 = scalar_select %p189, %s16, 1
        %p191 = scmp.lt.s32.totalorder %s188, 7
        %s192 = scalar_select %p191, %s188, 7
        %s193 = smul.addr %s190, 8
        %s194 = sadd.s32 %s192, %s193
        %s195 = smul.addr %s194, 8
        %s196 = scalar_lea.vmem %s2, %s195
        %s197 = smul.u32 8, %s18
      $region28: #{conv_cross_attention_forward.13} parent=15 // pred_fallthru
        _
    $region16: #{conv_cross_attention_forward.13} parent=5 // pred_fallthru
      _
    %p198 = scmp.le.s32.totalorder 1, %s9
    %p199 = scmp.lt.s32.totalorder %s9, 3
    %p200 = pnand %p198, %p199
    %p201 = pneg %p200
    // Predicated region
    $region29: #{conv_cross_attention_forward.13} parent=5 // pred_check
      _
    $region30: #{conv_cross_attention_forward.13} parent=5 // pred_check_branch
      %203 = sbr.rel (%p200) target = $region32
    $region31: #{conv_cross_attention_forward.13} parent=5 // pred_region
      %s204 = ssub.s32 %s9, 1
      %s205 = smul.u32 32, %s20
      %p206 = scmp.lt.s32.totalorder %s19, 1
      %s207 = scalar_select %p206, %s19, 1
      %p208 = scmp.lt.s32.totalorder %s205, 31
      %s209 = scalar_select %p208, %s205, 31
      %s210 = smul.addr %s207, 32
      %s211 = sadd.s32 %s209, %s210
      %s212 = smul.addr %s211, 8
      %s213 = scalar_lea.vmem %s0, %s212
      %p214 = pneg %p56
      %p215 = pneg %p53
      %s216 = smul.u32 8, %s21
      %p217 = scmp.lt.s32.totalorder %s19, 1
      %s218 = scalar_select %p217, %s19, 1
      %p219 = scmp.lt.s32.totalorder %s216, 7
      %s220 = scalar_select %p219, %s216, 7
      %s221 = smul.addr %s218, 8
      %s222 = sadd.s32 %s220, %s221
      %s223 = smul.addr %s222, 8
      %s224 = scalar_lea.vmem %s1, %s223
      %p225 = pneg %p84
      %p226 = pneg %p81
      %s227 = smul.u32 8, %s21
      %p228 = scmp.lt.s32.totalorder %s19, 1
      %s229 = scalar_select %p228, %s19, 1
      %p230 = scmp.lt.s32.totalorder %s227, 7
      %s231 = scalar_select %p230, %s227, 7
      %s232 = smul.addr %s229, 8
      %s233 = sadd.s32 %s231, %s232
      %s234 = smul.addr %s233, 8
      %s235 = scalar_lea.vmem %s2, %s234
      %p236 = pneg %p112
      %p237 = pneg %p109
      %p238 = pneg %p140
      %p239 = pneg %p137
      %s240 = smul.u32 32, %s20
      %p241 = scmp.lt.s32.totalorder %s19, 1
      %s242 = scalar_select %p241, %s19, 1
      %p243 = scmp.lt.s32.totalorder %s240, 31
      %s244 = scalar_select %p243, %s240, 31
      %s245 = smul.addr %s242, 32
      %s246 = sadd.s32 %s244, %s245
      %s247 = smul.addr %s246, 8
      %s248 = scalar_lea.vmem %s3, %s247
      %s249 = smul.u32 32, %s20
      %p250 = scmp.lt.s32.totalorder %s19, 1
      %s251 = scalar_select %p250, %s19, 1
      %p252 = scmp.lt.s32.totalorder %s249, 31
      %s253 = scalar_select %p252, %s249, 31
      %s254 = smul.addr %s251, 32
      %s255 = sadd.s32 %s253, %s254
      %s256 = smul.addr %s255, 8
      %s257 = scalar_lea.vmem %s0, %s256
      %s258 = smul.u32 32, %s20
      %s259 = smul.u32 8, %s21
      %p260 = scmp.lt.s32.totalorder %s19, 1
      %s261 = scalar_select %p260, %s19, 1
      %p262 = scmp.lt.s32.totalorder %s259, 7
      %s263 = scalar_select %p262, %s259, 7
      %s264 = smul.addr %s261, 8
      %s265 = sadd.s32 %s263, %s264
      %s266 = smul.addr %s265, 8
      %s267 = scalar_lea.vmem %s1, %s266
      %s268 = smul.u32 8, %s21
      %s269 = smul.u32 8, %s21
      %p270 = scmp.lt.s32.totalorder %s19, 1
      %s271 = scalar_select %p270, %s19, 1
      %p272 = scmp.lt.s32.totalorder %s269, 7
      %s273 = scalar_select %p272, %s269, 7
      %s274 = smul.addr %s271, 8
      %s275 = sadd.s32 %s273, %s274
      %s276 = smul.addr %s275, 8
      %s277 = scalar_lea.vmem %s2, %s276
      %s278 = smul.u32 8, %s21
      %s279 = smul.u32 32, %s20
      %p280 = scmp.lt.s32.totalorder %s19, 1
      %s281 = scalar_select %p280, %s19, 1
      %p282 = scmp.lt.s32.totalorder %s279, 31
      %s283 = scalar_select %p282, %s279, 31
      %s284 = smul.addr %s281, 32
      %s285 = sadd.s32 %s283, %s284
      %s286 = smul.addr %s285, 8
      %s287 = scalar_lea.vmem %s3, %s286
      %s288 = smul.u32 32, %s20
      %p289 = scmp.eq.s32.totalorder %s21, 0
      // Predicated region
      $region33: #{conv_cross_attention_forward.13} parent=31 // pred_check
        %p290 = pneg %p289
      $region34: #{conv_cross_attention_forward.13} parent=31 // pred_check_branch
        %292 = sbr.rel (%p290) target = $region36
      $region35: #{conv_cross_attention_forward.13} parent=31 // pred_region
        %vm293 = vcmask 7168
        %294 = vst.msk [vmem:[#allocation2] sm:$0xff] %vm293, -inf
        %295 = vst.msk [vmem:[#allocation2 + $0x8] sm:$0xff] %vm293, -inf
        %296 = vst.msk [vmem:[#allocation2 + $0x10] sm:$0xff] %vm293, -inf
        %297 = vst.msk [vmem:[#allocation2 + $0x18] sm:$0xff] %vm293, -inf
        %298 = vst.msk [vmem:[#allocation2 + $0x20] sm:$0xff] %vm293, -inf
        %299 = vst.msk [vmem:[#allocation2 + $0x28] sm:$0xff] %vm293, -inf
        %300 = vst.msk [vmem:[#allocation2 + $0x30] sm:$0xff] %vm293, -inf
        %301 = vst.msk [vmem:[#allocation2 + $0x38] sm:$0xff] %vm293, -inf
        %302 = vst.msk [vmem:[#allocation2 + $0x40] sm:$0xff] %vm293, -inf
        %303 = vst.msk [vmem:[#allocation2 + $0x48] sm:$0xff] %vm293, -inf
        %304 = vst.msk [vmem:[#allocation2 + $0x50] sm:$0xff] %vm293, -inf
        %305 = vst.msk [vmem:[#allocation2 + $0x58] sm:$0xff] %vm293, -inf
        %306 = vst.msk [vmem:[#allocation2 + $0x60] sm:$0xff] %vm293, -inf
        %307 = vst.msk [vmem:[#allocation2 + $0x68] sm:$0xff] %vm293, -inf
        %308 = vst.msk [vmem:[#allocation2 + $0x70] sm:$0xff] %vm293, -inf
        %309 = vst.msk [vmem:[#allocation2 + $0x78] sm:$0xff] %vm293, -inf
        %310 = vst.msk [vmem:[#allocation2 + $0x80] sm:$0xff] %vm293, -inf
        %311 = vst.msk [vmem:[#allocation2 + $0x88] sm:$0xff] %vm293, -inf
        %312 = vst.msk [vmem:[#allocation2 + $0x90] sm:$0xff] %vm293, -inf
        %313 = vst.msk [vmem:[#allocation2 + $0x98] sm:$0xff] %vm293, -inf
        %314 = vst.msk [vmem:[#allocation2 + $0xa0] sm:$0xff] %vm293, -inf
        %315 = vst.msk [vmem:[#allocation2 + $0xa8] sm:$0xff] %vm293, -inf
        %316 = vst.msk [vmem:[#allocation2 + $0xb0] sm:$0xff] %vm293, -inf
        %317 = vst.msk [vmem:[#allocation2 + $0xb8] sm:$0xff] %vm293, -inf
        %318 = vst.msk [vmem:[#allocation2 + $0xc0] sm:$0xff] %vm293, -inf
        %319 = vst.msk [vmem:[#allocation2 + $0xc8] sm:$0xff] %vm293, -inf
        %320 = vst.msk [vmem:[#allocation2 + $0xd0] sm:$0xff] %vm293, -inf
        %321 = vst.msk [vmem:[#allocation2 + $0xd8] sm:$0xff] %vm293, -inf
        %322 = vst.msk [vmem:[#allocation2 + $0xe0] sm:$0xff] %vm293, -inf
        %323 = vst.msk [vmem:[#allocation2 + $0xe8] sm:$0xff] %vm293, -inf
        %324 = vst.msk [vmem:[#allocation2 + $0xf0] sm:$0xff] %vm293, -inf
        %325 = vst.msk [vmem:[#allocation2 + $0xf8] sm:$0xff] %vm293, -inf
        %326 = vst.msk [vmem:[#allocation2 + $0x100] sm:$0xff] %vm293, -inf
        %327 = vst.msk [vmem:[#allocation2 + $0x108] sm:$0xff] %vm293, -inf
        %328 = vst.msk [vmem:[#allocation2 + $0x110] sm:$0xff] %vm293, -inf
        %329 = vst.msk [vmem:[#allocation2 + $0x118] sm:$0xff] %vm293, -inf
        %330 = vst.msk [vmem:[#allocation2 + $0x120] sm:$0xff] %vm293, -inf
        %331 = vst.msk [vmem:[#allocation2 + $0x128] sm:$0xff] %vm293, -inf
        %332 = vst.msk [vmem:[#allocation2 + $0x130] sm:$0xff] %vm293, -inf
        %333 = vst.msk [vmem:[#allocation2 + $0x138] sm:$0xff] %vm293, -inf
        %334 = vst.msk [vmem:[#allocation2 + $0x140] sm:$0xff] %vm293, -inf
        %335 = vst.msk [vmem:[#allocation2 + $0x148] sm:$0xff] %vm293, -inf
        %336 = vst.msk [vmem:[#allocation2 + $0x150] sm:$0xff] %vm293, -inf
        %337 = vst.msk [vmem:[#allocation2 + $0x158] sm:$0xff] %vm293, -inf
        %338 = vst.msk [vmem:[#allocation2 + $0x160] sm:$0xff] %vm293, -inf
        %339 = vst.msk [vmem:[#allocation2 + $0x168] sm:$0xff] %vm293, -inf
        %340 = vst.msk [vmem:[#allocation2 + $0x170] sm:$0xff] %vm293, -inf
        %341 = vst.msk [vmem:[#allocation2 + $0x178] sm:$0xff] %vm293, -inf
        %342 = vst.msk [vmem:[#allocation2 + $0x180] sm:$0xff] %vm293, -inf
        %343 = vst.msk [vmem:[#allocation2 + $0x188] sm:$0xff] %vm293, -inf
        %344 = vst.msk [vmem:[#allocation2 + $0x190] sm:$0xff] %vm293, -inf
        %345 = vst.msk [vmem:[#allocation2 + $0x198] sm:$0xff] %vm293, -inf
        %346 = vst.msk [vmem:[#allocation2 + $0x1a0] sm:$0xff] %vm293, -inf
        %347 = vst.msk [vmem:[#allocation2 + $0x1a8] sm:$0xff] %vm293, -inf
        %348 = vst.msk [vmem:[#allocation2 + $0x1b0] sm:$0xff] %vm293, -inf
        %349 = vst.msk [vmem:[#allocation2 + $0x1b8] sm:$0xff] %vm293, -inf
        %350 = vst.msk [vmem:[#allocation2 + $0x1c0] sm:$0xff] %vm293, -inf
        %351 = vst.msk [vmem:[#allocation2 + $0x1c8] sm:$0xff] %vm293, -inf
        %352 = vst.msk [vmem:[#allocation2 + $0x1d0] sm:$0xff] %vm293, -inf
        %353 = vst.msk [vmem:[#allocation2 + $0x1d8] sm:$0xff] %vm293, -inf
        %354 = vst.msk [vmem:[#allocation2 + $0x1e0] sm:$0xff] %vm293, -inf
        %355 = vst.msk [vmem:[#allocation2 + $0x1e8] sm:$0xff] %vm293, -inf
        %356 = vst.msk [vmem:[#allocation2 + $0x1f0] sm:$0xff] %vm293, -inf
        %357 = vst.msk [vmem:[#allocation2 + $0x1f8] sm:$0xff] %vm293, -inf
        %358 = vst.msk [vmem:[#allocation3] sm:$0xff] %vm293, 0.0
        %359 = vst.msk [vmem:[#allocation3 + $0x8] sm:$0xff] %vm293, 0.0
        %360 = vst.msk [vmem:[#allocation3 + $0x10] sm:$0xff] %vm293, 0.0
        %361 = vst.msk [vmem:[#allocation3 + $0x18] sm:$0xff] %vm293, 0.0
        %362 = vst.msk [vmem:[#allocation3 + $0x20] sm:$0xff] %vm293, 0.0
        %363 = vst.msk [vmem:[#allocation3 + $0x28] sm:$0xff] %vm293, 0.0
        %364 = vst.msk [vmem:[#allocation3 + $0x30] sm:$0xff] %vm293, 0.0
        %365 = vst.msk [vmem:[#allocation3 + $0x38] sm:$0xff] %vm293, 0.0
        %366 = vst.msk [vmem:[#allocation3 + $0x40] sm:$0xff] %vm293, 0.0
        %367 = vst.msk [vmem:[#allocation3 + $0x48] sm:$0xff] %vm293, 0.0
        %368 = vst.msk [vmem:[#allocation3 + $0x50] sm:$0xff] %vm293, 0.0
        %369 = vst.msk [vmem:[#allocation3 + $0x58] sm:$0xff] %vm293, 0.0
        %370 = vst.msk [vmem:[#allocation3 + $0x60] sm:$0xff] %vm293, 0.0
        %371 = vst.msk [vmem:[#allocation3 + $0x68] sm:$0xff] %vm293, 0.0
        %372 = vst.msk [vmem:[#allocation3 + $0x70] sm:$0xff] %vm293, 0.0
        %373 = vst.msk [vmem:[#allocation3 + $0x78] sm:$0xff] %vm293, 0.0
        %374 = vst.msk [vmem:[#allocation3 + $0x80] sm:$0xff] %vm293, 0.0
        %375 = vst.msk [vmem:[#allocation3 + $0x88] sm:$0xff] %vm293, 0.0
        %376 = vst.msk [vmem:[#allocation3 + $0x90] sm:$0xff] %vm293, 0.0
        %377 = vst.msk [vmem:[#allocation3 + $0x98] sm:$0xff] %vm293, 0.0
        %378 = vst.msk [vmem:[#allocation3 + $0xa0] sm:$0xff] %vm293, 0.0
        %379 = vst.msk [vmem:[#allocation3 + $0xa8] sm:$0xff] %vm293, 0.0
        %380 = vst.msk [vmem:[#allocation3 + $0xb0] sm:$0xff] %vm293, 0.0
        %381 = vst.msk [vmem:[#allocation3 + $0xb8] sm:$0xff] %vm293, 0.0
        %382 = vst.msk [vmem:[#allocation3 + $0xc0] sm:$0xff] %vm293, 0.0
        %383 = vst.msk [vmem:[#allocation3 + $0xc8] sm:$0xff] %vm293, 0.0
        %384 = vst.msk [vmem:[#allocation3 + $0xd0] sm:$0xff] %vm293, 0.0
        %385 = vst.msk [vmem:[#allocation3 + $0xd8] sm:$0xff] %vm293, 0.0
        %386 = vst.msk [vmem:[#allocation3 + $0xe0] sm:$0xff] %vm293, 0.0
        %387 = vst.msk [vmem:[#allocation3 + $0xe8] sm:$0xff] %vm293, 0.0
        %388 = vst.msk [vmem:[#allocation3 + $0xf0] sm:$0xff] %vm293, 0.0
        %389 = vst.msk [vmem:[#allocation3 + $0xf8] sm:$0xff] %vm293, 0.0
        %390 = vst.msk [vmem:[#allocation3 + $0x100] sm:$0xff] %vm293, 0.0
        %391 = vst.msk [vmem:[#allocation3 + $0x108] sm:$0xff] %vm293, 0.0
        %392 = vst.msk [vmem:[#allocation3 + $0x110] sm:$0xff] %vm293, 0.0
        %393 = vst.msk [vmem:[#allocation3 + $0x118] sm:$0xff] %vm293, 0.0
        %394 = vst.msk [vmem:[#allocation3 + $0x120] sm:$0xff] %vm293, 0.0
        %395 = vst.msk [vmem:[#allocation3 + $0x128] sm:$0xff] %vm293, 0.0
        %396 = vst.msk [vmem:[#allocation3 + $0x130] sm:$0xff] %vm293, 0.0
        %397 = vst.msk [vmem:[#allocation3 + $0x138] sm:$0xff] %vm293, 0.0
        %398 = vst.msk [vmem:[#allocation3 + $0x140] sm:$0xff] %vm293, 0.0
        %399 = vst.msk [vmem:[#allocation3 + $0x148] sm:$0xff] %vm293, 0.0
        %400 = vst.msk [vmem:[#allocation3 + $0x150] sm:$0xff] %vm293, 0.0
        %401 = vst.msk [vmem:[#allocation3 + $0x158] sm:$0xff] %vm293, 0.0
        %402 = vst.msk [vmem:[#allocation3 + $0x160] sm:$0xff] %vm293, 0.0
        %403 = vst.msk [vmem:[#allocation3 + $0x168] sm:$0xff] %vm293, 0.0
        %404 = vst.msk [vmem:[#allocation3 + $0x170] sm:$0xff] %vm293, 0.0
        %405 = vst.msk [vmem:[#allocation3 + $0x178] sm:$0xff] %vm293, 0.0
        %406 = vst.msk [vmem:[#allocation3 + $0x180] sm:$0xff] %vm293, 0.0
        %407 = vst.msk [vmem:[#allocation3 + $0x188] sm:$0xff] %vm293, 0.0
        %408 = vst.msk [vmem:[#allocation3 + $0x190] sm:$0xff] %vm293, 0.0
        %409 = vst.msk [vmem:[#allocation3 + $0x198] sm:$0xff] %vm293, 0.0
        %410 = vst.msk [vmem:[#allocation3 + $0x1a0] sm:$0xff] %vm293, 0.0
        %411 = vst.msk [vmem:[#allocation3 + $0x1a8] sm:$0xff] %vm293, 0.0
        %412 = vst.msk [vmem:[#allocation3 + $0x1b0] sm:$0xff] %vm293, 0.0
        %413 = vst.msk [vmem:[#allocation3 + $0x1b8] sm:$0xff] %vm293, 0.0
        %414 = vst.msk [vmem:[#allocation3 + $0x1c0] sm:$0xff] %vm293, 0.0
        %415 = vst.msk [vmem:[#allocation3 + $0x1c8] sm:$0xff] %vm293, 0.0
        %416 = vst.msk [vmem:[#allocation3 + $0x1d0] sm:$0xff] %vm293, 0.0
        %417 = vst.msk [vmem:[#allocation3 + $0x1d8] sm:$0xff] %vm293, 0.0
        %418 = vst.msk [vmem:[#allocation3 + $0x1e0] sm:$0xff] %vm293, 0.0
        %419 = vst.msk [vmem:[#allocation3 + $0x1e8] sm:$0xff] %vm293, 0.0
        %420 = vst.msk [vmem:[#allocation3 + $0x1f0] sm:$0xff] %vm293, 0.0
        %421 = vst.msk [vmem:[#allocation3 + $0x1f8] sm:$0xff] %vm293, 0.0
        %vm422 = vcmask 523264
        %423 = vst.msk [vmem:[#allocation4] sm:$0xff] %vm422, 0.0
        %424 = vst.msk [vmem:[#allocation4 + $0x8] sm:$0xff] %vm422, 0.0
        %425 = vst.msk [vmem:[#allocation4 + $0x10] sm:$0xff] %vm422, 0.0
        %426 = vst.msk [vmem:[#allocation4 + $0x18] sm:$0xff] %vm422, 0.0
        %427 = vst.msk [vmem:[#allocation4 + $0x20] sm:$0xff] %vm422, 0.0
        %428 = vst.msk [vmem:[#allocation4 + $0x28] sm:$0xff] %vm422, 0.0
        %429 = vst.msk [vmem:[#allocation4 + $0x30] sm:$0xff] %vm422, 0.0
        %430 = vst.msk [vmem:[#allocation4 + $0x38] sm:$0xff] %vm422, 0.0
        %431 = vst.msk [vmem:[#allocation4 + $0x40] sm:$0xff] %vm422, 0.0
        %432 = vst.msk [vmem:[#allocation4 + $0x48] sm:$0xff] %vm422, 0.0
        %433 = vst.msk [vmem:[#allocation4 + $0x50] sm:$0xff] %vm422, 0.0
        %434 = vst.msk [vmem:[#allocation4 + $0x58] sm:$0xff] %vm422, 0.0
        %435 = vst.msk [vmem:[#allocation4 + $0x60] sm:$0xff] %vm422, 0.0
        %436 = vst.msk [vmem:[#allocation4 + $0x68] sm:$0xff] %vm422, 0.0
        %437 = vst.msk [vmem:[#allocation4 + $0x70] sm:$0xff] %vm422, 0.0
        %438 = vst.msk [vmem:[#allocation4 + $0x78] sm:$0xff] %vm422, 0.0
        %439 = vst.msk [vmem:[#allocation4 + $0x80] sm:$0xff] %vm422, 0.0
        %440 = vst.msk [vmem:[#allocation4 + $0x88] sm:$0xff] %vm422, 0.0
        %441 = vst.msk [vmem:[#allocation4 + $0x90] sm:$0xff] %vm422, 0.0
        %442 = vst.msk [vmem:[#allocation4 + $0x98] sm:$0xff] %vm422, 0.0
        %443 = vst.msk [vmem:[#allocation4 + $0xa0] sm:$0xff] %vm422, 0.0
        %444 = vst.msk [vmem:[#allocation4 + $0xa8] sm:$0xff] %vm422, 0.0
        %445 = vst.msk [vmem:[#allocation4 + $0xb0] sm:$0xff] %vm422, 0.0
        %446 = vst.msk [vmem:[#allocation4 + $0xb8] sm:$0xff] %vm422, 0.0
        %447 = vst.msk [vmem:[#allocation4 + $0xc0] sm:$0xff] %vm422, 0.0
        %448 = vst.msk [vmem:[#allocation4 + $0xc8] sm:$0xff] %vm422, 0.0
        %449 = vst.msk [vmem:[#allocation4 + $0xd0] sm:$0xff] %vm422, 0.0
        %450 = vst.msk [vmem:[#allocation4 + $0xd8] sm:$0xff] %vm422, 0.0
        %451 = vst.msk [vmem:[#allocation4 + $0xe0] sm:$0xff] %vm422, 0.0
        %452 = vst.msk [vmem:[#allocation4 + $0xe8] sm:$0xff] %vm422, 0.0
        %453 = vst.msk [vmem:[#allocation4 + $0xf0] sm:$0xff] %vm422, 0.0
        %454 = vst.msk [vmem:[#allocation4 + $0xf8] sm:$0xff] %vm422, 0.0
        %455 = vst.msk [vmem:[#allocation4 + $0x100] sm:$0xff] %vm422, 0.0
        %456 = vst.msk [vmem:[#allocation4 + $0x108] sm:$0xff] %vm422, 0.0
        %457 = vst.msk [vmem:[#allocation4 + $0x110] sm:$0xff] %vm422, 0.0
        %458 = vst.msk [vmem:[#allocation4 + $0x118] sm:$0xff] %vm422, 0.0
        %459 = vst.msk [vmem:[#allocation4 + $0x120] sm:$0xff] %vm422, 0.0
        %460 = vst.msk [vmem:[#allocation4 + $0x128] sm:$0xff] %vm422, 0.0
        %461 = vst.msk [vmem:[#allocation4 + $0x130] sm:$0xff] %vm422, 0.0
        %462 = vst.msk [vmem:[#allocation4 + $0x138] sm:$0xff] %vm422, 0.0
        %463 = vst.msk [vmem:[#allocation4 + $0x140] sm:$0xff] %vm422, 0.0
        %464 = vst.msk [vmem:[#allocation4 + $0x148] sm:$0xff] %vm422, 0.0
        %465 = vst.msk [vmem:[#allocation4 + $0x150] sm:$0xff] %vm422, 0.0
        %466 = vst.msk [vmem:[#allocation4 + $0x158] sm:$0xff] %vm422, 0.0
        %467 = vst.msk [vmem:[#allocation4 + $0x160] sm:$0xff] %vm422, 0.0
        %468 = vst.msk [vmem:[#allocation4 + $0x168] sm:$0xff] %vm422, 0.0
        %469 = vst.msk [vmem:[#allocation4 + $0x170] sm:$0xff] %vm422, 0.0
        %470 = vst.msk [vmem:[#allocation4 + $0x178] sm:$0xff] %vm422, 0.0
        %471 = vst.msk [vmem:[#allocation4 + $0x180] sm:$0xff] %vm422, 0.0
        %472 = vst.msk [vmem:[#allocation4 + $0x188] sm:$0xff] %vm422, 0.0
        %473 = vst.msk [vmem:[#allocation4 + $0x190] sm:$0xff] %vm422, 0.0
        %474 = vst.msk [vmem:[#allocation4 + $0x198] sm:$0xff] %vm422, 0.0
        %475 = vst.msk [vmem:[#allocation4 + $0x1a0] sm:$0xff] %vm422, 0.0
        %476 = vst.msk [vmem:[#allocation4 + $0x1a8] sm:$0xff] %vm422, 0.0
        %477 = vst.msk [vmem:[#allocation4 + $0x1b0] sm:$0xff] %vm422, 0.0
        %478 = vst.msk [vmem:[#allocation4 + $0x1b8] sm:$0xff] %vm422, 0.0
        %479 = vst.msk [vmem:[#allocation4 + $0x1c0] sm:$0xff] %vm422, 0.0
        %480 = vst.msk [vmem:[#allocation4 + $0x1c8] sm:$0xff] %vm422, 0.0
        %481 = vst.msk [vmem:[#allocation4 + $0x1d0] sm:$0xff] %vm422, 0.0
        %482 = vst.msk [vmem:[#allocation4 + $0x1d8] sm:$0xff] %vm422, 0.0
        %483 = vst.msk [vmem:[#allocation4 + $0x1e0] sm:$0xff] %vm422, 0.0
        %484 = vst.msk [vmem:[#allocation4 + $0x1e8] sm:$0xff] %vm422, 0.0
        %485 = vst.msk [vmem:[#allocation4 + $0x1f0] sm:$0xff] %vm422, 0.0
        %486 = vst.msk [vmem:[#allocation4 + $0x1f8] sm:$0xff] %vm422, 0.0
      $region36: #{conv_cross_attention_forward.13} parent=31 // pred_fallthru
        _
      %v487 = vld [vmem:[%s257] sm:$0xff]
      %v488 = vld [vmem:[%s257 + $0x8] sm:$0xff]
      %v489 = vld [vmem:[%s257 + $0x10] sm:$0xff]
      %v490 = vld [vmem:[%s257 + $0x18] sm:$0xff]
      %v491 = vld [vmem:[%s257 + $0x20] sm:$0xff]
      %v492 = vld [vmem:[%s257 + $0x28] sm:$0xff]
      %v493 = vld [vmem:[%s257 + $0x30] sm:$0xff]
      %v494 = vld [vmem:[%s257 + $0x38] sm:$0xff]
      %v495 = vld [vmem:[%s257 + $0x40] sm:$0xff]
      %v496 = vld [vmem:[%s257 + $0x48] sm:$0xff]
      %v497 = vld [vmem:[%s257 + $0x50] sm:$0xff]
      %v498 = vld [vmem:[%s257 + $0x58] sm:$0xff]
      %v499 = vld [vmem:[%s257 + $0x60] sm:$0xff]
      %v500 = vld [vmem:[%s257 + $0x68] sm:$0xff]
      %v501 = vld [vmem:[%s257 + $0x70] sm:$0xff]
      %v502 = vld [vmem:[%s257 + $0x78] sm:$0xff]
      %v503 = vld [vmem:[%s257 + $0x80] sm:$0xff]
      %v504 = vld [vmem:[%s257 + $0x88] sm:$0xff]
      %v505 = vld [vmem:[%s257 + $0x90] sm:$0xff]
      %v506 = vld [vmem:[%s257 + $0x98] sm:$0xff]
      %v507 = vld [vmem:[%s257 + $0xa0] sm:$0xff]
      %v508 = vld [vmem:[%s257 + $0xa8] sm:$0xff]
      %v509 = vld [vmem:[%s257 + $0xb0] sm:$0xff]
      %v510 = vld [vmem:[%s257 + $0xb8] sm:$0xff]
      %v511 = vld [vmem:[%s257 + $0xc0] sm:$0xff]
      %v512 = vld [vmem:[%s257 + $0xc8] sm:$0xff]
      %v513 = vld [vmem:[%s257 + $0xd0] sm:$0xff]
      %v514 = vld [vmem:[%s257 + $0xd8] sm:$0xff]
      %v515 = vld [vmem:[%s257 + $0xe0] sm:$0xff]
      %v516 = vld [vmem:[%s257 + $0xe8] sm:$0xff]
      %v517 = vld [vmem:[%s257 + $0xf0] sm:$0xff]
      %v518 = vld [vmem:[%s257 + $0xf8] sm:$0xff]
      %v519 = vmul.f32 %v487, 0.125
      %v520 = vmul.f32 %v488, 0.125
      %v521 = vmul.f32 %v489, 0.125
      %v522 = vmul.f32 %v490, 0.125
      %v523 = vmul.f32 %v491, 0.125
      %v524 = vmul.f32 %v492, 0.125
      %v525 = vmul.f32 %v493, 0.125
      %v526 = vmul.f32 %v494, 0.125
      %v527 = vmul.f32 %v495, 0.125
      %v528 = vmul.f32 %v496, 0.125
      %v529 = vmul.f32 %v497, 0.125
      %v530 = vmul.f32 %v498, 0.125
      %v531 = vmul.f32 %v499, 0.125
      %v532 = vmul.f32 %v500, 0.125
      %v533 = vmul.f32 %v501, 0.125
      %v534 = vmul.f32 %v502, 0.125
      %v535 = vmul.f32 %v503, 0.125
      %v536 = vmul.f32 %v504, 0.125
      %v537 = vmul.f32 %v505, 0.125
      %v538 = vmul.f32 %v506, 0.125
      %v539 = vmul.f32 %v507, 0.125
      %v540 = vmul.f32 %v508, 0.125
      %v541 = vmul.f32 %v509, 0.125
      %v542 = vmul.f32 %v510, 0.125
      %v543 = vmul.f32 %v511, 0.125
      %v544 = vmul.f32 %v512, 0.125
      %v545 = vmul.f32 %v513, 0.125
      %v546 = vmul.f32 %v514, 0.125
      %v547 = vmul.f32 %v515, 0.125
      %v548 = vmul.f32 %v516, 0.125
      %v549 = vmul.f32 %v517, 0.125
      %v550 = vmul.f32 %v518, 0.125
      %v551 = vld [vmem:[%s267] sm:$0xff]
      %v552 = vld [vmem:[%s267 + $0x8] sm:$0xff]
      %v553 = vld [vmem:[%s267 + $0x10] sm:$0xff]
      %v554 = vld [vmem:[%s267 + $0x18] sm:$0xff]
      %v555 = vld [vmem:[%s267 + $0x20] sm:$0xff]
      %v556 = vld [vmem:[%s267 + $0x28] sm:$0xff]
      %v557 = vld [vmem:[%s267 + $0x30] sm:$0xff]
      %v558 = vld [vmem:[%s267 + $0x38] sm:$0xff]
      %v559 = vld [vmem:[%s277] sm:$0xff]
      %v560 = vld [vmem:[%s277 + $0x8] sm:$0xff]
      %v561 = vld [vmem:[%s277 + $0x10] sm:$0xff]
      %v562 = vld [vmem:[%s277 + $0x18] sm:$0xff]
      %v563 = vld [vmem:[%s277 + $0x20] sm:$0xff]
      %v564 = vld [vmem:[%s277 + $0x28] sm:$0xff]
      %v565 = vld [vmem:[%s277 + $0x30] sm:$0xff]
      %v566 = vld [vmem:[%s277 + $0x38] sm:$0xff]
      %vm567 = vcmask 523264
      %v569 = vsel %vm567, %v519, 0
      %v572 = vsel %vm567, %v520, 0
      %v575 = vsel %vm567, %v521, 0
      %v578 = vsel %vm567, %v522, 0
      %v581 = vsel %vm567, %v523, 0
      %v584 = vsel %vm567, %v524, 0
      %v587 = vsel %vm567, %v525, 0
      %v590 = vsel %vm567, %v526, 0
      %v593 = vsel %vm567, %v527, 0
      %v596 = vsel %vm567, %v528, 0
      %v599 = vsel %vm567, %v529, 0
      %v602 = vsel %vm567, %v530, 0
      %v605 = vsel %vm567, %v531, 0
      %v608 = vsel %vm567, %v532, 0
      %v611 = vsel %vm567, %v533, 0
      %v614 = vsel %vm567, %v534, 0
      %v617 = vsel %vm567, %v535, 0
      %v620 = vsel %vm567, %v536, 0
      %v623 = vsel %vm567, %v537, 0
      %v626 = vsel %vm567, %v538, 0
      %v629 = vsel %vm567, %v539, 0
      %v632 = vsel %vm567, %v540, 0
      %v635 = vsel %vm567, %v541, 0
      %v638 = vsel %vm567, %v542, 0
      %v641 = vsel %vm567, %v543, 0
      %v644 = vsel %vm567, %v544, 0
      %v647 = vsel %vm567, %v545, 0
      %v650 = vsel %vm567, %v546, 0
      %v653 = vsel %vm567, %v547, 0
      %v656 = vsel %vm567, %v548, 0
      %v659 = vsel %vm567, %v549, 0
      %v662 = vsel %vm567, %v550, 0
      %v665 = vsel %vm567, %v551, 0
      %v668 = vsel %vm567, %v552, 0
      %v671 = vsel %vm567, %v553, 0
      %v674 = vsel %vm567, %v554, 0
      %v677 = vsel %vm567, %v555, 0
      %v680 = vsel %vm567, %v556, 0
      %v683 = vsel %vm567, %v557, 0
      %v686 = vsel %vm567, %v558, 0
      %688 = vmatpush.xpose.msra.mxu0 0.0
      %689 = vmatpush.xpose.msra.mxu0 0.0
      %690 = vmatpush.xpose.msra.mxu0 0.0
      %691 = vmatpush.xpose.msra.mxu0 0.0
      %692 = vmatpush.xpose.msra.mxu0 0.0
      %693 = vmatpush.xpose.msra.mxu0 0.0
      %694 = vmatpush.xpose.msra.mxu0 0.0
      %695 = vmatpush.xpose.msra.mxu0 0.0
      %696 = vmatpush.xpose.msra.mxu0 %v686
      %697 = vmatpush.xpose.msra.mxu0 %v683
      %698 = vmatpush.xpose.msra.mxu0 %v680
      %699 = vmatpush.xpose.msra.mxu0 %v677
      %700 = vmatpush.xpose.msra.mxu0 %v674
      %701 = vmatpush.xpose.msra.mxu0 %v671
      %702 = vmatpush.xpose.msra.mxu0 %v668
      %703 = vmatpush.xpose.msra.mxu0 %v665
      %704 = vmatmul.f32.gmra.mxu0 %v569
      %v705 = vpop.f32.mrf.mxu0
      %v706 = vadd.f32 0.0, %v705
      %707 = vmatmul.f32.gmra.mxu0 %v572
      %v708 = vpop.f32.mrf.mxu0
      %v709 = vadd.f32 0.0, %v708
      %710 = vmatmul.f32.gmra.mxu0 %v575
      %v711 = vpop.f32.mrf.mxu0
      %v712 = vadd.f32 0.0, %v711
      %713 = vmatmul.f32.gmra.mxu0 %v578
      %v714 = vpop.f32.mrf.mxu0
      %v715 = vadd.f32 0.0, %v714
      %716 = vmatmul.f32.gmra.mxu0 %v581
      %v717 = vpop.f32.mrf.mxu0
      %v718 = vadd.f32 0.0, %v717
      %719 = vmatmul.f32.gmra.mxu0 %v584
      %v720 = vpop.f32.mrf.mxu0
      %v721 = vadd.f32 0.0, %v720
      %722 = vmatmul.f32.gmra.mxu0 %v587
      %v723 = vpop.f32.mrf.mxu0
      %v724 = vadd.f32 0.0, %v723
      %725 = vmatmul.f32.gmra.mxu0 %v590
      %v726 = vpop.f32.mrf.mxu0
      %v727 = vadd.f32 0.0, %v726
      %728 = vmatmul.f32.gmra.mxu0 %v593
      %v729 = vpop.f32.mrf.mxu0
      %v730 = vadd.f32 0.0, %v729
      %731 = vmatmul.f32.gmra.mxu0 %v596
      %v732 = vpop.f32.mrf.mxu0
      %v733 = vadd.f32 0.0, %v732
      %734 = vmatmul.f32.gmra.mxu0 %v599
      %v735 = vpop.f32.mrf.mxu0
      %v736 = vadd.f32 0.0, %v735
      %737 = vmatmul.f32.gmra.mxu0 %v602
      %v738 = vpop.f32.mrf.mxu0
      %v739 = vadd.f32 0.0, %v738
      %740 = vmatmul.f32.gmra.mxu0 %v605
      %v741 = vpop.f32.mrf.mxu0
      %v742 = vadd.f32 0.0, %v741
      %743 = vmatmul.f32.gmra.mxu0 %v608
      %v744 = vpop.f32.mrf.mxu0
      %v745 = vadd.f32 0.0, %v744
      %746 = vmatmul.f32.gmra.mxu0 %v611
      %v747 = vpop.f32.mrf.mxu0
      %v748 = vadd.f32 0.0, %v747
      %749 = vmatmul.f32.gmra.mxu0 %v614
      %v750 = vpop.f32.mrf.mxu0
      %v751 = vadd.f32 0.0, %v750
      %752 = vmatmul.f32.gmra.mxu0 %v617
      %v753 = vpop.f32.mrf.mxu0
      %v754 = vadd.f32 0.0, %v753
      %755 = vmatmul.f32.gmra.mxu0 %v620
      %v756 = vpop.f32.mrf.mxu0
      %v757 = vadd.f32 0.0, %v756
      %758 = vmatmul.f32.gmra.mxu0 %v623
      %v759 = vpop.f32.mrf.mxu0
      %v760 = vadd.f32 0.0, %v759
      %761 = vmatmul.f32.gmra.mxu0 %v626
      %v762 = vpop.f32.mrf.mxu0
      %v763 = vadd.f32 0.0, %v762
      %764 = vmatmul.f32.gmra.mxu0 %v629
      %v765 = vpop.f32.mrf.mxu0
      %v766 = vadd.f32 0.0, %v765
      %767 = vmatmul.f32.gmra.mxu0 %v632
      %v768 = vpop.f32.mrf.mxu0
      %v769 = vadd.f32 0.0, %v768
      %770 = vmatmul.f32.gmra.mxu0 %v635
      %v771 = vpop.f32.mrf.mxu0
      %v772 = vadd.f32 0.0, %v771
      %773 = vmatmul.f32.gmra.mxu0 %v638
      %v774 = vpop.f32.mrf.mxu0
      %v775 = vadd.f32 0.0, %v774
      %776 = vmatmul.f32.gmra.mxu0 %v641
      %v777 = vpop.f32.mrf.mxu0
      %v778 = vadd.f32 0.0, %v777
      %779 = vmatmul.f32.gmra.mxu0 %v644
      %v780 = vpop.f32.mrf.mxu0
      %v781 = vadd.f32 0.0, %v780
      %782 = vmatmul.f32.gmra.mxu0 %v647
      %v783 = vpop.f32.mrf.mxu0
      %v784 = vadd.f32 0.0, %v783
      %785 = vmatmul.f32.gmra.mxu0 %v650
      %v786 = vpop.f32.mrf.mxu0
      %v787 = vadd.f32 0.0, %v786
      %788 = vmatmul.f32.gmra.mxu0 %v653
      %v789 = vpop.f32.mrf.mxu0
      %v790 = vadd.f32 0.0, %v789
      %791 = vmatmul.f32.gmra.mxu0 %v656
      %v792 = vpop.f32.mrf.mxu0
      %v793 = vadd.f32 0.0, %v792
      %794 = vmatmul.f32.gmra.mxu0 %v659
      %v795 = vpop.f32.mrf.mxu0
      %v796 = vadd.f32 0.0, %v795
      %797 = vmatmul.f32.gmra.mxu0 %v662
      %v798 = vpop.f32.mrf.mxu0
      %v799 = vadd.f32 0.0, %v798
      %800 = vdwg.mxu0
      %v801 = vld [vmem:[#allocation2] sm:$0xff]
      %v802 = vld [vmem:[#allocation2 + $0x8] sm:$0xff]
      %v803 = vld [vmem:[#allocation2 + $0x10] sm:$0xff]
      %v804 = vld [vmem:[#allocation2 + $0x18] sm:$0xff]
      %v805 = vld [vmem:[#allocation2 + $0x20] sm:$0xff]
      %v806 = vld [vmem:[#allocation2 + $0x28] sm:$0xff]
      %v807 = vld [vmem:[#allocation2 + $0x30] sm:$0xff]
      %v808 = vld [vmem:[#allocation2 + $0x38] sm:$0xff]
      %v809 = vld [vmem:[#allocation2 + $0x40] sm:$0xff]
      %v810 = vld [vmem:[#allocation2 + $0x48] sm:$0xff]
      %v811 = vld [vmem:[#allocation2 + $0x50] sm:$0xff]
      %v812 = vld [vmem:[#allocation2 + $0x58] sm:$0xff]
      %v813 = vld [vmem:[#allocation2 + $0x60] sm:$0xff]
      %v814 = vld [vmem:[#allocation2 + $0x68] sm:$0xff]
      %v815 = vld [vmem:[#allocation2 + $0x70] sm:$0xff]
      %v816 = vld [vmem:[#allocation2 + $0x78] sm:$0xff]
      %v817 = vld [vmem:[#allocation2 + $0x80] sm:$0xff]
      %v818 = vld [vmem:[#allocation2 + $0x88] sm:$0xff]
      %v819 = vld [vmem:[#allocation2 + $0x90] sm:$0xff]
      %v820 = vld [vmem:[#allocation2 + $0x98] sm:$0xff]
      %v821 = vld [vmem:[#allocation2 + $0xa0] sm:$0xff]
      %v822 = vld [vmem:[#allocation2 + $0xa8] sm:$0xff]
      %v823 = vld [vmem:[#allocation2 + $0xb0] sm:$0xff]
      %v824 = vld [vmem:[#allocation2 + $0xb8] sm:$0xff]
      %v825 = vld [vmem:[#allocation2 + $0xc0] sm:$0xff]
      %v826 = vld [vmem:[#allocation2 + $0xc8] sm:$0xff]
      %v827 = vld [vmem:[#allocation2 + $0xd0] sm:$0xff]
      %v828 = vld [vmem:[#allocation2 + $0xd8] sm:$0xff]
      %v829 = vld [vmem:[#allocation2 + $0xe0] sm:$0xff]
      %v830 = vld [vmem:[#allocation2 + $0xe8] sm:$0xff]
      %v831 = vld [vmem:[#allocation2 + $0xf0] sm:$0xff]
      %v832 = vld [vmem:[#allocation2 + $0xf8] sm:$0xff]
      %v833 = vsel %vm567, %v706, -inf
      %834 = vmax.xlane.f32.xlu0 %v833
      %v835 = vpop.xlane.xlu0 %834
      %v836 = vsel %vm567, %v709, -inf
      %837 = vmax.xlane.f32.xlu0 %v836
      %v838 = vpop.xlane.xlu0 %837
      %v839 = vsel %vm567, %v712, -inf
      %840 = vmax.xlane.f32.xlu0 %v839
      %v841 = vpop.xlane.xlu0 %840
      %v842 = vsel %vm567, %v715, -inf
      %843 = vmax.xlane.f32.xlu0 %v842
      %v844 = vpop.xlane.xlu0 %843
      %v845 = vsel %vm567, %v718, -inf
      %846 = vmax.xlane.f32.xlu0 %v845
      %v847 = vpop.xlane.xlu0 %846
      %v848 = vsel %vm567, %v721, -inf
      %849 = vmax.xlane.f32.xlu0 %v848
      %v850 = vpop.xlane.xlu0 %849
      %v851 = vsel %vm567, %v724, -inf
      %852 = vmax.xlane.f32.xlu0 %v851
      %v853 = vpop.xlane.xlu0 %852
      %v854 = vsel %vm567, %v727, -inf
      %855 = vmax.xlane.f32.xlu0 %v854
      %v856 = vpop.xlane.xlu0 %855
      %v857 = vsel %vm567, %v730, -inf
      %858 = vmax.xlane.f32.xlu0 %v857
      %v859 = vpop.xlane.xlu0 %858
      %v860 = vsel %vm567, %v733, -inf
      %861 = vmax.xlane.f32.xlu0 %v860
      %v862 = vpop.xlane.xlu0 %861
      %v863 = vsel %vm567, %v736, -inf
      %864 = vmax.xlane.f32.xlu0 %v863
      %v865 = vpop.xlane.xlu0 %864
      %v866 = vsel %vm567, %v739, -inf
      %867 = vmax.xlane.f32.xlu0 %v866
      %v868 = vpop.xlane.xlu0 %867
      %v869 = vsel %vm567, %v742, -inf
      %870 = vmax.xlane.f32.xlu0 %v869
      %v871 = vpop.xlane.xlu0 %870
      %v872 = vsel %vm567, %v745, -inf
      %873 = vmax.xlane.f32.xlu0 %v872
      %v874 = vpop.xlane.xlu0 %873
      %v875 = vsel %vm567, %v748, -inf
      %876 = vmax.xlane.f32.xlu0 %v875
      %v877 = vpop.xlane.xlu0 %876
      %v878 = vsel %vm567, %v751, -inf
      %879 = vmax.xlane.f32.xlu0 %v878
      %v880 = vpop.xlane.xlu0 %879
      %v881 = vsel %vm567, %v754, -inf
      %882 = vmax.xlane.f32.xlu0 %v881
      %v883 = vpop.xlane.xlu0 %882
      %v884 = vsel %vm567, %v757, -inf
      %885 = vmax.xlane.f32.xlu0 %v884
      %v886 = vpop.xlane.xlu0 %885
      %v887 = vsel %vm567, %v760, -inf
      %888 = vmax.xlane.f32.xlu0 %v887
      %v889 = vpop.xlane.xlu0 %888
      %v890 = vsel %vm567, %v763, -inf
      %891 = vmax.xlane.f32.xlu0 %v890
      %v892 = vpop.xlane.xlu0 %891
      %v893 = vsel %vm567, %v766, -inf
      %894 = vmax.xlane.f32.xlu0 %v893
      %v895 = vpop.xlane.xlu0 %894
      %v896 = vsel %vm567, %v769, -inf
      %897 = vmax.xlane.f32.xlu0 %v896
      %v898 = vpop.xlane.xlu0 %897
      %v899 = vsel %vm567, %v772, -inf
      %900 = vmax.xlane.f32.xlu0 %v899
      %v901 = vpop.xlane.xlu0 %900
      %v902 = vsel %vm567, %v775, -inf
      %903 = vmax.xlane.f32.xlu0 %v902
      %v904 = vpop.xlane.xlu0 %903
      %v905 = vsel %vm567, %v778, -inf
      %906 = vmax.xlane.f32.xlu0 %v905
      %v907 = vpop.xlane.xlu0 %906
      %v908 = vsel %vm567, %v781, -inf
      %909 = vmax.xlane.f32.xlu0 %v908
      %v910 = vpop.xlane.xlu0 %909
      %v911 = vsel %vm567, %v784, -inf
      %912 = vmax.xlane.f32.xlu0 %v911
      %v913 = vpop.xlane.xlu0 %912
      %v914 = vsel %vm567, %v787, -inf
      %915 = vmax.xlane.f32.xlu0 %v914
      %v916 = vpop.xlane.xlu0 %915
      %v917 = vsel %vm567, %v790, -inf
      %918 = vmax.xlane.f32.xlu0 %v917
      %v919 = vpop.xlane.xlu0 %918
      %v920 = vsel %vm567, %v793, -inf
      %921 = vmax.xlane.f32.xlu0 %v920
      %v922 = vpop.xlane.xlu0 %921
      %v923 = vsel %vm567, %v796, -inf
      %924 = vmax.xlane.f32.xlu0 %v923
      %v925 = vpop.xlane.xlu0 %924
      %v926 = vsel %vm567, %v799, -inf
      %927 = vmax.xlane.f32.xlu0 %v926
      %v928 = vpop.xlane.xlu0 %927
      %v929 = vmax.f32 %v801, %v835
      %v930 = vmax.f32 %v802, %v838
      %v931 = vmax.f32 %v803, %v841
      %v932 = vmax.f32 %v804, %v844
      %v933 = vmax.f32 %v805, %v847
      %v934 = vmax.f32 %v806, %v850
      %v935 = vmax.f32 %v807, %v853
      %v936 = vmax.f32 %v808, %v856
      %v937 = vmax.f32 %v809, %v859
      %v938 = vmax.f32 %v810, %v862
      %v939 = vmax.f32 %v811, %v865
      %v940 = vmax.f32 %v812, %v868
      %v941 = vmax.f32 %v813, %v871
      %v942 = vmax.f32 %v814, %v874
      %v943 = vmax.f32 %v815, %v877
      %v944 = vmax.f32 %v816, %v880
      %v945 = vmax.f32 %v817, %v883
      %v946 = vmax.f32 %v818, %v886
      %v947 = vmax.f32 %v819, %v889
      %v948 = vmax.f32 %v820, %v892
      %v949 = vmax.f32 %v821, %v895
      %v950 = vmax.f32 %v822, %v898
      %v951 = vmax.f32 %v823, %v901
      %v952 = vmax.f32 %v824, %v904
      %v953 = vmax.f32 %v825, %v907
      %v954 = vmax.f32 %v826, %v910
      %v955 = vmax.f32 %v827, %v913
      %v956 = vmax.f32 %v828, %v916
      %v957 = vmax.f32 %v829, %v919
      %v958 = vmax.f32 %v830, %v922
      %v959 = vmax.f32 %v831, %v925
      %v960 = vmax.f32 %v832, %v928
      %v961 = vsub.f32 %v801, %v929
      %v962 = vsub.f32 %v802, %v930
      %v963 = vsub.f32 %v803, %v931
      %v964 = vsub.f32 %v804, %v932
      %v965 = vsub.f32 %v805, %v933
      %v966 = vsub.f32 %v806, %v934
      %v967 = vsub.f32 %v807, %v935
      %v968 = vsub.f32 %v808, %v936
      %v969 = vsub.f32 %v809, %v937
      %v970 = vsub.f32 %v810, %v938
      %v971 = vsub.f32 %v811, %v939
      %v972 = vsub.f32 %v812, %v940
      %v973 = vsub.f32 %v813, %v941
      %v974 = vsub.f32 %v814, %v942
      %v975 = vsub.f32 %v815, %v943
      %v976 = vsub.f32 %v816, %v944
      %v977 = vsub.f32 %v817, %v945
      %v978 = vsub.f32 %v818, %v946
      %v979 = vsub.f32 %v819, %v947
      %v980 = vsub.f32 %v820, %v948
      %v981 = vsub.f32 %v821, %v949
      %v982 = vsub.f32 %v822, %v950
      %v983 = vsub.f32 %v823, %v951
      %v984 = vsub.f32 %v824, %v952
      %v985 = vsub.f32 %v825, %v953
      %v986 = vsub.f32 %v826, %v954
      %v987 = vsub.f32 %v827, %v955
      %v988 = vsub.f32 %v828, %v956
      %v989 = vsub.f32 %v829, %v957
      %v990 = vsub.f32 %v830, %v958
      %v991 = vsub.f32 %v831, %v959
      %v992 = vsub.f32 %v832, %v960
      %v993 = vmul.f32 %v961, 1.442695
      %v994 = vpow.pop %v993
      %v995 = vmul.f32 %v962, 1.442695
      %v996 = vpow.pop %v995
      %v997 = vmul.f32 %v963, 1.442695
      %v998 = vpow.pop %v997
      %v999 = vmul.f32 %v964, 1.442695
      %v1000 = vpow.pop %v999
      %v1001 = vmul.f32 %v965, 1.442695
      %v1002 = vpow.pop %v1001
      %v1003 = vmul.f32 %v966, 1.442695
      %v1004 = vpow.pop %v1003
      %v1005 = vmul.f32 %v967, 1.442695
      %v1006 = vpow.pop %v1005
      %v1007 = vmul.f32 %v968, 1.442695
      %v1008 = vpow.pop %v1007
      %v1009 = vmul.f32 %v969, 1.442695
      %v1010 = vpow.pop %v1009
      %v1011 = vmul.f32 %v970, 1.442695
      %v1012 = vpow.pop %v1011
      %v1013 = vmul.f32 %v971, 1.442695
      %v1014 = vpow.pop %v1013
      %v1015 = vmul.f32 %v972, 1.442695
      %v1016 = vpow.pop %v1015
      %v1017 = vmul.f32 %v973, 1.442695
      %v1018 = vpow.pop %v1017
      %v1019 = vmul.f32 %v974, 1.442695
      %v1020 = vpow.pop %v1019
      %v1021 = vmul.f32 %v975, 1.442695
      %v1022 = vpow.pop %v1021
      %v1023 = vmul.f32 %v976, 1.442695
      %v1024 = vpow.pop %v1023
      %v1025 = vmul.f32 %v977, 1.442695
      %v1026 = vpow.pop %v1025
      %v1027 = vmul.f32 %v978, 1.442695
      %v1028 = vpow.pop %v1027
      %v1029 = vmul.f32 %v979, 1.442695
      %v1030 = vpow.pop %v1029
      %v1031 = vmul.f32 %v980, 1.442695
      %v1032 = vpow.pop %v1031
      %v1033 = vmul.f32 %v981, 1.442695
      %v1034 = vpow.pop %v1033
      %v1035 = vmul.f32 %v982, 1.442695
      %v1036 = vpow.pop %v1035
      %v1037 = vmul.f32 %v983, 1.442695
      %v1038 = vpow.pop %v1037
      %v1039 = vmul.f32 %v984, 1.442695
      %v1040 = vpow.pop %v1039
      %v1041 = vmul.f32 %v985, 1.442695
      %v1042 = vpow.pop %v1041
      %v1043 = vmul.f32 %v986, 1.442695
      %v1044 = vpow.pop %v1043
      %v1045 = vmul.f32 %v987, 1.442695
      %v1046 = vpow.pop %v1045
      %v1047 = vmul.f32 %v988, 1.442695
      %v1048 = vpow.pop %v1047
      %v1049 = vmul.f32 %v989, 1.442695
      %v1050 = vpow.pop %v1049
      %v1051 = vmul.f32 %v990, 1.442695
      %v1052 = vpow.pop %v1051
      %v1053 = vmul.f32 %v991, 1.442695
      %v1054 = vpow.pop %v1053
      %v1055 = vmul.f32 %v992, 1.442695
      %v1056 = vpow.pop %v1055
      %1058 = vset.pattern.permute.xlu0 0
      %1059 = vperm.xlu0 %1058, %v929
      %v1060 = vpop.permute.xlu0 %1059
      %1063 = vset.pattern.permute.xlu0 0
      %1064 = vperm.xlu0 %1063, %v930
      %v1065 = vpop.permute.xlu0 %1064
      %1068 = vset.pattern.permute.xlu0 0
      %1069 = vperm.xlu0 %1068, %v931
      %v1070 = vpop.permute.xlu0 %1069
      %1073 = vset.pattern.permute.xlu0 0
      %1074 = vperm.xlu0 %1073, %v932
      %v1075 = vpop.permute.xlu0 %1074
      %1078 = vset.pattern.permute.xlu0 0
      %1079 = vperm.xlu0 %1078, %v933
      %v1080 = vpop.permute.xlu0 %1079
      %1083 = vset.pattern.permute.xlu0 0
      %1084 = vperm.xlu0 %1083, %v934
      %v1085 = vpop.permute.xlu0 %1084
      %1088 = vset.pattern.permute.xlu0 0
      %1089 = vperm.xlu0 %1088, %v935
      %v1090 = vpop.permute.xlu0 %1089
      %1093 = vset.pattern.permute.xlu0 0
      %1094 = vperm.xlu0 %1093, %v936
      %v1095 = vpop.permute.xlu0 %1094
      %1098 = vset.pattern.permute.xlu0 0
      %1099 = vperm.xlu0 %1098, %v937
      %v1100 = vpop.permute.xlu0 %1099
      %1103 = vset.pattern.permute.xlu0 0
      %1104 = vperm.xlu0 %1103, %v938
      %v1105 = vpop.permute.xlu0 %1104
      %1108 = vset.pattern.permute.xlu0 0
      %1109 = vperm.xlu0 %1108, %v939
      %v1110 = vpop.permute.xlu0 %1109
      %1113 = vset.pattern.permute.xlu0 0
      %1114 = vperm.xlu0 %1113, %v940
      %v1115 = vpop.permute.xlu0 %1114
      %1118 = vset.pattern.permute.xlu0 0
      %1119 = vperm.xlu0 %1118, %v941
      %v1120 = vpop.permute.xlu0 %1119
      %1123 = vset.pattern.permute.xlu0 0
      %1124 = vperm.xlu0 %1123, %v942
      %v1125 = vpop.permute.xlu0 %1124
      %1128 = vset.pattern.permute.xlu0 0
      %1129 = vperm.xlu0 %1128, %v943
      %v1130 = vpop.permute.xlu0 %1129
      %1133 = vset.pattern.permute.xlu0 0
      %1134 = vperm.xlu0 %1133, %v944
      %v1135 = vpop.permute.xlu0 %1134
      %1138 = vset.pattern.permute.xlu0 0
      %1139 = vperm.xlu0 %1138, %v945
      %v1140 = vpop.permute.xlu0 %1139
      %1143 = vset.pattern.permute.xlu0 0
      %1144 = vperm.xlu0 %1143, %v946
      %v1145 = vpop.permute.xlu0 %1144
      %1148 = vset.pattern.permute.xlu0 0
      %1149 = vperm.xlu0 %1148, %v947
      %v1150 = vpop.permute.xlu0 %1149
      %1153 = vset.pattern.permute.xlu0 0
      %1154 = vperm.xlu0 %1153, %v948
      %v1155 = vpop.permute.xlu0 %1154
      %1158 = vset.pattern.permute.xlu0 0
      %1159 = vperm.xlu0 %1158, %v949
      %v1160 = vpop.permute.xlu0 %1159
      %1163 = vset.pattern.permute.xlu0 0
      %1164 = vperm.xlu0 %1163, %v950
      %v1165 = vpop.permute.xlu0 %1164
      %1168 = vset.pattern.permute.xlu0 0
      %1169 = vperm.xlu0 %1168, %v951
      %v1170 = vpop.permute.xlu0 %1169
      %1173 = vset.pattern.permute.xlu0 0
      %1174 = vperm.xlu0 %1173, %v952
      %v1175 = vpop.permute.xlu0 %1174
      %1178 = vset.pattern.permute.xlu0 0
      %1179 = vperm.xlu0 %1178, %v953
      %v1180 = vpop.permute.xlu0 %1179
      %1183 = vset.pattern.permute.xlu0 0
      %1184 = vperm.xlu0 %1183, %v954
      %v1185 = vpop.permute.xlu0 %1184
      %1188 = vset.pattern.permute.xlu0 0
      %1189 = vperm.xlu0 %1188, %v955
      %v1190 = vpop.permute.xlu0 %1189
      %1193 = vset.pattern.permute.xlu0 0
      %1194 = vperm.xlu0 %1193, %v956
      %v1195 = vpop.permute.xlu0 %1194
      %1198 = vset.pattern.permute.xlu0 0
      %1199 = vperm.xlu0 %1198, %v957
      %v1200 = vpop.permute.xlu0 %1199
      %1203 = vset.pattern.permute.xlu0 0
      %1204 = vperm.xlu0 %1203, %v958
      %v1205 = vpop.permute.xlu0 %1204
      %1208 = vset.pattern.permute.xlu0 0
      %1209 = vperm.xlu0 %1208, %v959
      %v1210 = vpop.permute.xlu0 %1209
      %1213 = vset.pattern.permute.xlu0 0
      %1214 = vperm.xlu0 %1213, %v960
      %v1215 = vpop.permute.xlu0 %1214
      %v1217 = vsub.f32 %v706, %v1060
      %v1218 = vsub.f32 %v709, %v1065
      %v1219 = vsub.f32 %v712, %v1070
      %v1220 = vsub.f32 %v715, %v1075
      %v1221 = vsub.f32 %v718, %v1080
      %v1222 = vsub.f32 %v721, %v1085
      %v1223 = vsub.f32 %v724, %v1090
      %v1224 = vsub.f32 %v727, %v1095
      %v1225 = vsub.f32 %v730, %v1100
      %v1226 = vsub.f32 %v733, %v1105
      %v1227 = vsub.f32 %v736, %v1110
      %v1228 = vsub.f32 %v739, %v1115
      %v1229 = vsub.f32 %v742, %v1120
      %v1230 = vsub.f32 %v745, %v1125
      %v1231 = vsub.f32 %v748, %v1130
      %v1232 = vsub.f32 %v751, %v1135
      %v1233 = vsub.f32 %v754, %v1140
      %v1234 = vsub.f32 %v757, %v1145
      %v1235 = vsub.f32 %v760, %v1150
      %v1236 = vsub.f32 %v763, %v1155
      %v1237 = vsub.f32 %v766, %v1160
      %v1238 = vsub.f32 %v769, %v1165
      %v1239 = vsub.f32 %v772, %v1170
      %v1240 = vsub.f32 %v775, %v1175
      %v1241 = vsub.f32 %v778, %v1180
      %v1242 = vsub.f32 %v781, %v1185
      %v1243 = vsub.f32 %v784, %v1190
      %v1244 = vsub.f32 %v787, %v1195
      %v1245 = vsub.f32 %v790, %v1200
      %v1246 = vsub.f32 %v793, %v1205
      %v1247 = vsub.f32 %v796, %v1210
      %v1248 = vsub.f32 %v799, %v1215
      %v1249 = vmul.f32 %v1217, 1.442695
      %v1250 = vpow.pop %v1249
      %v1251 = vmul.f32 %v1218, 1.442695
      %v1252 = vpow.pop %v1251
      %v1253 = vmul.f32 %v1219, 1.442695
      %v1254 = vpow.pop %v1253
      %v1255 = vmul.f32 %v1220, 1.442695
      %v1256 = vpow.pop %v1255
      %v1257 = vmul.f32 %v1221, 1.442695
      %v1258 = vpow.pop %v1257
      %v1259 = vmul.f32 %v1222, 1.442695
      %v1260 = vpow.pop %v1259
      %v1261 = vmul.f32 %v1223, 1.442695
      %v1262 = vpow.pop %v1261
      %v1263 = vmul.f32 %v1224, 1.442695
      %v1264 = vpow.pop %v1263
      %v1265 = vmul.f32 %v1225, 1.442695
      %v1266 = vpow.pop %v1265
      %v1267 = vmul.f32 %v1226, 1.442695
      %v1268 = vpow.pop %v1267
      %v1269 = vmul.f32 %v1227, 1.442695
      %v1270 = vpow.pop %v1269
      %v1271 = vmul.f32 %v1228, 1.442695
      %v1272 = vpow.pop %v1271
      %v1273 = vmul.f32 %v1229, 1.442695
      %v1274 = vpow.pop %v1273
      %v1275 = vmul.f32 %v1230, 1.442695
      %v1276 = vpow.pop %v1275
      %v1277 = vmul.f32 %v1231, 1.442695
      %v1278 = vpow.pop %v1277
      %v1279 = vmul.f32 %v1232, 1.442695
      %v1280 = vpow.pop %v1279
      %v1281 = vmul.f32 %v1233, 1.442695
      %v1282 = vpow.pop %v1281
      %v1283 = vmul.f32 %v1234, 1.442695
      %v1284 = vpow.pop %v1283
      %v1285 = vmul.f32 %v1235, 1.442695
      %v1286 = vpow.pop %v1285
      %v1287 = vmul.f32 %v1236, 1.442695
      %v1288 = vpow.pop %v1287
      %v1289 = vmul.f32 %v1237, 1.442695
      %v1290 = vpow.pop %v1289
      %v1291 = vmul.f32 %v1238, 1.442695
      %v1292 = vpow.pop %v1291
      %v1293 = vmul.f32 %v1239, 1.442695
      %v1294 = vpow.pop %v1293
      %v1295 = vmul.f32 %v1240, 1.442695
      %v1296 = vpow.pop %v1295
      %v1297 = vmul.f32 %v1241, 1.442695
      %v1298 = vpow.pop %v1297
      %v1299 = vmul.f32 %v1242, 1.442695
      %v1300 = vpow.pop %v1299
      %v1301 = vmul.f32 %v1243, 1.442695
      %v1302 = vpow.pop %v1301
      %v1303 = vmul.f32 %v1244, 1.442695
      %v1304 = vpow.pop %v1303
      %v1305 = vmul.f32 %v1245, 1.442695
      %v1306 = vpow.pop %v1305
      %v1307 = vmul.f32 %v1246, 1.442695
      %v1308 = vpow.pop %v1307
      %v1309 = vmul.f32 %v1247, 1.442695
      %v1310 = vpow.pop %v1309
      %v1311 = vmul.f32 %v1248, 1.442695
      %v1312 = vpow.pop %v1311
      %v1313 = vld [vmem:[#allocation3] sm:$0xff]
      %v1314 = vld [vmem:[#allocation3 + $0x8] sm:$0xff]
      %v1315 = vld [vmem:[#allocation3 + $0x10] sm:$0xff]
      %v1316 = vld [vmem:[#allocation3 + $0x18] sm:$0xff]
      %v1317 = vld [vmem:[#allocation3 + $0x20] sm:$0xff]
      %v1318 = vld [vmem:[#allocation3 + $0x28] sm:$0xff]
      %v1319 = vld [vmem:[#allocation3 + $0x30] sm:$0xff]
      %v1320 = vld [vmem:[#allocation3 + $0x38] sm:$0xff]
      %v1321 = vld [vmem:[#allocation3 + $0x40] sm:$0xff]
      %v1322 = vld [vmem:[#allocation3 + $0x48] sm:$0xff]
      %v1323 = vld [vmem:[#allocation3 + $0x50] sm:$0xff]
      %v1324 = vld [vmem:[#allocation3 + $0x58] sm:$0xff]
      %v1325 = vld [vmem:[#allocation3 + $0x60] sm:$0xff]
      %v1326 = vld [vmem:[#allocation3 + $0x68] sm:$0xff]
      %v1327 = vld [vmem:[#allocation3 + $0x70] sm:$0xff]
      %v1328 = vld [vmem:[#allocation3 + $0x78] sm:$0xff]
      %v1329 = vld [vmem:[#allocation3 + $0x80] sm:$0xff]
      %v1330 = vld [vmem:[#allocation3 + $0x88] sm:$0xff]
      %v1331 = vld [vmem:[#allocation3 + $0x90] sm:$0xff]
      %v1332 = vld [vmem:[#allocation3 + $0x98] sm:$0xff]
      %v1333 = vld [vmem:[#allocation3 + $0xa0] sm:$0xff]
      %v1334 = vld [vmem:[#allocation3 + $0xa8] sm:$0xff]
      %v1335 = vld [vmem:[#allocation3 + $0xb0] sm:$0xff]
      %v1336 = vld [vmem:[#allocation3 + $0xb8] sm:$0xff]
      %v1337 = vld [vmem:[#allocation3 + $0xc0] sm:$0xff]
      %v1338 = vld [vmem:[#allocation3 + $0xc8] sm:$0xff]
      %v1339 = vld [vmem:[#allocation3 + $0xd0] sm:$0xff]
      %v1340 = vld [vmem:[#allocation3 + $0xd8] sm:$0xff]
      %v1341 = vld [vmem:[#allocation3 + $0xe0] sm:$0xff]
      %v1342 = vld [vmem:[#allocation3 + $0xe8] sm:$0xff]
      %v1343 = vld [vmem:[#allocation3 + $0xf0] sm:$0xff]
      %v1344 = vld [vmem:[#allocation3 + $0xf8] sm:$0xff]
      %v1345 = vmul.f32 %v994, %v1313
      %v1346 = vmul.f32 %v996, %v1314
      %v1347 = vmul.f32 %v998, %v1315
      %v1348 = vmul.f32 %v1000, %v1316
      %v1349 = vmul.f32 %v1002, %v1317
      %v1350 = vmul.f32 %v1004, %v1318
      %v1351 = vmul.f32 %v1006, %v1319
      %v1352 = vmul.f32 %v1008, %v1320
      %v1353 = vmul.f32 %v1010, %v1321
      %v1354 = vmul.f32 %v1012, %v1322
      %v1355 = vmul.f32 %v1014, %v1323
      %v1356 = vmul.f32 %v1016, %v1324
      %v1357 = vmul.f32 %v1018, %v1325
      %v1358 = vmul.f32 %v1020, %v1326
      %v1359 = vmul.f32 %v1022, %v1327
      %v1360 = vmul.f32 %v1024, %v1328
      %v1361 = vmul.f32 %v1026, %v1329
      %v1362 = vmul.f32 %v1028, %v1330
      %v1363 = vmul.f32 %v1030, %v1331
      %v1364 = vmul.f32 %v1032, %v1332
      %v1365 = vmul.f32 %v1034, %v1333
      %v1366 = vmul.f32 %v1036, %v1334
      %v1367 = vmul.f32 %v1038, %v1335
      %v1368 = vmul.f32 %v1040, %v1336
      %v1369 = vmul.f32 %v1042, %v1337
      %v1370 = vmul.f32 %v1044, %v1338
      %v1371 = vmul.f32 %v1046, %v1339
      %v1372 = vmul.f32 %v1048, %v1340
      %v1373 = vmul.f32 %v1050, %v1341
      %v1374 = vmul.f32 %v1052, %v1342
      %v1375 = vmul.f32 %v1054, %v1343
      %v1376 = vmul.f32 %v1056, %v1344
      %v1377 = vsel %vm567, %v1250, 0.0
      %1378 = vadd.xlane.f32.xlu0 %v1377
      %v1379 = vpop.xlane.xlu0 %1378
      %v1380 = vsel %vm567, %v1252, 0.0
      %1381 = vadd.xlane.f32.xlu0 %v1380
      %v1382 = vpop.xlane.xlu0 %1381
      %v1383 = vsel %vm567, %v1254, 0.0
      %1384 = vadd.xlane.f32.xlu0 %v1383
      %v1385 = vpop.xlane.xlu0 %1384
      %v1386 = vsel %vm567, %v1256, 0.0
      %1387 = vadd.xlane.f32.xlu0 %v1386
      %v1388 = vpop.xlane.xlu0 %1387
      %v1389 = vsel %vm567, %v1258, 0.0
      %1390 = vadd.xlane.f32.xlu0 %v1389
      %v1391 = vpop.xlane.xlu0 %1390
      %v1392 = vsel %vm567, %v1260, 0.0
      %1393 = vadd.xlane.f32.xlu0 %v1392
      %v1394 = vpop.xlane.xlu0 %1393
      %v1395 = vsel %vm567, %v1262, 0.0
      %1396 = vadd.xlane.f32.xlu0 %v1395
      %v1397 = vpop.xlane.xlu0 %1396
      %v1398 = vsel %vm567, %v1264, 0.0
      %1399 = vadd.xlane.f32.xlu0 %v1398
      %v1400 = vpop.xlane.xlu0 %1399
      %v1401 = vsel %vm567, %v1266, 0.0
      %1402 = vadd.xlane.f32.xlu0 %v1401
      %v1403 = vpop.xlane.xlu0 %1402
      %v1404 = vsel %vm567, %v1268, 0.0
      %1405 = vadd.xlane.f32.xlu0 %v1404
      %v1406 = vpop.xlane.xlu0 %1405
      %v1407 = vsel %vm567, %v1270, 0.0
      %1408 = vadd.xlane.f32.xlu0 %v1407
      %v1409 = vpop.xlane.xlu0 %1408
      %v1410 = vsel %vm567, %v1272, 0.0
      %1411 = vadd.xlane.f32.xlu0 %v1410
      %v1412 = vpop.xlane.xlu0 %1411
      %v1413 = vsel %vm567, %v1274, 0.0
      %1414 = vadd.xlane.f32.xlu0 %v1413
      %v1415 = vpop.xlane.xlu0 %1414
      %v1416 = vsel %vm567, %v1276, 0.0
      %1417 = vadd.xlane.f32.xlu0 %v1416
      %v1418 = vpop.xlane.xlu0 %1417
      %v1419 = vsel %vm567, %v1278, 0.0
      %1420 = vadd.xlane.f32.xlu0 %v1419
      %v1421 = vpop.xlane.xlu0 %1420
      %v1422 = vsel %vm567, %v1280, 0.0
      %1423 = vadd.xlane.f32.xlu0 %v1422
      %v1424 = vpop.xlane.xlu0 %1423
      %v1425 = vsel %vm567, %v1282, 0.0
      %1426 = vadd.xlane.f32.xlu0 %v1425
      %v1427 = vpop.xlane.xlu0 %1426
      %v1428 = vsel %vm567, %v1284, 0.0
      %1429 = vadd.xlane.f32.xlu0 %v1428
      %v1430 = vpop.xlane.xlu0 %1429
      %v1431 = vsel %vm567, %v1286, 0.0
      %1432 = vadd.xlane.f32.xlu0 %v1431
      %v1433 = vpop.xlane.xlu0 %1432
      %v1434 = vsel %vm567, %v1288, 0.0
      %1435 = vadd.xlane.f32.xlu0 %v1434
      %v1436 = vpop.xlane.xlu0 %1435
      %v1437 = vsel %vm567, %v1290, 0.0
      %1438 = vadd.xlane.f32.xlu0 %v1437
      %v1439 = vpop.xlane.xlu0 %1438
      %v1440 = vsel %vm567, %v1292, 0.0
      %1441 = vadd.xlane.f32.xlu0 %v1440
      %v1442 = vpop.xlane.xlu0 %1441
      %v1443 = vsel %vm567, %v1294, 0.0
      %1444 = vadd.xlane.f32.xlu0 %v1443
      %v1445 = vpop.xlane.xlu0 %1444
      %v1446 = vsel %vm567, %v1296, 0.0
      %1447 = vadd.xlane.f32.xlu0 %v1446
      %v1448 = vpop.xlane.xlu0 %1447
      %v1449 = vsel %vm567, %v1298, 0.0
      %1450 = vadd.xlane.f32.xlu0 %v1449
      %v1451 = vpop.xlane.xlu0 %1450
      %v1452 = vsel %vm567, %v1300, 0.0
      %1453 = vadd.xlane.f32.xlu0 %v1452
      %v1454 = vpop.xlane.xlu0 %1453
      %v1455 = vsel %vm567, %v1302, 0.0
      %1456 = vadd.xlane.f32.xlu0 %v1455
      %v1457 = vpop.xlane.xlu0 %1456
      %v1458 = vsel %vm567, %v1304, 0.0
      %1459 = vadd.xlane.f32.xlu0 %v1458
      %v1460 = vpop.xlane.xlu0 %1459
      %v1461 = vsel %vm567, %v1306, 0.0
      %1462 = vadd.xlane.f32.xlu0 %v1461
      %v1463 = vpop.xlane.xlu0 %1462
      %v1464 = vsel %vm567, %v1308, 0.0
      %1465 = vadd.xlane.f32.xlu0 %v1464
      %v1466 = vpop.xlane.xlu0 %1465
      %v1467 = vsel %vm567, %v1310, 0.0
      %1468 = vadd.xlane.f32.xlu0 %v1467
      %v1469 = vpop.xlane.xlu0 %1468
      %v1470 = vsel %vm567, %v1312, 0.0
      %1471 = vadd.xlane.f32.xlu0 %v1470
      %v1472 = vpop.xlane.xlu0 %1471
      %v1473 = vadd.f32 %v1345, %v1379
      %v1474 = vadd.f32 %v1346, %v1382
      %v1475 = vadd.f32 %v1347, %v1385
      %v1476 = vadd.f32 %v1348, %v1388
      %v1477 = vadd.f32 %v1349, %v1391
      %v1478 = vadd.f32 %v1350, %v1394
      %v1479 = vadd.f32 %v1351, %v1397
      %v1480 = vadd.f32 %v1352, %v1400
      %v1481 = vadd.f32 %v1353, %v1403
      %v1482 = vadd.f32 %v1354, %v1406
      %v1483 = vadd.f32 %v1355, %v1409
      %v1484 = vadd.f32 %v1356, %v1412
      %v1485 = vadd.f32 %v1357, %v1415
      %v1486 = vadd.f32 %v1358, %v1418
      %v1487 = vadd.f32 %v1359, %v1421
      %v1488 = vadd.f32 %v1360, %v1424
      %v1489 = vadd.f32 %v1361, %v1427
      %v1490 = vadd.f32 %v1362, %v1430
      %v1491 = vadd.f32 %v1363, %v1433
      %v1492 = vadd.f32 %v1364, %v1436
      %v1493 = vadd.f32 %v1365, %v1439
      %v1494 = vadd.f32 %v1366, %v1442
      %v1495 = vadd.f32 %v1367, %v1445
      %v1496 = vadd.f32 %v1368, %v1448
      %v1497 = vadd.f32 %v1369, %v1451
      %v1498 = vadd.f32 %v1370, %v1454
      %v1499 = vadd.f32 %v1371, %v1457
      %v1500 = vadd.f32 %v1372, %v1460
      %v1501 = vadd.f32 %v1373, %v1463
      %v1502 = vadd.f32 %v1374, %v1466
      %v1503 = vadd.f32 %v1375, %v1469
      %v1504 = vadd.f32 %v1376, %v1472
      %vm1505 = vcmask 7168
      %1506 = vst.msk [vmem:[#allocation3] sm:$0xff] %vm1505, %v1473
      %1507 = vst.msk [vmem:[#allocation3 + $0x8] sm:$0xff] %vm1505, %v1474
      %1508 = vst.msk [vmem:[#allocation3 + $0x10] sm:$0xff] %vm1505, %v1475
      %1509 = vst.msk [vmem:[#allocation3 + $0x18] sm:$0xff] %vm1505, %v1476
      %1510 = vst.msk [vmem:[#allocation3 + $0x20] sm:$0xff] %vm1505, %v1477
      %1511 = vst.msk [vmem:[#allocation3 + $0x28] sm:$0xff] %vm1505, %v1478
      %1512 = vst.msk [vmem:[#allocation3 + $0x30] sm:$0xff] %vm1505, %v1479
      %1513 = vst.msk [vmem:[#allocation3 + $0x38] sm:$0xff] %vm1505, %v1480
      %1514 = vst.msk [vmem:[#allocation3 + $0x40] sm:$0xff] %vm1505, %v1481
      %1515 = vst.msk [vmem:[#allocation3 + $0x48] sm:$0xff] %vm1505, %v1482
      %1516 = vst.msk [vmem:[#allocation3 + $0x50] sm:$0xff] %vm1505, %v1483
      %1517 = vst.msk [vmem:[#allocation3 + $0x58] sm:$0xff] %vm1505, %v1484
      %1518 = vst.msk [vmem:[#allocation3 + $0x60] sm:$0xff] %vm1505, %v1485
      %1519 = vst.msk [vmem:[#allocation3 + $0x68] sm:$0xff] %vm1505, %v1486
      %1520 = vst.msk [vmem:[#allocation3 + $0x70] sm:$0xff] %vm1505, %v1487
      %1521 = vst.msk [vmem:[#allocation3 + $0x78] sm:$0xff] %vm1505, %v1488
      %1522 = vst.msk [vmem:[#allocation3 + $0x80] sm:$0xff] %vm1505, %v1489
      %1523 = vst.msk [vmem:[#allocation3 + $0x88] sm:$0xff] %vm1505, %v1490
      %1524 = vst.msk [vmem:[#allocation3 + $0x90] sm:$0xff] %vm1505, %v1491
      %1525 = vst.msk [vmem:[#allocation3 + $0x98] sm:$0xff] %vm1505, %v1492
      %1526 = vst.msk [vmem:[#allocation3 + $0xa0] sm:$0xff] %vm1505, %v1493
      %1527 = vst.msk [vmem:[#allocation3 + $0xa8] sm:$0xff] %vm1505, %v1494
      %1528 = vst.msk [vmem:[#allocation3 + $0xb0] sm:$0xff] %vm1505, %v1495
      %1529 = vst.msk [vmem:[#allocation3 + $0xb8] sm:$0xff] %vm1505, %v1496
      %1530 = vst.msk [vmem:[#allocation3 + $0xc0] sm:$0xff] %vm1505, %v1497
      %1531 = vst.msk [vmem:[#allocation3 + $0xc8] sm:$0xff] %vm1505, %v1498
      %1532 = vst.msk [vmem:[#allocation3 + $0xd0] sm:$0xff] %vm1505, %v1499
      %1533 = vst.msk [vmem:[#allocation3 + $0xd8] sm:$0xff] %vm1505, %v1500
      %1534 = vst.msk [vmem:[#allocation3 + $0xe0] sm:$0xff] %vm1505, %v1501
      %1535 = vst.msk [vmem:[#allocation3 + $0xe8] sm:$0xff] %vm1505, %v1502
      %1536 = vst.msk [vmem:[#allocation3 + $0xf0] sm:$0xff] %vm1505, %v1503
      %1537 = vst.msk [vmem:[#allocation3 + $0xf8] sm:$0xff] %vm1505, %v1504
      %v1538 = vld [vmem:[#allocation4] sm:$0xff]
      %v1539 = vld [vmem:[#allocation4 + $0x8] sm:$0xff]
      %v1540 = vld [vmem:[#allocation4 + $0x10] sm:$0xff]
      %v1541 = vld [vmem:[#allocation4 + $0x18] sm:$0xff]
      %v1542 = vld [vmem:[#allocation4 + $0x20] sm:$0xff]
      %v1543 = vld [vmem:[#allocation4 + $0x28] sm:$0xff]
      %v1544 = vld [vmem:[#allocation4 + $0x30] sm:$0xff]
      %v1545 = vld [vmem:[#allocation4 + $0x38] sm:$0xff]
      %v1546 = vld [vmem:[#allocation4 + $0x40] sm:$0xff]
      %v1547 = vld [vmem:[#allocation4 + $0x48] sm:$0xff]
      %v1548 = vld [vmem:[#allocation4 + $0x50] sm:$0xff]
      %v1549 = vld [vmem:[#allocation4 + $0x58] sm:$0xff]
      %v1550 = vld [vmem:[#allocation4 + $0x60] sm:$0xff]
      %v1551 = vld [vmem:[#allocation4 + $0x68] sm:$0xff]
      %v1552 = vld [vmem:[#allocation4 + $0x70] sm:$0xff]
      %v1553 = vld [vmem:[#allocation4 + $0x78] sm:$0xff]
      %v1554 = vld [vmem:[#allocation4 + $0x80] sm:$0xff]
      %v1555 = vld [vmem:[#allocation4 + $0x88] sm:$0xff]
      %v1556 = vld [vmem:[#allocation4 + $0x90] sm:$0xff]
      %v1557 = vld [vmem:[#allocation4 + $0x98] sm:$0xff]
      %v1558 = vld [vmem:[#allocation4 + $0xa0] sm:$0xff]
      %v1559 = vld [vmem:[#allocation4 + $0xa8] sm:$0xff]
      %v1560 = vld [vmem:[#allocation4 + $0xb0] sm:$0xff]
      %v1561 = vld [vmem:[#allocation4 + $0xb8] sm:$0xff]
      %v1562 = vld [vmem:[#allocation4 + $0xc0] sm:$0xff]
      %v1563 = vld [vmem:[#allocation4 + $0xc8] sm:$0xff]
      %v1564 = vld [vmem:[#allocation4 + $0xd0] sm:$0xff]
      %v1565 = vld [vmem:[#allocation4 + $0xd8] sm:$0xff]
      %v1566 = vld [vmem:[#allocation4 + $0xe0] sm:$0xff]
      %v1567 = vld [vmem:[#allocation4 + $0xe8] sm:$0xff]
      %v1568 = vld [vmem:[#allocation4 + $0xf0] sm:$0xff]
      %v1569 = vld [vmem:[#allocation4 + $0xf8] sm:$0xff]
      %1571 = vset.pattern.permute.xlu0 0
      %1572 = vperm.xlu0 %1571, %v994
      %v1573 = vpop.permute.xlu0 %1572
      %1576 = vset.pattern.permute.xlu0 0
      %1577 = vperm.xlu0 %1576, %v996
      %v1578 = vpop.permute.xlu0 %1577
      %1581 = vset.pattern.permute.xlu0 0
      %1582 = vperm.xlu0 %1581, %v998
      %v1583 = vpop.permute.xlu0 %1582
      %1586 = vset.pattern.permute.xlu0 0
      %1587 = vperm.xlu0 %1586, %v1000
      %v1588 = vpop.permute.xlu0 %1587
      %1591 = vset.pattern.permute.xlu0 0
      %1592 = vperm.xlu0 %1591, %v1002
      %v1593 = vpop.permute.xlu0 %1592
      %1596 = vset.pattern.permute.xlu0 0
      %1597 = vperm.xlu0 %1596, %v1004
      %v1598 = vpop.permute.xlu0 %1597
      %1601 = vset.pattern.permute.xlu0 0
      %1602 = vperm.xlu0 %1601, %v1006
      %v1603 = vpop.permute.xlu0 %1602
      %1606 = vset.pattern.permute.xlu0 0
      %1607 = vperm.xlu0 %1606, %v1008
      %v1608 = vpop.permute.xlu0 %1607
      %1611 = vset.pattern.permute.xlu0 0
      %1612 = vperm.xlu0 %1611, %v1010
      %v1613 = vpop.permute.xlu0 %1612
      %1616 = vset.pattern.permute.xlu0 0
      %1617 = vperm.xlu0 %1616, %v1012
      %v1618 = vpop.permute.xlu0 %1617
      %1621 = vset.pattern.permute.xlu0 0
      %1622 = vperm.xlu0 %1621, %v1014
      %v1623 = vpop.permute.xlu0 %1622
      %1626 = vset.pattern.permute.xlu0 0
      %1627 = vperm.xlu0 %1626, %v1016
      %v1628 = vpop.permute.xlu0 %1627
      %1631 = vset.pattern.permute.xlu0 0
      %1632 = vperm.xlu0 %1631, %v1018
      %v1633 = vpop.permute.xlu0 %1632
      %1636 = vset.pattern.permute.xlu0 0
      %1637 = vperm.xlu0 %1636, %v1020
      %v1638 = vpop.permute.xlu0 %1637
      %1641 = vset.pattern.permute.xlu0 0
      %1642 = vperm.xlu0 %1641, %v1022
      %v1643 = vpop.permute.xlu0 %1642
      %1646 = vset.pattern.permute.xlu0 0
      %1647 = vperm.xlu0 %1646, %v1024
      %v1648 = vpop.permute.xlu0 %1647
      %1651 = vset.pattern.permute.xlu0 0
      %1652 = vperm.xlu0 %1651, %v1026
      %v1653 = vpop.permute.xlu0 %1652
      %1656 = vset.pattern.permute.xlu0 0
      %1657 = vperm.xlu0 %1656, %v1028
      %v1658 = vpop.permute.xlu0 %1657
      %1661 = vset.pattern.permute.xlu0 0
      %1662 = vperm.xlu0 %1661, %v1030
      %v1663 = vpop.permute.xlu0 %1662
      %1666 = vset.pattern.permute.xlu0 0
      %1667 = vperm.xlu0 %1666, %v1032
      %v1668 = vpop.permute.xlu0 %1667
      %1671 = vset.pattern.permute.xlu0 0
      %1672 = vperm.xlu0 %1671, %v1034
      %v1673 = vpop.permute.xlu0 %1672
      %1676 = vset.pattern.permute.xlu0 0
      %1677 = vperm.xlu0 %1676, %v1036
      %v1678 = vpop.permute.xlu0 %1677
      %1681 = vset.pattern.permute.xlu0 0
      %1682 = vperm.xlu0 %1681, %v1038
      %v1683 = vpop.permute.xlu0 %1682
      %1686 = vset.pattern.permute.xlu0 0
      %1687 = vperm.xlu0 %1686, %v1040
      %v1688 = vpop.permute.xlu0 %1687
      %1691 = vset.pattern.permute.xlu0 0
      %1692 = vperm.xlu0 %1691, %v1042
      %v1693 = vpop.permute.xlu0 %1692
      %1696 = vset.pattern.permute.xlu0 0
      %1697 = vperm.xlu0 %1696, %v1044
      %v1698 = vpop.permute.xlu0 %1697
      %1701 = vset.pattern.permute.xlu0 0
      %1702 = vperm.xlu0 %1701, %v1046
      %v1703 = vpop.permute.xlu0 %1702
      %1706 = vset.pattern.permute.xlu0 0
      %1707 = vperm.xlu0 %1706, %v1048
      %v1708 = vpop.permute.xlu0 %1707
      %1711 = vset.pattern.permute.xlu0 0
      %1712 = vperm.xlu0 %1711, %v1050
      %v1713 = vpop.permute.xlu0 %1712
      %1716 = vset.pattern.permute.xlu0 0
      %1717 = vperm.xlu0 %1716, %v1052
      %v1718 = vpop.permute.xlu0 %1717
      %1721 = vset.pattern.permute.xlu0 0
      %1722 = vperm.xlu0 %1721, %v1054
      %v1723 = vpop.permute.xlu0 %1722
      %1726 = vset.pattern.permute.xlu0 0
      %1727 = vperm.xlu0 %1726, %v1056
      %v1728 = vpop.permute.xlu0 %1727
      %v1730 = vmul.f32 %v1573, %v1538
      %v1731 = vmul.f32 %v1578, %v1539
      %v1732 = vmul.f32 %v1583, %v1540
      %v1733 = vmul.f32 %v1588, %v1541
      %v1734 = vmul.f32 %v1593, %v1542
      %v1735 = vmul.f32 %v1598, %v1543
      %v1736 = vmul.f32 %v1603, %v1544
      %v1737 = vmul.f32 %v1608, %v1545
      %v1738 = vmul.f32 %v1613, %v1546
      %v1739 = vmul.f32 %v1618, %v1547
      %v1740 = vmul.f32 %v1623, %v1548
      %v1741 = vmul.f32 %v1628, %v1549
      %v1742 = vmul.f32 %v1633, %v1550
      %v1743 = vmul.f32 %v1638, %v1551
      %v1744 = vmul.f32 %v1643, %v1552
      %v1745 = vmul.f32 %v1648, %v1553
      %v1746 = vmul.f32 %v1653, %v1554
      %v1747 = vmul.f32 %v1658, %v1555
      %v1748 = vmul.f32 %v1663, %v1556
      %v1749 = vmul.f32 %v1668, %v1557
      %v1750 = vmul.f32 %v1673, %v1558
      %v1751 = vmul.f32 %v1678, %v1559
      %v1752 = vmul.f32 %v1683, %v1560
      %v1753 = vmul.f32 %v1688, %v1561
      %v1754 = vmul.f32 %v1693, %v1562
      %v1755 = vmul.f32 %v1698, %v1563
      %v1756 = vmul.f32 %v1703, %v1564
      %v1757 = vmul.f32 %v1708, %v1565
      %v1758 = vmul.f32 %v1713, %v1566
      %v1759 = vmul.f32 %v1718, %v1567
      %v1760 = vmul.f32 %v1723, %v1568
      %v1761 = vmul.f32 %v1728, %v1569
      %v1763 = vsel %vm567, %v1250, 0
      %v1766 = vsel %vm567, %v1252, 0
      %v1769 = vsel %vm567, %v1254, 0
      %v1772 = vsel %vm567, %v1256, 0
      %v1775 = vsel %vm567, %v1258, 0
      %v1778 = vsel %vm567, %v1260, 0
      %v1781 = vsel %vm567, %v1262, 0
      %v1784 = vsel %vm567, %v1264, 0
      %v1787 = vsel %vm567, %v1266, 0
      %v1790 = vsel %vm567, %v1268, 0
      %v1793 = vsel %vm567, %v1270, 0
      %v1796 = vsel %vm567, %v1272, 0
      %v1799 = vsel %vm567, %v1274, 0
      %v1802 = vsel %vm567, %v1276, 0
      %v1805 = vsel %vm567, %v1278, 0
      %v1808 = vsel %vm567, %v1280, 0
      %v1811 = vsel %vm567, %v1282, 0
      %v1814 = vsel %vm567, %v1284, 0
      %v1817 = vsel %vm567, %v1286, 0
      %v1820 = vsel %vm567, %v1288, 0
      %v1823 = vsel %vm567, %v1290, 0
      %v1826 = vsel %vm567, %v1292, 0
      %v1829 = vsel %vm567, %v1294, 0
      %v1832 = vsel %vm567, %v1296, 0
      %v1835 = vsel %vm567, %v1298, 0
      %v1838 = vsel %vm567, %v1300, 0
      %v1841 = vsel %vm567, %v1302, 0
      %v1844 = vsel %vm567, %v1304, 0
      %v1847 = vsel %vm567, %v1306, 0
      %v1850 = vsel %vm567, %v1308, 0
      %v1853 = vsel %vm567, %v1310, 0
      %v1856 = vsel %vm567, %v1312, 0
      %1858 = vmatpush.msra.mxu0 0.0
      %1859 = vmatpush.msra.mxu0 0.0
      %1860 = vmatpush.msra.mxu0 0.0
      %1861 = vmatpush.msra.mxu0 0.0
      %1862 = vmatpush.msra.mxu0 0.0
      %1863 = vmatpush.msra.mxu0 0.0
      %1864 = vmatpush.msra.mxu0 0.0
      %1865 = vmatpush.msra.mxu0 0.0
      %1866 = vmatpush.msra.mxu0 %v566
      %1867 = vmatpush.msra.mxu0 %v565
      %1868 = vmatpush.msra.mxu0 %v564
      %1869 = vmatpush.msra.mxu0 %v563
      %1870 = vmatpush.msra.mxu0 %v562
      %1871 = vmatpush.msra.mxu0 %v561
      %1872 = vmatpush.msra.mxu0 %v560
      %1873 = vmatpush.msra.mxu0 %v559
      %1874 = vmatmul.f32.gmra.mxu0 %v1763
      %v1875 = vpop.f32.mrf.mxu0
      %v1876 = vadd.f32 0.0, %v1875
      %1877 = vmatmul.f32.gmra.mxu0 %v1766
      %v1878 = vpop.f32.mrf.mxu0
      %v1879 = vadd.f32 0.0, %v1878
      %1880 = vmatmul.f32.gmra.mxu0 %v1769
      %v1881 = vpop.f32.mrf.mxu0
      %v1882 = vadd.f32 0.0, %v1881
      %1883 = vmatmul.f32.gmra.mxu0 %v1772
      %v1884 = vpop.f32.mrf.mxu0
      %v1885 = vadd.f32 0.0, %v1884
      %1886 = vmatmul.f32.gmra.mxu0 %v1775
      %v1887 = vpop.f32.mrf.mxu0
      %v1888 = vadd.f32 0.0, %v1887
      %1889 = vmatmul.f32.gmra.mxu0 %v1778
      %v1890 = vpop.f32.mrf.mxu0
      %v1891 = vadd.f32 0.0, %v1890
      %1892 = vmatmul.f32.gmra.mxu0 %v1781
      %v1893 = vpop.f32.mrf.mxu0
      %v1894 = vadd.f32 0.0, %v1893
      %1895 = vmatmul.f32.gmra.mxu0 %v1784
      %v1896 = vpop.f32.mrf.mxu0
      %v1897 = vadd.f32 0.0, %v1896
      %1898 = vmatmul.f32.gmra.mxu0 %v1787
      %v1899 = vpop.f32.mrf.mxu0
      %v1900 = vadd.f32 0.0, %v1899
      %1901 = vmatmul.f32.gmra.mxu0 %v1790
      %v1902 = vpop.f32.mrf.mxu0
      %v1903 = vadd.f32 0.0, %v1902
      %1904 = vmatmul.f32.gmra.mxu0 %v1793
      %v1905 = vpop.f32.mrf.mxu0
      %v1906 = vadd.f32 0.0, %v1905
      %1907 = vmatmul.f32.gmra.mxu0 %v1796
      %v1908 = vpop.f32.mrf.mxu0
      %v1909 = vadd.f32 0.0, %v1908
      %1910 = vmatmul.f32.gmra.mxu0 %v1799
      %v1911 = vpop.f32.mrf.mxu0
      %v1912 = vadd.f32 0.0, %v1911
      %1913 = vmatmul.f32.gmra.mxu0 %v1802
      %v1914 = vpop.f32.mrf.mxu0
      %v1915 = vadd.f32 0.0, %v1914
      %1916 = vmatmul.f32.gmra.mxu0 %v1805
      %v1917 = vpop.f32.mrf.mxu0
      %v1918 = vadd.f32 0.0, %v1917
      %1919 = vmatmul.f32.gmra.mxu0 %v1808
      %v1920 = vpop.f32.mrf.mxu0
      %v1921 = vadd.f32 0.0, %v1920
      %1922 = vmatmul.f32.gmra.mxu0 %v1811
      %v1923 = vpop.f32.mrf.mxu0
      %v1924 = vadd.f32 0.0, %v1923
      %1925 = vmatmul.f32.gmra.mxu0 %v1814
      %v1926 = vpop.f32.mrf.mxu0
      %v1927 = vadd.f32 0.0, %v1926
      %1928 = vmatmul.f32.gmra.mxu0 %v1817
      %v1929 = vpop.f32.mrf.mxu0
      %v1930 = vadd.f32 0.0, %v1929
      %1931 = vmatmul.f32.gmra.mxu0 %v1820
      %v1932 = vpop.f32.mrf.mxu0
      %v1933 = vadd.f32 0.0, %v1932
      %1934 = vmatmul.f32.gmra.mxu0 %v1823
      %v1935 = vpop.f32.mrf.mxu0
      %v1936 = vadd.f32 0.0, %v1935
      %1937 = vmatmul.f32.gmra.mxu0 %v1826
      %v1938 = vpop.f32.mrf.mxu0
      %v1939 = vadd.f32 0.0, %v1938
      %1940 = vmatmul.f32.gmra.mxu0 %v1829
      %v1941 = vpop.f32.mrf.mxu0
      %v1942 = vadd.f32 0.0, %v1941
      %1943 = vmatmul.f32.gmra.mxu0 %v1832
      %v1944 = vpop.f32.mrf.mxu0
      %v1945 = vadd.f32 0.0, %v1944
      %1946 = vmatmul.f32.gmra.mxu0 %v1835
      %v1947 = vpop.f32.mrf.mxu0
      %v1948 = vadd.f32 0.0, %v1947
      %1949 = vmatmul.f32.gmra.mxu0 %v1838
      %v1950 = vpop.f32.mrf.mxu0
      %v1951 = vadd.f32 0.0, %v1950
      %1952 = vmatmul.f32.gmra.mxu0 %v1841
      %v1953 = vpop.f32.mrf.mxu0
      %v1954 = vadd.f32 0.0, %v1953
      %1955 = vmatmul.f32.gmra.mxu0 %v1844
      %v1956 = vpop.f32.mrf.mxu0
      %v1957 = vadd.f32 0.0, %v1956
      %1958 = vmatmul.f32.gmra.mxu0 %v1847
      %v1959 = vpop.f32.mrf.mxu0
      %v1960 = vadd.f32 0.0, %v1959
      %1961 = vmatmul.f32.gmra.mxu0 %v1850
      %v1962 = vpop.f32.mrf.mxu0
      %v1963 = vadd.f32 0.0, %v1962
      %1964 = vmatmul.f32.gmra.mxu0 %v1853
      %v1965 = vpop.f32.mrf.mxu0
      %v1966 = vadd.f32 0.0, %v1965
      %1967 = vmatmul.f32.gmra.mxu0 %v1856
      %v1968 = vpop.f32.mrf.mxu0
      %v1969 = vadd.f32 0.0, %v1968
      %1970 = vdwg.mxu0
      %v1971 = vadd.f32 %v1730, %v1876
      %v1972 = vadd.f32 %v1731, %v1879
      %v1973 = vadd.f32 %v1732, %v1882
      %v1974 = vadd.f32 %v1733, %v1885
      %v1975 = vadd.f32 %v1734, %v1888
      %v1976 = vadd.f32 %v1735, %v1891
      %v1977 = vadd.f32 %v1736, %v1894
      %v1978 = vadd.f32 %v1737, %v1897
      %v1979 = vadd.f32 %v1738, %v1900
      %v1980 = vadd.f32 %v1739, %v1903
      %v1981 = vadd.f32 %v1740, %v1906
      %v1982 = vadd.f32 %v1741, %v1909
      %v1983 = vadd.f32 %v1742, %v1912
      %v1984 = vadd.f32 %v1743, %v1915
      %v1985 = vadd.f32 %v1744, %v1918
      %v1986 = vadd.f32 %v1745, %v1921
      %v1987 = vadd.f32 %v1746, %v1924
      %v1988 = vadd.f32 %v1747, %v1927
      %v1989 = vadd.f32 %v1748, %v1930
      %v1990 = vadd.f32 %v1749, %v1933
      %v1991 = vadd.f32 %v1750, %v1936
      %v1992 = vadd.f32 %v1751, %v1939
      %v1993 = vadd.f32 %v1752, %v1942
      %v1994 = vadd.f32 %v1753, %v1945
      %v1995 = vadd.f32 %v1754, %v1948
      %v1996 = vadd.f32 %v1755, %v1951
      %v1997 = vadd.f32 %v1756, %v1954
      %v1998 = vadd.f32 %v1757, %v1957
      %v1999 = vadd.f32 %v1758, %v1960
      %v2000 = vadd.f32 %v1759, %v1963
      %v2001 = vadd.f32 %v1760, %v1966
      %v2002 = vadd.f32 %v1761, %v1969
      %2003 = vst.msk [vmem:[#allocation4] sm:$0xff] %vm567, %v1971
      %2004 = vst.msk [vmem:[#allocation4 + $0x8] sm:$0xff] %vm567, %v1972
      %2005 = vst.msk [vmem:[#allocation4 + $0x10] sm:$0xff] %vm567, %v1973
      %2006 = vst.msk [vmem:[#allocation4 + $0x18] sm:$0xff] %vm567, %v1974
      %2007 = vst.msk [vmem:[#allocation4 + $0x20] sm:$0xff] %vm567, %v1975
      %2008 = vst.msk [vmem:[#allocation4 + $0x28] sm:$0xff] %vm567, %v1976
      %2009 = vst.msk [vmem:[#allocation4 + $0x30] sm:$0xff] %vm567, %v1977
      %2010 = vst.msk [vmem:[#allocation4 + $0x38] sm:$0xff] %vm567, %v1978
      %2011 = vst.msk [vmem:[#allocation4 + $0x40] sm:$0xff] %vm567, %v1979
      %2012 = vst.msk [vmem:[#allocation4 + $0x48] sm:$0xff] %vm567, %v1980
      %2013 = vst.msk [vmem:[#allocation4 + $0x50] sm:$0xff] %vm567, %v1981
      %2014 = vst.msk [vmem:[#allocation4 + $0x58] sm:$0xff] %vm567, %v1982
      %2015 = vst.msk [vmem:[#allocation4 + $0x60] sm:$0xff] %vm567, %v1983
      %2016 = vst.msk [vmem:[#allocation4 + $0x68] sm:$0xff] %vm567, %v1984
      %2017 = vst.msk [vmem:[#allocation4 + $0x70] sm:$0xff] %vm567, %v1985
      %2018 = vst.msk [vmem:[#allocation4 + $0x78] sm:$0xff] %vm567, %v1986
      %2019 = vst.msk [vmem:[#allocation4 + $0x80] sm:$0xff] %vm567, %v1987
      %2020 = vst.msk [vmem:[#allocation4 + $0x88] sm:$0xff] %vm567, %v1988
      %2021 = vst.msk [vmem:[#allocation4 + $0x90] sm:$0xff] %vm567, %v1989
      %2022 = vst.msk [vmem:[#allocation4 + $0x98] sm:$0xff] %vm567, %v1990
      %2023 = vst.msk [vmem:[#allocation4 + $0xa0] sm:$0xff] %vm567, %v1991
      %2024 = vst.msk [vmem:[#allocation4 + $0xa8] sm:$0xff] %vm567, %v1992
      %2025 = vst.msk [vmem:[#allocation4 + $0xb0] sm:$0xff] %vm567, %v1993
      %2026 = vst.msk [vmem:[#allocation4 + $0xb8] sm:$0xff] %vm567, %v1994
      %2027 = vst.msk [vmem:[#allocation4 + $0xc0] sm:$0xff] %vm567, %v1995
      %2028 = vst.msk [vmem:[#allocation4 + $0xc8] sm:$0xff] %vm567, %v1996
      %2029 = vst.msk [vmem:[#allocation4 + $0xd0] sm:$0xff] %vm567, %v1997
      %2030 = vst.msk [vmem:[#allocation4 + $0xd8] sm:$0xff] %vm567, %v1998
      %2031 = vst.msk [vmem:[#allocation4 + $0xe0] sm:$0xff] %vm567, %v1999
      %2032 = vst.msk [vmem:[#allocation4 + $0xe8] sm:$0xff] %vm567, %v2000
      %2033 = vst.msk [vmem:[#allocation4 + $0xf0] sm:$0xff] %vm567, %v2001
      %2034 = vst.msk [vmem:[#allocation4 + $0xf8] sm:$0xff] %vm567, %v2002
      %2035 = vst.msk [vmem:[#allocation2] sm:$0xff] %vm1505, %v929
      %2036 = vst.msk [vmem:[#allocation2 + $0x8] sm:$0xff] %vm1505, %v930
      %2037 = vst.msk [vmem:[#allocation2 + $0x10] sm:$0xff] %vm1505, %v931
      %2038 = vst.msk [vmem:[#allocation2 + $0x18] sm:$0xff] %vm1505, %v932
      %2039 = vst.msk [vmem:[#allocation2 + $0x20] sm:$0xff] %vm1505, %v933
      %2040 = vst.msk [vmem:[#allocation2 + $0x28] sm:$0xff] %vm1505, %v934
      %2041 = vst.msk [vmem:[#allocation2 + $0x30] sm:$0xff] %vm1505, %v935
      %2042 = vst.msk [vmem:[#allocation2 + $0x38] sm:$0xff] %vm1505, %v936
      %2043 = vst.msk [vmem:[#allocation2 + $0x40] sm:$0xff] %vm1505, %v937
      %2044 = vst.msk [vmem:[#allocation2 + $0x48] sm:$0xff] %vm1505, %v938
      %2045 = vst.msk [vmem:[#allocation2 + $0x50] sm:$0xff] %vm1505, %v939
      %2046 = vst.msk [vmem:[#allocation2 + $0x58] sm:$0xff] %vm1505, %v940
      %2047 = vst.msk [vmem:[#allocation2 + $0x60] sm:$0xff] %vm1505, %v941
      %2048 = vst.msk [vmem:[#allocation2 + $0x68] sm:$0xff] %vm1505, %v942
      %2049 = vst.msk [vmem:[#allocation2 + $0x70] sm:$0xff] %vm1505, %v943
      %2050 = vst.msk [vmem:[#allocation2 + $0x78] sm:$0xff] %vm1505, %v944
      %2051 = vst.msk [vmem:[#allocation2 + $0x80] sm:$0xff] %vm1505, %v945
      %2052 = vst.msk [vmem:[#allocation2 + $0x88] sm:$0xff] %vm1505, %v946
      %2053 = vst.msk [vmem:[#allocation2 + $0x90] sm:$0xff] %vm1505, %v947
      %2054 = vst.msk [vmem:[#allocation2 + $0x98] sm:$0xff] %vm1505, %v948
      %2055 = vst.msk [vmem:[#allocation2 + $0xa0] sm:$0xff] %vm1505, %v949
      %2056 = vst.msk [vmem:[#allocation2 + $0xa8] sm:$0xff] %vm1505, %v950
      %2057 = vst.msk [vmem:[#allocation2 + $0xb0] sm:$0xff] %vm1505, %v951
      %2058 = vst.msk [vmem:[#allocation2 + $0xb8] sm:$0xff] %vm1505, %v952
      %2059 = vst.msk [vmem:[#allocation2 + $0xc0] sm:$0xff] %vm1505, %v953
      %2060 = vst.msk [vmem:[#allocation2 + $0xc8] sm:$0xff] %vm1505, %v954
      %2061 = vst.msk [vmem:[#allocation2 + $0xd0] sm:$0xff] %vm1505, %v955
      %2062 = vst.msk [vmem:[#allocation2 + $0xd8] sm:$0xff] %vm1505, %v956
      %2063 = vst.msk [vmem:[#allocation2 + $0xe0] sm:$0xff] %vm1505, %v957
      %2064 = vst.msk [vmem:[#allocation2 + $0xe8] sm:$0xff] %vm1505, %v958
      %2065 = vst.msk [vmem:[#allocation2 + $0xf0] sm:$0xff] %vm1505, %v959
      %2066 = vst.msk [vmem:[#allocation2 + $0xf8] sm:$0xff] %vm1505, %v960
      %2067 = vrot.lane.b32.xlu0 %v519, 64
      %v2068 = vpop.permute.xlu0 %2067
      %2069 = vrot.lane.b32.xlu0 %v520, 64
      %v2070 = vpop.permute.xlu0 %2069
      %2071 = vrot.lane.b32.xlu0 %v521, 64
      %v2072 = vpop.permute.xlu0 %2071
      %2073 = vrot.lane.b32.xlu0 %v522, 64
      %v2074 = vpop.permute.xlu0 %2073
      %2075 = vrot.lane.b32.xlu0 %v523, 64
      %v2076 = vpop.permute.xlu0 %2075
      %2077 = vrot.lane.b32.xlu0 %v524, 64
      %v2078 = vpop.permute.xlu0 %2077
      %2079 = vrot.lane.b32.xlu0 %v525, 64
      %v2080 = vpop.permute.xlu0 %2079
      %2081 = vrot.lane.b32.xlu0 %v526, 64
      %v2082 = vpop.permute.xlu0 %2081
      %2083 = vrot.lane.b32.xlu0 %v527, 64
      %v2084 = vpop.permute.xlu0 %2083
      %2085 = vrot.lane.b32.xlu0 %v528, 64
      %v2086 = vpop.permute.xlu0 %2085
      %2087 = vrot.lane.b32.xlu0 %v529, 64
      %v2088 = vpop.permute.xlu0 %2087
      %2089 = vrot.lane.b32.xlu0 %v530, 64
      %v2090 = vpop.permute.xlu0 %2089
      %2091 = vrot.lane.b32.xlu0 %v531, 64
      %v2092 = vpop.permute.xlu0 %2091
      %2093 = vrot.lane.b32.xlu0 %v532, 64
      %v2094 = vpop.permute.xlu0 %2093
      %2095 = vrot.lane.b32.xlu0 %v533, 64
      %v2096 = vpop.permute.xlu0 %2095
      %2097 = vrot.lane.b32.xlu0 %v534, 64
      %v2098 = vpop.permute.xlu0 %2097
      %2099 = vrot.lane.b32.xlu0 %v535, 64
      %v2100 = vpop.permute.xlu0 %2099
      %2101 = vrot.lane.b32.xlu0 %v536, 64
      %v2102 = vpop.permute.xlu0 %2101
      %2103 = vrot.lane.b32.xlu0 %v537, 64
      %v2104 = vpop.permute.xlu0 %2103
      %2105 = vrot.lane.b32.xlu0 %v538, 64
      %v2106 = vpop.permute.xlu0 %2105
      %2107 = vrot.lane.b32.xlu0 %v539, 64
      %v2108 = vpop.permute.xlu0 %2107
      %2109 = vrot.lane.b32.xlu0 %v540, 64
      %v2110 = vpop.permute.xlu0 %2109
      %2111 = vrot.lane.b32.xlu0 %v541, 64
      %v2112 = vpop.permute.xlu0 %2111
      %2113 = vrot.lane.b32.xlu0 %v542, 64
      %v2114 = vpop.permute.xlu0 %2113
      %2115 = vrot.lane.b32.xlu0 %v543, 64
      %v2116 = vpop.permute.xlu0 %2115
      %2117 = vrot.lane.b32.xlu0 %v544, 64
      %v2118 = vpop.permute.xlu0 %2117
      %2119 = vrot.lane.b32.xlu0 %v545, 64
      %v2120 = vpop.permute.xlu0 %2119
      %2121 = vrot.lane.b32.xlu0 %v546, 64
      %v2122 = vpop.permute.xlu0 %2121
      %2123 = vrot.lane.b32.xlu0 %v547, 64
      %v2124 = vpop.permute.xlu0 %2123
      %2125 = vrot.lane.b32.xlu0 %v548, 64
      %v2126 = vpop.permute.xlu0 %2125
      %2127 = vrot.lane.b32.xlu0 %v549, 64
      %v2128 = vpop.permute.xlu0 %2127
      %2129 = vrot.lane.b32.xlu0 %v550, 64
      %v2130 = vpop.permute.xlu0 %2129
      %2131 = vrot.lane.b32.xlu0 %v551, 64
      %v2132 = vpop.permute.xlu0 %2131
      %2133 = vrot.lane.b32.xlu0 %v552, 64
      %v2134 = vpop.permute.xlu0 %2133
      %2135 = vrot.lane.b32.xlu0 %v553, 64
      %v2136 = vpop.permute.xlu0 %2135
      %2137 = vrot.lane.b32.xlu0 %v554, 64
      %v2138 = vpop.permute.xlu0 %2137
      %2139 = vrot.lane.b32.xlu0 %v555, 64
      %v2140 = vpop.permute.xlu0 %2139
      %2141 = vrot.lane.b32.xlu0 %v556, 64
      %v2142 = vpop.permute.xlu0 %2141
      %2143 = vrot.lane.b32.xlu0 %v557, 64
      %v2144 = vpop.permute.xlu0 %2143
      %2145 = vrot.lane.b32.xlu0 %v558, 64
      %v2146 = vpop.permute.xlu0 %2145
      %v2147 = vsel %vm567, %v2068, 0
      %v2149 = vsel %vm567, %v2070, 0
      %v2151 = vsel %vm567, %v2072, 0
      %v2153 = vsel %vm567, %v2074, 0
      %v2155 = vsel %vm567, %v2076, 0
      %v2157 = vsel %vm567, %v2078, 0
      %v2159 = vsel %vm567, %v2080, 0
      %v2161 = vsel %vm567, %v2082, 0
      %v2163 = vsel %vm567, %v2084, 0
      %v2165 = vsel %vm567, %v2086, 0
      %v2167 = vsel %vm567, %v2088, 0
      %v2169 = vsel %vm567, %v2090, 0
      %v2171 = vsel %vm567, %v2092, 0
      %v2173 = vsel %vm567, %v2094, 0
      %v2175 = vsel %vm567, %v2096, 0
      %v2177 = vsel %vm567, %v2098, 0
      %v2179 = vsel %vm567, %v2100, 0
      %v2181 = vsel %vm567, %v2102, 0
      %v2183 = vsel %vm567, %v2104, 0
      %v2185 = vsel %vm567, %v2106, 0
      %v2187 = vsel %vm567, %v2108, 0
      %v2189 = vsel %vm567, %v2110, 0
      %v2191 = vsel %vm567, %v2112, 0
      %v2193 = vsel %vm567, %v2114, 0
      %v2195 = vsel %vm567, %v2116, 0
      %v2197 = vsel %vm567, %v2118, 0
      %v2199 = vsel %vm567, %v2120, 0
      %v2201 = vsel %vm567, %v2122, 0
      %v2203 = vsel %vm567, %v2124, 0
      %v2205 = vsel %vm567, %v2126, 0
      %v2207 = vsel %vm567, %v2128, 0
      %v2209 = vsel %vm567, %v2130, 0
      %v2211 = vsel %vm567, %v2132, 0
      %v2213 = vsel %vm567, %v2134, 0
      %v2215 = vsel %vm567, %v2136, 0
      %v2217 = vsel %vm567, %v2138, 0
      %v2219 = vsel %vm567, %v2140, 0
      %v2221 = vsel %vm567, %v2142, 0
      %v2223 = vsel %vm567, %v2144, 0
      %v2225 = vsel %vm567, %v2146, 0
      %2227 = vmatpush.xpose.msra.mxu0 0.0
      %2228 = vmatpush.xpose.msra.mxu0 0.0
      %2229 = vmatpush.xpose.msra.mxu0 0.0
      %2230 = vmatpush.xpose.msra.mxu0 0.0
      %2231 = vmatpush.xpose.msra.mxu0 0.0
      %2232 = vmatpush.xpose.msra.mxu0 0.0
      %2233 = vmatpush.xpose.msra.mxu0 0.0
      %2234 = vmatpush.xpose.msra.mxu0 0.0
      %2235 = vmatpush.xpose.msra.mxu0 %v2225
      %2236 = vmatpush.xpose.msra.mxu0 %v2223
      %2237 = vmatpush.xpose.msra.mxu0 %v2221
      %2238 = vmatpush.xpose.msra.mxu0 %v2219
      %2239 = vmatpush.xpose.msra.mxu0 %v2217
      %2240 = vmatpush.xpose.msra.mxu0 %v2215
      %2241 = vmatpush.xpose.msra.mxu0 %v2213
      %2242 = vmatpush.xpose.msra.mxu0 %v2211
      %2243 = vmatmul.f32.gmra.mxu0 %v2147
      %v2244 = vpop.f32.mrf.mxu0
      %v2245 = vadd.f32 0.0, %v2244
      %2246 = vmatmul.f32.gmra.mxu0 %v2149
      %v2247 = vpop.f32.mrf.mxu0
      %v2248 = vadd.f32 0.0, %v2247
      %2249 = vmatmul.f32.gmra.mxu0 %v2151
      %v2250 = vpop.f32.mrf.mxu0
      %v2251 = vadd.f32 0.0, %v2250
      %2252 = vmatmul.f32.gmra.mxu0 %v2153
      %v2253 = vpop.f32.mrf.mxu0
      %v2254 = vadd.f32 0.0, %v2253
      %2255 = vmatmul.f32.gmra.mxu0 %v2155
      %v2256 = vpop.f32.mrf.mxu0
      %v2257 = vadd.f32 0.0, %v2256
      %2258 = vmatmul.f32.gmra.mxu0 %v2157
      %v2259 = vpop.f32.mrf.mxu0
      %v2260 = vadd.f32 0.0, %v2259
      %2261 = vmatmul.f32.gmra.mxu0 %v2159
      %v2262 = vpop.f32.mrf.mxu0
      %v2263 = vadd.f32 0.0, %v2262
      %2264 = vmatmul.f32.gmra.mxu0 %v2161
      %v2265 = vpop.f32.mrf.mxu0
      %v2266 = vadd.f32 0.0, %v2265
      %2267 = vmatmul.f32.gmra.mxu0 %v2163
      %v2268 = vpop.f32.mrf.mxu0
      %v2269 = vadd.f32 0.0, %v2268
      %2270 = vmatmul.f32.gmra.mxu0 %v2165
      %v2271 = vpop.f32.mrf.mxu0
      %v2272 = vadd.f32 0.0, %v2271
      %2273 = vmatmul.f32.gmra.mxu0 %v2167
      %v2274 = vpop.f32.mrf.mxu0
      %v2275 = vadd.f32 0.0, %v2274
      %2276 = vmatmul.f32.gmra.mxu0 %v2169
      %v2277 = vpop.f32.mrf.mxu0
      %v2278 = vadd.f32 0.0, %v2277
      %2279 = vmatmul.f32.gmra.mxu0 %v2171
      %v2280 = vpop.f32.mrf.mxu0
      %v2281 = vadd.f32 0.0, %v2280
      %2282 = vmatmul.f32.gmra.mxu0 %v2173
      %v2283 = vpop.f32.mrf.mxu0
      %v2284 = vadd.f32 0.0, %v2283
      %2285 = vmatmul.f32.gmra.mxu0 %v2175
      %v2286 = vpop.f32.mrf.mxu0
      %v2287 = vadd.f32 0.0, %v2286
      %2288 = vmatmul.f32.gmra.mxu0 %v2177
      %v2289 = vpop.f32.mrf.mxu0
      %v2290 = vadd.f32 0.0, %v2289
      %2291 = vmatmul.f32.gmra.mxu0 %v2179
      %v2292 = vpop.f32.mrf.mxu0
      %v2293 = vadd.f32 0.0, %v2292
      %2294 = vmatmul.f32.gmra.mxu0 %v2181
      %v2295 = vpop.f32.mrf.mxu0
      %v2296 = vadd.f32 0.0, %v2295
      %2297 = vmatmul.f32.gmra.mxu0 %v2183
      %v2298 = vpop.f32.mrf.mxu0
      %v2299 = vadd.f32 0.0, %v2298
      %2300 = vmatmul.f32.gmra.mxu0 %v2185
      %v2301 = vpop.f32.mrf.mxu0
      %v2302 = vadd.f32 0.0, %v2301
      %2303 = vmatmul.f32.gmra.mxu0 %v2187
      %v2304 = vpop.f32.mrf.mxu0
      %v2305 = vadd.f32 0.0, %v2304
      %2306 = vmatmul.f32.gmra.mxu0 %v2189
      %v2307 = vpop.f32.mrf.mxu0
      %v2308 = vadd.f32 0.0, %v2307
      %2309 = vmatmul.f32.gmra.mxu0 %v2191
      %v2310 = vpop.f32.mrf.mxu0
      %v2311 = vadd.f32 0.0, %v2310
      %2312 = vmatmul.f32.gmra.mxu0 %v2193
      %v2313 = vpop.f32.mrf.mxu0
      %v2314 = vadd.f32 0.0, %v2313
      %2315 = vmatmul.f32.gmra.mxu0 %v2195
      %v2316 = vpop.f32.mrf.mxu0
      %v2317 = vadd.f32 0.0, %v2316
      %2318 = vmatmul.f32.gmra.mxu0 %v2197
      %v2319 = vpop.f32.mrf.mxu0
      %v2320 = vadd.f32 0.0, %v2319
      %2321 = vmatmul.f32.gmra.mxu0 %v2199
      %v2322 = vpop.f32.mrf.mxu0
      %v2323 = vadd.f32 0.0, %v2322
      %2324 = vmatmul.f32.gmra.mxu0 %v2201
      %v2325 = vpop.f32.mrf.mxu0
      %v2326 = vadd.f32 0.0, %v2325
      %2327 = vmatmul.f32.gmra.mxu0 %v2203
      %v2328 = vpop.f32.mrf.mxu0
      %v2329 = vadd.f32 0.0, %v2328
      %2330 = vmatmul.f32.gmra.mxu0 %v2205
      %v2331 = vpop.f32.mrf.mxu0
      %v2332 = vadd.f32 0.0, %v2331
      %2333 = vmatmul.f32.gmra.mxu0 %v2207
      %v2334 = vpop.f32.mrf.mxu0
      %v2335 = vadd.f32 0.0, %v2334
      %2336 = vmatmul.f32.gmra.mxu0 %v2209
      %v2337 = vpop.f32.mrf.mxu0
      %v2338 = vadd.f32 0.0, %v2337
      %2339 = vdwg.mxu0
      %s2340 = scalar_lea.vmem [#allocation2], 256
      %v2341 = vld [vmem:[%s2340] sm:$0xff]
      %v2342 = vld [vmem:[%s2340 + $0x8] sm:$0xff]
      %v2343 = vld [vmem:[%s2340 + $0x10] sm:$0xff]
      %v2344 = vld [vmem:[%s2340 + $0x18] sm:$0xff]
      %v2345 = vld [vmem:[%s2340 + $0x20] sm:$0xff]
      %v2346 = vld [vmem:[%s2340 + $0x28] sm:$0xff]
      %v2347 = vld [vmem:[%s2340 + $0x30] sm:$0xff]
      %v2348 = vld [vmem:[%s2340 + $0x38] sm:$0xff]
      %v2349 = vld [vmem:[%s2340 + $0x40] sm:$0xff]
      %v2350 = vld [vmem:[%s2340 + $0x48] sm:$0xff]
      %v2351 = vld [vmem:[%s2340 + $0x50] sm:$0xff]
      %v2352 = vld [vmem:[%s2340 + $0x58] sm:$0xff]
      %v2353 = vld [vmem:[%s2340 + $0x60] sm:$0xff]
      %v2354 = vld [vmem:[%s2340 + $0x68] sm:$0xff]
      %v2355 = vld [vmem:[%s2340 + $0x70] sm:$0xff]
      %v2356 = vld [vmem:[%s2340 + $0x78] sm:$0xff]
      %v2357 = vld [vmem:[%s2340 + $0x80] sm:$0xff]
      %v2358 = vld [vmem:[%s2340 + $0x88] sm:$0xff]
      %v2359 = vld [vmem:[%s2340 + $0x90] sm:$0xff]
      %v2360 = vld [vmem:[%s2340 + $0x98] sm:$0xff]
      %v2361 = vld [vmem:[%s2340 + $0xa0] sm:$0xff]
      %v2362 = vld [vmem:[%s2340 + $0xa8] sm:$0xff]
      %v2363 = vld [vmem:[%s2340 + $0xb0] sm:$0xff]
      %v2364 = vld [vmem:[%s2340 + $0xb8] sm:$0xff]
      %v2365 = vld [vmem:[%s2340 + $0xc0] sm:$0xff]
      %v2366 = vld [vmem:[%s2340 + $0xc8] sm:$0xff]
      %v2367 = vld [vmem:[%s2340 + $0xd0] sm:$0xff]
      %v2368 = vld [vmem:[%s2340 + $0xd8] sm:$0xff]
      %v2369 = vld [vmem:[%s2340 + $0xe0] sm:$0xff]
      %v2370 = vld [vmem:[%s2340 + $0xe8] sm:$0xff]
      %v2371 = vld [vmem:[%s2340 + $0xf0] sm:$0xff]
      %v2372 = vld [vmem:[%s2340 + $0xf8] sm:$0xff]
      %v2373 = vsel %vm567, %v2245, -inf
      %2374 = vmax.xlane.f32.xlu0 %v2373
      %v2375 = vpop.xlane.xlu0 %2374
      %v2376 = vsel %vm567, %v2248, -inf
      %2377 = vmax.xlane.f32.xlu0 %v2376
      %v2378 = vpop.xlane.xlu0 %2377
      %v2379 = vsel %vm567, %v2251, -inf
      %2380 = vmax.xlane.f32.xlu0 %v2379
      %v2381 = vpop.xlane.xlu0 %2380
      %v2382 = vsel %vm567, %v2254, -inf
      %2383 = vmax.xlane.f32.xlu0 %v2382
      %v2384 = vpop.xlane.xlu0 %2383
      %v2385 = vsel %vm567, %v2257, -inf
      %2386 = vmax.xlane.f32.xlu0 %v2385
      %v2387 = vpop.xlane.xlu0 %2386
      %v2388 = vsel %vm567, %v2260, -inf
      %2389 = vmax.xlane.f32.xlu0 %v2388
      %v2390 = vpop.xlane.xlu0 %2389
      %v2391 = vsel %vm567, %v2263, -inf
      %2392 = vmax.xlane.f32.xlu0 %v2391
      %v2393 = vpop.xlane.xlu0 %2392
      %v2394 = vsel %vm567, %v2266, -inf
      %2395 = vmax.xlane.f32.xlu0 %v2394
      %v2396 = vpop.xlane.xlu0 %2395
      %v2397 = vsel %vm567, %v2269, -inf
      %2398 = vmax.xlane.f32.xlu0 %v2397
      %v2399 = vpop.xlane.xlu0 %2398
      %v2400 = vsel %vm567, %v2272, -inf
      %2401 = vmax.xlane.f32.xlu0 %v2400
      %v2402 = vpop.xlane.xlu0 %2401
      %v2403 = vsel %vm567, %v2275, -inf
      %2404 = vmax.xlane.f32.xlu0 %v2403
      %v2405 = vpop.xlane.xlu0 %2404
      %v2406 = vsel %vm567, %v2278, -inf
      %2407 = vmax.xlane.f32.xlu0 %v2406
      %v2408 = vpop.xlane.xlu0 %2407
      %v2409 = vsel %vm567, %v2281, -inf
      %2410 = vmax.xlane.f32.xlu0 %v2409
      %v2411 = vpop.xlane.xlu0 %2410
      %v2412 = vsel %vm567, %v2284, -inf
      %2413 = vmax.xlane.f32.xlu0 %v2412
      %v2414 = vpop.xlane.xlu0 %2413
      %v2415 = vsel %vm567, %v2287, -inf
      %2416 = vmax.xlane.f32.xlu0 %v2415
      %v2417 = vpop.xlane.xlu0 %2416
      %v2418 = vsel %vm567, %v2290, -inf
      %2419 = vmax.xlane.f32.xlu0 %v2418
      %v2420 = vpop.xlane.xlu0 %2419
      %v2421 = vsel %vm567, %v2293, -inf
      %2422 = vmax.xlane.f32.xlu0 %v2421
      %v2423 = vpop.xlane.xlu0 %2422
      %v2424 = vsel %vm567, %v2296, -inf
      %2425 = vmax.xlane.f32.xlu0 %v2424
      %v2426 = vpop.xlane.xlu0 %2425
      %v2427 = vsel %vm567, %v2299, -inf
      %2428 = vmax.xlane.f32.xlu0 %v2427
      %v2429 = vpop.xlane.xlu0 %2428
      %v2430 = vsel %vm567, %v2302, -inf
      %2431 = vmax.xlane.f32.xlu0 %v2430
      %v2432 = vpop.xlane.xlu0 %2431
      %v2433 = vsel %vm567, %v2305, -inf
      %2434 = vmax.xlane.f32.xlu0 %v2433
      %v2435 = vpop.xlane.xlu0 %2434
      %v2436 = vsel %vm567, %v2308, -inf
      %2437 = vmax.xlane.f32.xlu0 %v2436
      %v2438 = vpop.xlane.xlu0 %2437
      %v2439 = vsel %vm567, %v2311, -inf
      %2440 = vmax.xlane.f32.xlu0 %v2439
      %v2441 = vpop.xlane.xlu0 %2440
      %v2442 = vsel %vm567, %v2314, -inf
      %2443 = vmax.xlane.f32.xlu0 %v2442
      %v2444 = vpop.xlane.xlu0 %2443
      %v2445 = vsel %vm567, %v2317, -inf
      %2446 = vmax.xlane.f32.xlu0 %v2445
      %v2447 = vpop.xlane.xlu0 %2446
      %v2448 = vsel %vm567, %v2320, -inf
      %2449 = vmax.xlane.f32.xlu0 %v2448
      %v2450 = vpop.xlane.xlu0 %2449
      %v2451 = vsel %vm567, %v2323, -inf
      %2452 = vmax.xlane.f32.xlu0 %v2451
      %v2453 = vpop.xlane.xlu0 %2452
      %v2454 = vsel %vm567, %v2326, -inf
      %2455 = vmax.xlane.f32.xlu0 %v2454
      %v2456 = vpop.xlane.xlu0 %2455
      %v2457 = vsel %vm567, %v2329, -inf
      %2458 = vmax.xlane.f32.xlu0 %v2457
      %v2459 = vpop.xlane.xlu0 %2458
      %v2460 = vsel %vm567, %v2332, -inf
      %2461 = vmax.xlane.f32.xlu0 %v2460
      %v2462 = vpop.xlane.xlu0 %2461
      %v2463 = vsel %vm567, %v2335, -inf
      %2464 = vmax.xlane.f32.xlu0 %v2463
      %v2465 = vpop.xlane.xlu0 %2464
      %v2466 = vsel %vm567, %v2338, -inf
      %2467 = vmax.xlane.f32.xlu0 %v2466
      %v2468 = vpop.xlane.xlu0 %2467
      %v2469 = vmax.f32 %v2341, %v2375
      %v2470 = vmax.f32 %v2342, %v2378
      %v2471 = vmax.f32 %v2343, %v2381
      %v2472 = vmax.f32 %v2344, %v2384
      %v2473 = vmax.f32 %v2345, %v2387
      %v2474 = vmax.f32 %v2346, %v2390
      %v2475 = vmax.f32 %v2347, %v2393
      %v2476 = vmax.f32 %v2348, %v2396
      %v2477 = vmax.f32 %v2349, %v2399
      %v2478 = vmax.f32 %v2350, %v2402
      %v2479 = vmax.f32 %v2351, %v2405
      %v2480 = vmax.f32 %v2352, %v2408
      %v2481 = vmax.f32 %v2353, %v2411
      %v2482 = vmax.f32 %v2354, %v2414
      %v2483 = vmax.f32 %v2355, %v2417
      %v2484 = vmax.f32 %v2356, %v2420
      %v2485 = vmax.f32 %v2357, %v2423
      %v2486 = vmax.f32 %v2358, %v2426
      %v2487 = vmax.f32 %v2359, %v2429
      %v2488 = vmax.f32 %v2360, %v2432
      %v2489 = vmax.f32 %v2361, %v2435
      %v2490 = vmax.f32 %v2362, %v2438
      %v2491 = vmax.f32 %v2363, %v2441
      %v2492 = vmax.f32 %v2364, %v2444
      %v2493 = vmax.f32 %v2365, %v2447
      %v2494 = vmax.f32 %v2366, %v2450
      %v2495 = vmax.f32 %v2367, %v2453
      %v2496 = vmax.f32 %v2368, %v2456
      %v2497 = vmax.f32 %v2369, %v2459
      %v2498 = vmax.f32 %v2370, %v2462
      %v2499 = vmax.f32 %v2371, %v2465
      %v2500 = vmax.f32 %v2372, %v2468
      %v2501 = vsub.f32 %v2341, %v2469
      %v2502 = vsub.f32 %v2342, %v2470
      %v2503 = vsub.f32 %v2343, %v2471
      %v2504 = vsub.f32 %v2344, %v2472
      %v2505 = vsub.f32 %v2345, %v2473
      %v2506 = vsub.f32 %v2346, %v2474
      %v2507 = vsub.f32 %v2347, %v2475
      %v2508 = vsub.f32 %v2348, %v2476
      %v2509 = vsub.f32 %v2349, %v2477
      %v2510 = vsub.f32 %v2350, %v2478
      %v2511 = vsub.f32 %v2351, %v2479
      %v2512 = vsub.f32 %v2352, %v2480
      %v2513 = vsub.f32 %v2353, %v2481
      %v2514 = vsub.f32 %v2354, %v2482
      %v2515 = vsub.f32 %v2355, %v2483
      %v2516 = vsub.f32 %v2356, %v2484
      %v2517 = vsub.f32 %v2357, %v2485
      %v2518 = vsub.f32 %v2358, %v2486
      %v2519 = vsub.f32 %v2359, %v2487
      %v2520 = vsub.f32 %v2360, %v2488
      %v2521 = vsub.f32 %v2361, %v2489
      %v2522 = vsub.f32 %v2362, %v2490
      %v2523 = vsub.f32 %v2363, %v2491
      %v2524 = vsub.f32 %v2364, %v2492
      %v2525 = vsub.f32 %v2365, %v2493
      %v2526 = vsub.f32 %v2366, %v2494
      %v2527 = vsub.f32 %v2367, %v2495
      %v2528 = vsub.f32 %v2368, %v2496
      %v2529 = vsub.f32 %v2369, %v2497
      %v2530 = vsub.f32 %v2370, %v2498
      %v2531 = vsub.f32 %v2371, %v2499
      %v2532 = vsub.f32 %v2372, %v2500
      %v2533 = vmul.f32 %v2501, 1.442695
      %v2534 = vpow.pop %v2533
      %v2535 = vmul.f32 %v2502, 1.442695
      %v2536 = vpow.pop %v2535
      %v2537 = vmul.f32 %v2503, 1.442695
      %v2538 = vpow.pop %v2537
      %v2539 = vmul.f32 %v2504, 1.442695
      %v2540 = vpow.pop %v2539
      %v2541 = vmul.f32 %v2505, 1.442695
      %v2542 = vpow.pop %v2541
      %v2543 = vmul.f32 %v2506, 1.442695
      %v2544 = vpow.pop %v2543
      %v2545 = vmul.f32 %v2507, 1.442695
      %v2546 = vpow.pop %v2545
      %v2547 = vmul.f32 %v2508, 1.442695
      %v2548 = vpow.pop %v2547
      %v2549 = vmul.f32 %v2509, 1.442695
      %v2550 = vpow.pop %v2549
      %v2551 = vmul.f32 %v2510, 1.442695
      %v2552 = vpow.pop %v2551
      %v2553 = vmul.f32 %v2511, 1.442695
      %v2554 = vpow.pop %v2553
      %v2555 = vmul.f32 %v2512, 1.442695
      %v2556 = vpow.pop %v2555
      %v2557 = vmul.f32 %v2513, 1.442695
      %v2558 = vpow.pop %v2557
      %v2559 = vmul.f32 %v2514, 1.442695
      %v2560 = vpow.pop %v2559
      %v2561 = vmul.f32 %v2515, 1.442695
      %v2562 = vpow.pop %v2561
      %v2563 = vmul.f32 %v2516, 1.442695
      %v2564 = vpow.pop %v2563
      %v2565 = vmul.f32 %v2517, 1.442695
      %v2566 = vpow.pop %v2565
      %v2567 = vmul.f32 %v2518, 1.442695
      %v2568 = vpow.pop %v2567
      %v2569 = vmul.f32 %v2519, 1.442695
      %v2570 = vpow.pop %v2569
      %v2571 = vmul.f32 %v2520, 1.442695
      %v2572 = vpow.pop %v2571
      %v2573 = vmul.f32 %v2521, 1.442695
      %v2574 = vpow.pop %v2573
      %v2575 = vmul.f32 %v2522, 1.442695
      %v2576 = vpow.pop %v2575
      %v2577 = vmul.f32 %v2523, 1.442695
      %v2578 = vpow.pop %v2577
      %v2579 = vmul.f32 %v2524, 1.442695
      %v2580 = vpow.pop %v2579
      %v2581 = vmul.f32 %v2525, 1.442695
      %v2582 = vpow.pop %v2581
      %v2583 = vmul.f32 %v2526, 1.442695
      %v2584 = vpow.pop %v2583
      %v2585 = vmul.f32 %v2527, 1.442695
      %v2586 = vpow.pop %v2585
      %v2587 = vmul.f32 %v2528, 1.442695
      %v2588 = vpow.pop %v2587
      %v2589 = vmul.f32 %v2529, 1.442695
      %v2590 = vpow.pop %v2589
      %v2591 = vmul.f32 %v2530, 1.442695
      %v2592 = vpow.pop %v2591
      %v2593 = vmul.f32 %v2531, 1.442695
      %v2594 = vpow.pop %v2593
      %v2595 = vmul.f32 %v2532, 1.442695
      %v2596 = vpow.pop %v2595
      %2598 = vset.pattern.permute.xlu0 0
      %2599 = vperm.xlu0 %2598, %v2469
      %v2600 = vpop.permute.xlu0 %2599
      %2603 = vset.pattern.permute.xlu0 0
      %2604 = vperm.xlu0 %2603, %v2470
      %v2605 = vpop.permute.xlu0 %2604
      %2608 = vset.pattern.permute.xlu0 0
      %2609 = vperm.xlu0 %2608, %v2471
      %v2610 = vpop.permute.xlu0 %2609
      %2613 = vset.pattern.permute.xlu0 0
      %2614 = vperm.xlu0 %2613, %v2472
      %v2615 = vpop.permute.xlu0 %2614
      %2618 = vset.pattern.permute.xlu0 0
      %2619 = vperm.xlu0 %2618, %v2473
      %v2620 = vpop.permute.xlu0 %2619
      %2623 = vset.pattern.permute.xlu0 0
      %2624 = vperm.xlu0 %2623, %v2474
      %v2625 = vpop.permute.xlu0 %2624
      %2628 = vset.pattern.permute.xlu0 0
      %2629 = vperm.xlu0 %2628, %v2475
      %v2630 = vpop.permute.xlu0 %2629
      %2633 = vset.pattern.permute.xlu0 0
      %2634 = vperm.xlu0 %2633, %v2476
      %v2635 = vpop.permute.xlu0 %2634
      %2638 = vset.pattern.permute.xlu0 0
      %2639 = vperm.xlu0 %2638, %v2477
      %v2640 = vpop.permute.xlu0 %2639
      %2643 = vset.pattern.permute.xlu0 0
      %2644 = vperm.xlu0 %2643, %v2478
      %v2645 = vpop.permute.xlu0 %2644
      %2648 = vset.pattern.permute.xlu0 0
      %2649 = vperm.xlu0 %2648, %v2479
      %v2650 = vpop.permute.xlu0 %2649
      %2653 = vset.pattern.permute.xlu0 0
      %2654 = vperm.xlu0 %2653, %v2480
      %v2655 = vpop.permute.xlu0 %2654
      %2658 = vset.pattern.permute.xlu0 0
      %2659 = vperm.xlu0 %2658, %v2481
      %v2660 = vpop.permute.xlu0 %2659
      %2663 = vset.pattern.permute.xlu0 0
      %2664 = vperm.xlu0 %2663, %v2482
      %v2665 = vpop.permute.xlu0 %2664
      %2668 = vset.pattern.permute.xlu0 0
      %2669 = vperm.xlu0 %2668, %v2483
      %v2670 = vpop.permute.xlu0 %2669
      %2673 = vset.pattern.permute.xlu0 0
      %2674 = vperm.xlu0 %2673, %v2484
      %v2675 = vpop.permute.xlu0 %2674
      %2678 = vset.pattern.permute.xlu0 0
      %2679 = vperm.xlu0 %2678, %v2485
      %v2680 = vpop.permute.xlu0 %2679
      %2683 = vset.pattern.permute.xlu0 0
      %2684 = vperm.xlu0 %2683, %v2486
      %v2685 = vpop.permute.xlu0 %2684
      %2688 = vset.pattern.permute.xlu0 0
      %2689 = vperm.xlu0 %2688, %v2487
      %v2690 = vpop.permute.xlu0 %2689
      %2693 = vset.pattern.permute.xlu0 0
      %2694 = vperm.xlu0 %2693, %v2488
      %v2695 = vpop.permute.xlu0 %2694
      %2698 = vset.pattern.permute.xlu0 0
      %2699 = vperm.xlu0 %2698, %v2489
      %v2700 = vpop.permute.xlu0 %2699
      %2703 = vset.pattern.permute.xlu0 0
      %2704 = vperm.xlu0 %2703, %v2490
      %v2705 = vpop.permute.xlu0 %2704
      %2708 = vset.pattern.permute.xlu0 0
      %2709 = vperm.xlu0 %2708, %v2491
      %v2710 = vpop.permute.xlu0 %2709
      %2713 = vset.pattern.permute.xlu0 0
      %2714 = vperm.xlu0 %2713, %v2492
      %v2715 = vpop.permute.xlu0 %2714
      %2718 = vset.pattern.permute.xlu0 0
      %2719 = vperm.xlu0 %2718, %v2493
      %v2720 = vpop.permute.xlu0 %2719
      %2723 = vset.pattern.permute.xlu0 0
      %2724 = vperm.xlu0 %2723, %v2494
      %v2725 = vpop.permute.xlu0 %2724
      %2728 = vset.pattern.permute.xlu0 0
      %2729 = vperm.xlu0 %2728, %v2495
      %v2730 = vpop.permute.xlu0 %2729
      %2733 = vset.pattern.permute.xlu0 0
      %2734 = vperm.xlu0 %2733, %v2496
      %v2735 = vpop.permute.xlu0 %2734
      %2738 = vset.pattern.permute.xlu0 0
      %2739 = vperm.xlu0 %2738, %v2497
      %v2740 = vpop.permute.xlu0 %2739
      %2743 = vset.pattern.permute.xlu0 0
      %2744 = vperm.xlu0 %2743, %v2498
      %v2745 = vpop.permute.xlu0 %2744
      %2748 = vset.pattern.permute.xlu0 0
      %2749 = vperm.xlu0 %2748, %v2499
      %v2750 = vpop.permute.xlu0 %2749
      %2753 = vset.pattern.permute.xlu0 0
      %2754 = vperm.xlu0 %2753, %v2500
      %v2755 = vpop.permute.xlu0 %2754
      %v2757 = vsub.f32 %v2245, %v2600
      %v2758 = vsub.f32 %v2248, %v2605
      %v2759 = vsub.f32 %v2251, %v2610
      %v2760 = vsub.f32 %v2254, %v2615
      %v2761 = vsub.f32 %v2257, %v2620
      %v2762 = vsub.f32 %v2260, %v2625
      %v2763 = vsub.f32 %v2263, %v2630
      %v2764 = vsub.f32 %v2266, %v2635
      %v2765 = vsub.f32 %v2269, %v2640
      %v2766 = vsub.f32 %v2272, %v2645
      %v2767 = vsub.f32 %v2275, %v2650
      %v2768 = vsub.f32 %v2278, %v2655
      %v2769 = vsub.f32 %v2281, %v2660
      %v2770 = vsub.f32 %v2284, %v2665
      %v2771 = vsub.f32 %v2287, %v2670
      %v2772 = vsub.f32 %v2290, %v2675
      %v2773 = vsub.f32 %v2293, %v2680
      %v2774 = vsub.f32 %v2296, %v2685
      %v2775 = vsub.f32 %v2299, %v2690
      %v2776 = vsub.f32 %v2302, %v2695
      %v2777 = vsub.f32 %v2305, %v2700
      %v2778 = vsub.f32 %v2308, %v2705
      %v2779 = vsub.f32 %v2311, %v2710
      %v2780 = vsub.f32 %v2314, %v2715
      %v2781 = vsub.f32 %v2317, %v2720
      %v2782 = vsub.f32 %v2320, %v2725
      %v2783 = vsub.f32 %v2323, %v2730
      %v2784 = vsub.f32 %v2326, %v2735
      %v2785 = vsub.f32 %v2329, %v2740
      %v2786 = vsub.f32 %v2332, %v2745
      %v2787 = vsub.f32 %v2335, %v2750
      %v2788 = vsub.f32 %v2338, %v2755
      %v2789 = vmul.f32 %v2757, 1.442695
      %v2790 = vpow.pop %v2789
      %v2791 = vmul.f32 %v2758, 1.442695
      %v2792 = vpow.pop %v2791
      %v2793 = vmul.f32 %v2759, 1.442695
      %v2794 = vpow.pop %v2793
      %v2795 = vmul.f32 %v2760, 1.442695
      %v2796 = vpow.pop %v2795
      %v2797 = vmul.f32 %v2761, 1.442695
      %v2798 = vpow.pop %v2797
      %v2799 = vmul.f32 %v2762, 1.442695
      %v2800 = vpow.pop %v2799
      %v2801 = vmul.f32 %v2763, 1.442695
      %v2802 = vpow.pop %v2801
      %v2803 = vmul.f32 %v2764, 1.442695
      %v2804 = vpow.pop %v2803
      %v2805 = vmul.f32 %v2765, 1.442695
      %v2806 = vpow.pop %v2805
      %v2807 = vmul.f32 %v2766, 1.442695
      %v2808 = vpow.pop %v2807
      %v2809 = vmul.f32 %v2767, 1.442695
      %v2810 = vpow.pop %v2809
      %v2811 = vmul.f32 %v2768, 1.442695
      %v2812 = vpow.pop %v2811
      %v2813 = vmul.f32 %v2769, 1.442695
      %v2814 = vpow.pop %v2813
      %v2815 = vmul.f32 %v2770, 1.442695
      %v2816 = vpow.pop %v2815
      %v2817 = vmul.f32 %v2771, 1.442695
      %v2818 = vpow.pop %v2817
      %v2819 = vmul.f32 %v2772, 1.442695
      %v2820 = vpow.pop %v2819
      %v2821 = vmul.f32 %v2773, 1.442695
      %v2822 = vpow.pop %v2821
      %v2823 = vmul.f32 %v2774, 1.442695
      %v2824 = vpow.pop %v2823
      %v2825 = vmul.f32 %v2775, 1.442695
      %v2826 = vpow.pop %v2825
      %v2827 = vmul.f32 %v2776, 1.442695
      %v2828 = vpow.pop %v2827
      %v2829 = vmul.f32 %v2777, 1.442695
      %v2830 = vpow.pop %v2829
      %v2831 = vmul.f32 %v2778, 1.442695
      %v2832 = vpow.pop %v2831
      %v2833 = vmul.f32 %v2779, 1.442695
      %v2834 = vpow.pop %v2833
      %v2835 = vmul.f32 %v2780, 1.442695
      %v2836 = vpow.pop %v2835
      %v2837 = vmul.f32 %v2781, 1.442695
      %v2838 = vpow.pop %v2837
      %v2839 = vmul.f32 %v2782, 1.442695
      %v2840 = vpow.pop %v2839
      %v2841 = vmul.f32 %v2783, 1.442695
      %v2842 = vpow.pop %v2841
      %v2843 = vmul.f32 %v2784, 1.442695
      %v2844 = vpow.pop %v2843
      %v2845 = vmul.f32 %v2785, 1.442695
      %v2846 = vpow.pop %v2845
      %v2847 = vmul.f32 %v2786, 1.442695
      %v2848 = vpow.pop %v2847
      %v2849 = vmul.f32 %v2787, 1.442695
      %v2850 = vpow.pop %v2849
      %v2851 = vmul.f32 %v2788, 1.442695
      %v2852 = vpow.pop %v2851
      %s2853 = scalar_lea.vmem [#allocation3], 256
      %v2854 = vld [vmem:[%s2853] sm:$0xff]
      %v2855 = vld [vmem:[%s2853 + $0x8] sm:$0xff]
      %v2856 = vld [vmem:[%s2853 + $0x10] sm:$0xff]
      %v2857 = vld [vmem:[%s2853 + $0x18] sm:$0xff]
      %v2858 = vld [vmem:[%s2853 + $0x20] sm:$0xff]
      %v2859 = vld [vmem:[%s2853 + $0x28] sm:$0xff]
      %v2860 = vld [vmem:[%s2853 + $0x30] sm:$0xff]
      %v2861 = vld [vmem:[%s2853 + $0x38] sm:$0xff]
      %v2862 = vld [vmem:[%s2853 + $0x40] sm:$0xff]
      %v2863 = vld [vmem:[%s2853 + $0x48] sm:$0xff]
      %v2864 = vld [vmem:[%s2853 + $0x50] sm:$0xff]
      %v2865 = vld [vmem:[%s2853 + $0x58] sm:$0xff]
      %v2866 = vld [vmem:[%s2853 + $0x60] sm:$0xff]
      %v2867 = vld [vmem:[%s2853 + $0x68] sm:$0xff]
      %v2868 = vld [vmem:[%s2853 + $0x70] sm:$0xff]
      %v2869 = vld [vmem:[%s2853 + $0x78] sm:$0xff]
      %v2870 = vld [vmem:[%s2853 + $0x80] sm:$0xff]
      %v2871 = vld [vmem:[%s2853 + $0x88] sm:$0xff]
      %v2872 = vld [vmem:[%s2853 + $0x90] sm:$0xff]
      %v2873 = vld [vmem:[%s2853 + $0x98] sm:$0xff]
      %v2874 = vld [vmem:[%s2853 + $0xa0] sm:$0xff]
      %v2875 = vld [vmem:[%s2853 + $0xa8] sm:$0xff]
      %v2876 = vld [vmem:[%s2853 + $0xb0] sm:$0xff]
      %v2877 = vld [vmem:[%s2853 + $0xb8] sm:$0xff]
      %v2878 = vld [vmem:[%s2853 + $0xc0] sm:$0xff]
      %v2879 = vld [vmem:[%s2853 + $0xc8] sm:$0xff]
      %v2880 = vld [vmem:[%s2853 + $0xd0] sm:$0xff]
      %v2881 = vld [vmem:[%s2853 + $0xd8] sm:$0xff]
      %v2882 = vld [vmem:[%s2853 + $0xe0] sm:$0xff]
      %v2883 = vld [vmem:[%s2853 + $0xe8] sm:$0xff]
      %v2884 = vld [vmem:[%s2853 + $0xf0] sm:$0xff]
      %v2885 = vld [vmem:[%s2853 + $0xf8] sm:$0xff]
      %v2886 = vmul.f32 %v2534, %v2854
      %v2887 = vmul.f32 %v2536, %v2855
      %v2888 = vmul.f32 %v2538, %v2856
      %v2889 = vmul.f32 %v2540, %v2857
      %v2890 = vmul.f32 %v2542, %v2858
      %v2891 = vmul.f32 %v2544, %v2859
      %v2892 = vmul.f32 %v2546, %v2860
      %v2893 = vmul.f32 %v2548, %v2861
      %v2894 = vmul.f32 %v2550, %v2862
      %v2895 = vmul.f32 %v2552, %v2863
      %v2896 = vmul.f32 %v2554, %v2864
      %v2897 = vmul.f32 %v2556, %v2865
      %v2898 = vmul.f32 %v2558, %v2866
      %v2899 = vmul.f32 %v2560, %v2867
      %v2900 = vmul.f32 %v2562, %v2868
      %v2901 = vmul.f32 %v2564, %v2869
      %v2902 = vmul.f32 %v2566, %v2870
      %v2903 = vmul.f32 %v2568, %v2871
      %v2904 = vmul.f32 %v2570, %v2872
      %v2905 = vmul.f32 %v2572, %v2873
      %v2906 = vmul.f32 %v2574, %v2874
      %v2907 = vmul.f32 %v2576, %v2875
      %v2908 = vmul.f32 %v2578, %v2876
      %v2909 = vmul.f32 %v2580, %v2877
      %v2910 = vmul.f32 %v2582, %v2878
      %v2911 = vmul.f32 %v2584, %v2879
      %v2912 = vmul.f32 %v2586, %v2880
      %v2913 = vmul.f32 %v2588, %v2881
      %v2914 = vmul.f32 %v2590, %v2882
      %v2915 = vmul.f32 %v2592, %v2883
      %v2916 = vmul.f32 %v2594, %v2884
      %v2917 = vmul.f32 %v2596, %v2885
      %v2918 = vsel %vm567, %v2790, 0.0
      %2919 = vadd.xlane.f32.xlu0 %v2918
      %v2920 = vpop.xlane.xlu0 %2919
      %v2921 = vsel %vm567, %v2792, 0.0
      %2922 = vadd.xlane.f32.xlu0 %v2921
      %v2923 = vpop.xlane.xlu0 %2922
      %v2924 = vsel %vm567, %v2794, 0.0
      %2925 = vadd.xlane.f32.xlu0 %v2924
      %v2926 = vpop.xlane.xlu0 %2925
      %v2927 = vsel %vm567, %v2796, 0.0
      %2928 = vadd.xlane.f32.xlu0 %v2927
      %v2929 = vpop.xlane.xlu0 %2928
      %v2930 = vsel %vm567, %v2798, 0.0
      %2931 = vadd.xlane.f32.xlu0 %v2930
      %v2932 = vpop.xlane.xlu0 %2931
      %v2933 = vsel %vm567, %v2800, 0.0
      %2934 = vadd.xlane.f32.xlu0 %v2933
      %v2935 = vpop.xlane.xlu0 %2934
      %v2936 = vsel %vm567, %v2802, 0.0
      %2937 = vadd.xlane.f32.xlu0 %v2936
      %v2938 = vpop.xlane.xlu0 %2937
      %v2939 = vsel %vm567, %v2804, 0.0
      %2940 = vadd.xlane.f32.xlu0 %v2939
      %v2941 = vpop.xlane.xlu0 %2940
      %v2942 = vsel %vm567, %v2806, 0.0
      %2943 = vadd.xlane.f32.xlu0 %v2942
      %v2944 = vpop.xlane.xlu0 %2943
      %v2945 = vsel %vm567, %v2808, 0.0
      %2946 = vadd.xlane.f32.xlu0 %v2945
      %v2947 = vpop.xlane.xlu0 %2946
      %v2948 = vsel %vm567, %v2810, 0.0
      %2949 = vadd.xlane.f32.xlu0 %v2948
      %v2950 = vpop.xlane.xlu0 %2949
      %v2951 = vsel %vm567, %v2812, 0.0
      %2952 = vadd.xlane.f32.xlu0 %v2951
      %v2953 = vpop.xlane.xlu0 %2952
      %v2954 = vsel %vm567, %v2814, 0.0
      %2955 = vadd.xlane.f32.xlu0 %v2954
      %v2956 = vpop.xlane.xlu0 %2955
      %v2957 = vsel %vm567, %v2816, 0.0
      %2958 = vadd.xlane.f32.xlu0 %v2957
      %v2959 = vpop.xlane.xlu0 %2958
      %v2960 = vsel %vm567, %v2818, 0.0
      %2961 = vadd.xlane.f32.xlu0 %v2960
      %v2962 = vpop.xlane.xlu0 %2961
      %v2963 = vsel %vm567, %v2820, 0.0
      %2964 = vadd.xlane.f32.xlu0 %v2963
      %v2965 = vpop.xlane.xlu0 %2964
      %v2966 = vsel %vm567, %v2822, 0.0
      %2967 = vadd.xlane.f32.xlu0 %v2966
      %v2968 = vpop.xlane.xlu0 %2967
      %v2969 = vsel %vm567, %v2824, 0.0
      %2970 = vadd.xlane.f32.xlu0 %v2969
      %v2971 = vpop.xlane.xlu0 %2970
      %v2972 = vsel %vm567, %v2826, 0.0
      %2973 = vadd.xlane.f32.xlu0 %v2972
      %v2974 = vpop.xlane.xlu0 %2973
      %v2975 = vsel %vm567, %v2828, 0.0
      %2976 = vadd.xlane.f32.xlu0 %v2975
      %v2977 = vpop.xlane.xlu0 %2976
      %v2978 = vsel %vm567, %v2830, 0.0
      %2979 = vadd.xlane.f32.xlu0 %v2978
      %v2980 = vpop.xlane.xlu0 %2979
      %v2981 = vsel %vm567, %v2832, 0.0
      %2982 = vadd.xlane.f32.xlu0 %v2981
      %v2983 = vpop.xlane.xlu0 %2982
      %v2984 = vsel %vm567, %v2834, 0.0
      %2985 = vadd.xlane.f32.xlu0 %v2984
      %v2986 = vpop.xlane.xlu0 %2985
      %v2987 = vsel %vm567, %v2836, 0.0
      %2988 = vadd.xlane.f32.xlu0 %v2987
      %v2989 = vpop.xlane.xlu0 %2988
      %v2990 = vsel %vm567, %v2838, 0.0
      %2991 = vadd.xlane.f32.xlu0 %v2990
      %v2992 = vpop.xlane.xlu0 %2991
      %v2993 = vsel %vm567, %v2840, 0.0
      %2994 = vadd.xlane.f32.xlu0 %v2993
      %v2995 = vpop.xlane.xlu0 %2994
      %v2996 = vsel %vm567, %v2842, 0.0
      %2997 = vadd.xlane.f32.xlu0 %v2996
      %v2998 = vpop.xlane.xlu0 %2997
      %v2999 = vsel %vm567, %v2844, 0.0
      %3000 = vadd.xlane.f32.xlu0 %v2999
      %v3001 = vpop.xlane.xlu0 %3000
      %v3002 = vsel %vm567, %v2846, 0.0
      %3003 = vadd.xlane.f32.xlu0 %v3002
      %v3004 = vpop.xlane.xlu0 %3003
      %v3005 = vsel %vm567, %v2848, 0.0
      %3006 = vadd.xlane.f32.xlu0 %v3005
      %v3007 = vpop.xlane.xlu0 %3006
      %v3008 = vsel %vm567, %v2850, 0.0
      %3009 = vadd.xlane.f32.xlu0 %v3008
      %v3010 = vpop.xlane.xlu0 %3009
      %v3011 = vsel %vm567, %v2852, 0.0
      %3012 = vadd.xlane.f32.xlu0 %v3011
      %v3013 = vpop.xlane.xlu0 %3012
      %v3014 = vadd.f32 %v2886, %v2920
      %v3015 = vadd.f32 %v2887, %v2923
      %v3016 = vadd.f32 %v2888, %v2926
      %v3017 = vadd.f32 %v2889, %v2929
      %v3018 = vadd.f32 %v2890, %v2932
      %v3019 = vadd.f32 %v2891, %v2935
      %v3020 = vadd.f32 %v2892, %v2938
      %v3021 = vadd.f32 %v2893, %v2941
      %v3022 = vadd.f32 %v2894, %v2944
      %v3023 = vadd.f32 %v2895, %v2947
      %v3024 = vadd.f32 %v2896, %v2950
      %v3025 = vadd.f32 %v2897, %v2953
      %v3026 = vadd.f32 %v2898, %v2956
      %v3027 = vadd.f32 %v2899, %v2959
      %v3028 = vadd.f32 %v2900, %v2962
      %v3029 = vadd.f32 %v2901, %v2965
      %v3030 = vadd.f32 %v2902, %v2968
      %v3031 = vadd.f32 %v2903, %v2971
      %v3032 = vadd.f32 %v2904, %v2974
      %v3033 = vadd.f32 %v2905, %v2977
      %v3034 = vadd.f32 %v2906, %v2980
      %v3035 = vadd.f32 %v2907, %v2983
      %v3036 = vadd.f32 %v2908, %v2986
      %v3037 = vadd.f32 %v2909, %v2989
      %v3038 = vadd.f32 %v2910, %v2992
      %v3039 = vadd.f32 %v2911, %v2995
      %v3040 = vadd.f32 %v2912, %v2998
      %v3041 = vadd.f32 %v2913, %v3001
      %v3042 = vadd.f32 %v2914, %v3004
      %v3043 = vadd.f32 %v2915, %v3007
      %v3044 = vadd.f32 %v2916, %v3010
      %v3045 = vadd.f32 %v2917, %v3013
      %3046 = vst.msk [vmem:[%s2853] sm:$0xff] %vm1505, %v3014
      %3047 = vst.msk [vmem:[%s2853 + $0x8] sm:$0xff] %vm1505, %v3015
      %3048 = vst.msk [vmem:[%s2853 + $0x10] sm:$0xff] %vm1505, %v3016
      %3049 = vst.msk [vmem:[%s2853 + $0x18] sm:$0xff] %vm1505, %v3017
      %3050 = vst.msk [vmem:[%s2853 + $0x20] sm:$0xff] %vm1505, %v3018
      %3051 = vst.msk [vmem:[%s2853 + $0x28] sm:$0xff] %vm1505, %v3019
      %3052 = vst.msk [vmem:[%s2853 + $0x30] sm:$0xff] %vm1505, %v3020
      %3053 = vst.msk [vmem:[%s2853 + $0x38] sm:$0xff] %vm1505, %v3021
      %3054 = vst.msk [vmem:[%s2853 + $0x40] sm:$0xff] %vm1505, %v3022
      %3055 = vst.msk [vmem:[%s2853 + $0x48] sm:$0xff] %vm1505, %v3023
      %3056 = vst.msk [vmem:[%s2853 + $0x50] sm:$0xff] %vm1505, %v3024
      %3057 = vst.msk [vmem:[%s2853 + $0x58] sm:$0xff] %vm1505, %v3025
      %3058 = vst.msk [vmem:[%s2853 + $0x60] sm:$0xff] %vm1505, %v3026
      %3059 = vst.msk [vmem:[%s2853 + $0x68] sm:$0xff] %vm1505, %v3027
      %3060 = vst.msk [vmem:[%s2853 + $0x70] sm:$0xff] %vm1505, %v3028
      %3061 = vst.msk [vmem:[%s2853 + $0x78] sm:$0xff] %vm1505, %v3029
      %3062 = vst.msk [vmem:[%s2853 + $0x80] sm:$0xff] %vm1505, %v3030
      %3063 = vst.msk [vmem:[%s2853 + $0x88] sm:$0xff] %vm1505, %v3031
      %3064 = vst.msk [vmem:[%s2853 + $0x90] sm:$0xff] %vm1505, %v3032
      %3065 = vst.msk [vmem:[%s2853 + $0x98] sm:$0xff] %vm1505, %v3033
      %3066 = vst.msk [vmem:[%s2853 + $0xa0] sm:$0xff] %vm1505, %v3034
      %3067 = vst.msk [vmem:[%s2853 + $0xa8] sm:$0xff] %vm1505, %v3035
      %3068 = vst.msk [vmem:[%s2853 + $0xb0] sm:$0xff] %vm1505, %v3036
      %3069 = vst.msk [vmem:[%s2853 + $0xb8] sm:$0xff] %vm1505, %v3037
      %3070 = vst.msk [vmem:[%s2853 + $0xc0] sm:$0xff] %vm1505, %v3038
      %3071 = vst.msk [vmem:[%s2853 + $0xc8] sm:$0xff] %vm1505, %v3039
      %3072 = vst.msk [vmem:[%s2853 + $0xd0] sm:$0xff] %vm1505, %v3040
      %3073 = vst.msk [vmem:[%s2853 + $0xd8] sm:$0xff] %vm1505, %v3041
      %3074 = vst.msk [vmem:[%s2853 + $0xe0] sm:$0xff] %vm1505, %v3042
      %3075 = vst.msk [vmem:[%s2853 + $0xe8] sm:$0xff] %vm1505, %v3043
      %3076 = vst.msk [vmem:[%s2853 + $0xf0] sm:$0xff] %vm1505, %v3044
      %3077 = vst.msk [vmem:[%s2853 + $0xf8] sm:$0xff] %vm1505, %v3045
      %s3078 = scalar_lea.vmem [#allocation4], 256
      %v3079 = vld [vmem:[%s3078] sm:$0xff]
      %v3080 = vld [vmem:[%s3078 + $0x8] sm:$0xff]
      %v3081 = vld [vmem:[%s3078 + $0x10] sm:$0xff]
      %v3082 = vld [vmem:[%s3078 + $0x18] sm:$0xff]
      %v3083 = vld [vmem:[%s3078 + $0x20] sm:$0xff]
      %v3084 = vld [vmem:[%s3078 + $0x28] sm:$0xff]
      %v3085 = vld [vmem:[%s3078 + $0x30] sm:$0xff]
      %v3086 = vld [vmem:[%s3078 + $0x38] sm:$0xff]
      %v3087 = vld [vmem:[%s3078 + $0x40] sm:$0xff]
      %v3088 = vld [vmem:[%s3078 + $0x48] sm:$0xff]
      %v3089 = vld [vmem:[%s3078 + $0x50] sm:$0xff]
      %v3090 = vld [vmem:[%s3078 + $0x58] sm:$0xff]
      %v3091 = vld [vmem:[%s3078 + $0x60] sm:$0xff]
      %v3092 = vld [vmem:[%s3078 + $0x68] sm:$0xff]
      %v3093 = vld [vmem:[%s3078 + $0x70] sm:$0xff]
      %v3094 = vld [vmem:[%s3078 + $0x78] sm:$0xff]
      %v3095 = vld [vmem:[%s3078 + $0x80] sm:$0xff]
      %v3096 = vld [vmem:[%s3078 + $0x88] sm:$0xff]
      %v3097 = vld [vmem:[%s3078 + $0x90] sm:$0xff]
      %v3098 = vld [vmem:[%s3078 + $0x98] sm:$0xff]
      %v3099 = vld [vmem:[%s3078 + $0xa0] sm:$0xff]
      %v3100 = vld [vmem:[%s3078 + $0xa8] sm:$0xff]
      %v3101 = vld [vmem:[%s3078 + $0xb0] sm:$0xff]
      %v3102 = vld [vmem:[%s3078 + $0xb8] sm:$0xff]
      %v3103 = vld [vmem:[%s3078 + $0xc0] sm:$0xff]
      %v3104 = vld [vmem:[%s3078 + $0xc8] sm:$0xff]
      %v3105 = vld [vmem:[%s3078 + $0xd0] sm:$0xff]
      %v3106 = vld [vmem:[%s3078 + $0xd8] sm:$0xff]
      %v3107 = vld [vmem:[%s3078 + $0xe0] sm:$0xff]
      %v3108 = vld [vmem:[%s3078 + $0xe8] sm:$0xff]
      %v3109 = vld [vmem:[%s3078 + $0xf0] sm:$0xff]
      %v3110 = vld [vmem:[%s3078 + $0xf8] sm:$0xff]
      %3112 = vset.pattern.permute.xlu0 0
      %3113 = vperm.xlu0 %3112, %v2534
      %v3114 = vpop.permute.xlu0 %3113
      %3117 = vset.pattern.permute.xlu0 0
      %3118 = vperm.xlu0 %3117, %v2536
      %v3119 = vpop.permute.xlu0 %3118
      %3122 = vset.pattern.permute.xlu0 0
      %3123 = vperm.xlu0 %3122, %v2538
      %v3124 = vpop.permute.xlu0 %3123
      %3127 = vset.pattern.permute.xlu0 0
      %3128 = vperm.xlu0 %3127, %v2540
      %v3129 = vpop.permute.xlu0 %3128
      %3132 = vset.pattern.permute.xlu0 0
      %3133 = vperm.xlu0 %3132, %v2542
      %v3134 = vpop.permute.xlu0 %3133
      %3137 = vset.pattern.permute.xlu0 0
      %3138 = vperm.xlu0 %3137, %v2544
      %v3139 = vpop.permute.xlu0 %3138
      %3142 = vset.pattern.permute.xlu0 0
      %3143 = vperm.xlu0 %3142, %v2546
      %v3144 = vpop.permute.xlu0 %3143
      %3147 = vset.pattern.permute.xlu0 0
      %3148 = vperm.xlu0 %3147, %v2548
      %v3149 = vpop.permute.xlu0 %3148
      %3152 = vset.pattern.permute.xlu0 0
      %3153 = vperm.xlu0 %3152, %v2550
      %v3154 = vpop.permute.xlu0 %3153
      %3157 = vset.pattern.permute.xlu0 0
      %3158 = vperm.xlu0 %3157, %v2552
      %v3159 = vpop.permute.xlu0 %3158
      %3162 = vset.pattern.permute.xlu0 0
      %3163 = vperm.xlu0 %3162, %v2554
      %v3164 = vpop.permute.xlu0 %3163
      %3167 = vset.pattern.permute.xlu0 0
      %3168 = vperm.xlu0 %3167, %v2556
      %v3169 = vpop.permute.xlu0 %3168
      %3172 = vset.pattern.permute.xlu0 0
      %3173 = vperm.xlu0 %3172, %v2558
      %v3174 = vpop.permute.xlu0 %3173
      %3177 = vset.pattern.permute.xlu0 0
      %3178 = vperm.xlu0 %3177, %v2560
      %v3179 = vpop.permute.xlu0 %3178
      %3182 = vset.pattern.permute.xlu0 0
      %3183 = vperm.xlu0 %3182, %v2562
      %v3184 = vpop.permute.xlu0 %3183
      %3187 = vset.pattern.permute.xlu0 0
      %3188 = vperm.xlu0 %3187, %v2564
      %v3189 = vpop.permute.xlu0 %3188
      %3192 = vset.pattern.permute.xlu0 0
      %3193 = vperm.xlu0 %3192, %v2566
      %v3194 = vpop.permute.xlu0 %3193
      %3197 = vset.pattern.permute.xlu0 0
      %3198 = vperm.xlu0 %3197, %v2568
      %v3199 = vpop.permute.xlu0 %3198
      %3202 = vset.pattern.permute.xlu0 0
      %3203 = vperm.xlu0 %3202, %v2570
      %v3204 = vpop.permute.xlu0 %3203
      %3207 = vset.pattern.permute.xlu0 0
      %3208 = vperm.xlu0 %3207, %v2572
      %v3209 = vpop.permute.xlu0 %3208
      %3212 = vset.pattern.permute.xlu0 0
      %3213 = vperm.xlu0 %3212, %v2574
      %v3214 = vpop.permute.xlu0 %3213
      %3217 = vset.pattern.permute.xlu0 0
      %3218 = vperm.xlu0 %3217, %v2576
      %v3219 = vpop.permute.xlu0 %3218
      %3222 = vset.pattern.permute.xlu0 0
      %3223 = vperm.xlu0 %3222, %v2578
      %v3224 = vpop.permute.xlu0 %3223
      %3227 = vset.pattern.permute.xlu0 0
      %3228 = vperm.xlu0 %3227, %v2580
      %v3229 = vpop.permute.xlu0 %3228
      %3232 = vset.pattern.permute.xlu0 0
      %3233 = vperm.xlu0 %3232, %v2582
      %v3234 = vpop.permute.xlu0 %3233
      %3237 = vset.pattern.permute.xlu0 0
      %3238 = vperm.xlu0 %3237, %v2584
      %v3239 = vpop.permute.xlu0 %3238
      %3242 = vset.pattern.permute.xlu0 0
      %3243 = vperm.xlu0 %3242, %v2586
      %v3244 = vpop.permute.xlu0 %3243
      %3247 = vset.pattern.permute.xlu0 0
      %3248 = vperm.xlu0 %3247, %v2588
      %v3249 = vpop.permute.xlu0 %3248
      %3252 = vset.pattern.permute.xlu0 0
      %3253 = vperm.xlu0 %3252, %v2590
      %v3254 = vpop.permute.xlu0 %3253
      %3257 = vset.pattern.permute.xlu0 0
      %3258 = vperm.xlu0 %3257, %v2592
      %v3259 = vpop.permute.xlu0 %3258
      %3262 = vset.pattern.permute.xlu0 0
      %3263 = vperm.xlu0 %3262, %v2594
      %v3264 = vpop.permute.xlu0 %3263
      %3267 = vset.pattern.permute.xlu0 0
      %3268 = vperm.xlu0 %3267, %v2596
      %v3269 = vpop.permute.xlu0 %3268
      %v3271 = vmul.f32 %v3114, %v3079
      %v3272 = vmul.f32 %v3119, %v3080
      %v3273 = vmul.f32 %v3124, %v3081
      %v3274 = vmul.f32 %v3129, %v3082
      %v3275 = vmul.f32 %v3134, %v3083
      %v3276 = vmul.f32 %v3139, %v3084
      %v3277 = vmul.f32 %v3144, %v3085
      %v3278 = vmul.f32 %v3149, %v3086
      %v3279 = vmul.f32 %v3154, %v3087
      %v3280 = vmul.f32 %v3159, %v3088
      %v3281 = vmul.f32 %v3164, %v3089
      %v3282 = vmul.f32 %v3169, %v3090
      %v3283 = vmul.f32 %v3174, %v3091
      %v3284 = vmul.f32 %v3179, %v3092
      %v3285 = vmul.f32 %v3184, %v3093
      %v3286 = vmul.f32 %v3189, %v3094
      %v3287 = vmul.f32 %v3194, %v3095
      %v3288 = vmul.f32 %v3199, %v3096
      %v3289 = vmul.f32 %v3204, %v3097
      %v3290 = vmul.f32 %v3209, %v3098
      %v3291 = vmul.f32 %v3214, %v3099
      %v3292 = vmul.f32 %v3219, %v3100
      %v3293 = vmul.f32 %v3224, %v3101
      %v3294 = vmul.f32 %v3229, %v3102
      %v3295 = vmul.f32 %v3234, %v3103
      %v3296 = vmul.f32 %v3239, %v3104
      %v3297 = vmul.f32 %v3244, %v3105
      %v3298 = vmul.f32 %v3249, %v3106
      %v3299 = vmul.f32 %v3254, %v3107
      %v3300 = vmul.f32 %v3259, %v3108
      %v3301 = vmul.f32 %v3264, %v3109
      %v3302 = vmul.f32 %v3269, %v3110
      %3311 = vrot.lane.b32.xlu0 %v559, 64
      %v3312 = vpop.permute.xlu0 %3311
      %3313 = vrot.lane.b32.xlu0 %v560, 64
      %v3314 = vpop.permute.xlu0 %3313
      %3315 = vrot.lane.b32.xlu0 %v561, 64
      %v3316 = vpop.permute.xlu0 %3315
      %3317 = vrot.lane.b32.xlu0 %v562, 64
      %v3318 = vpop.permute.xlu0 %3317
      %3319 = vrot.lane.b32.xlu0 %v563, 64
      %v3320 = vpop.permute.xlu0 %3319
      %3321 = vrot.lane.b32.xlu0 %v564, 64
      %v3322 = vpop.permute.xlu0 %3321
      %3323 = vrot.lane.b32.xlu0 %v565, 64
      %v3324 = vpop.permute.xlu0 %3323
      %3325 = vrot.lane.b32.xlu0 %v566, 64
      %v3326 = vpop.permute.xlu0 %3325
      %v3336 = vsel %vm567, %v2790, 0
      %v3339 = vsel %vm567, %v2792, 0
      %v3342 = vsel %vm567, %v2794, 0
      %v3345 = vsel %vm567, %v2796, 0
      %v3348 = vsel %vm567, %v2798, 0
      %v3351 = vsel %vm567, %v2800, 0
      %v3354 = vsel %vm567, %v2802, 0
      %v3357 = vsel %vm567, %v2804, 0
      %v3360 = vsel %vm567, %v2806, 0
      %v3363 = vsel %vm567, %v2808, 0
      %v3366 = vsel %vm567, %v2810, 0
      %v3369 = vsel %vm567, %v2812, 0
      %v3372 = vsel %vm567, %v2814, 0
      %v3375 = vsel %vm567, %v2816, 0
      %v3378 = vsel %vm567, %v2818, 0
      %v3381 = vsel %vm567, %v2820, 0
      %v3384 = vsel %vm567, %v2822, 0
      %v3387 = vsel %vm567, %v2824, 0
      %v3390 = vsel %vm567, %v2826, 0
      %v3393 = vsel %vm567, %v2828, 0
      %v3396 = vsel %vm567, %v2830, 0
      %v3399 = vsel %vm567, %v2832, 0
      %v3402 = vsel %vm567, %v2834, 0
      %v3405 = vsel %vm567, %v2836, 0
      %v3408 = vsel %vm567, %v2838, 0
      %v3411 = vsel %vm567, %v2840, 0
      %v3414 = vsel %vm567, %v2842, 0
      %v3417 = vsel %vm567, %v2844, 0
      %v3420 = vsel %vm567, %v2846, 0
      %v3423 = vsel %vm567, %v2848, 0
      %v3426 = vsel %vm567, %v2850, 0
      %v3429 = vsel %vm567, %v2852, 0
      %3431 = vmatpush.msra.mxu0 0.0
      %3432 = vmatpush.msra.mxu0 0.0
      %3433 = vmatpush.msra.mxu0 0.0
      %3434 = vmatpush.msra.mxu0 0.0
      %3435 = vmatpush.msra.mxu0 0.0
      %3436 = vmatpush.msra.mxu0 0.0
      %3437 = vmatpush.msra.mxu0 0.0
      %3438 = vmatpush.msra.mxu0 0.0
      %3439 = vmatpush.msra.mxu0 %v3326
      %3440 = vmatpush.msra.mxu0 %v3324
      %3441 = vmatpush.msra.mxu0 %v3322
      %3442 = vmatpush.msra.mxu0 %v3320
      %3443 = vmatpush.msra.mxu0 %v3318
      %3444 = vmatpush.msra.mxu0 %v3316
      %3445 = vmatpush.msra.mxu0 %v3314
      %3446 = vmatpush.msra.mxu0 %v3312
      %3447 = vmatmul.f32.gmra.mxu0 %v3336
      %v3448 = vpop.f32.mrf.mxu0
      %v3449 = vadd.f32 0.0, %v3448
      %3450 = vmatmul.f32.gmra.mxu0 %v3339
      %v3451 = vpop.f32.mrf.mxu0
      %v3452 = vadd.f32 0.0, %v3451
      %3453 = vmatmul.f32.gmra.mxu0 %v3342
      %v3454 = vpop.f32.mrf.mxu0
      %v3455 = vadd.f32 0.0, %v3454
      %3456 = vmatmul.f32.gmra.mxu0 %v3345
      %v3457 = vpop.f32.mrf.mxu0
      %v3458 = vadd.f32 0.0, %v3457
      %3459 = vmatmul.f32.gmra.mxu0 %v3348
      %v3460 = vpop.f32.mrf.mxu0
      %v3461 = vadd.f32 0.0, %v3460
      %3462 = vmatmul.f32.gmra.mxu0 %v3351
      %v3463 = vpop.f32.mrf.mxu0
      %v3464 = vadd.f32 0.0, %v3463
      %3465 = vmatmul.f32.gmra.mxu0 %v3354
      %v3466 = vpop.f32.mrf.mxu0
      %v3467 = vadd.f32 0.0, %v3466
      %3468 = vmatmul.f32.gmra.mxu0 %v3357
      %v3469 = vpop.f32.mrf.mxu0
      %v3470 = vadd.f32 0.0, %v3469
      %3471 = vmatmul.f32.gmra.mxu0 %v3360
      %v3472 = vpop.f32.mrf.mxu0
      %v3473 = vadd.f32 0.0, %v3472
      %3474 = vmatmul.f32.gmra.mxu0 %v3363
      %v3475 = vpop.f32.mrf.mxu0
      %v3476 = vadd.f32 0.0, %v3475
      %3477 = vmatmul.f32.gmra.mxu0 %v3366
      %v3478 = vpop.f32.mrf.mxu0
      %v3479 = vadd.f32 0.0, %v3478
      %3480 = vmatmul.f32.gmra.mxu0 %v3369
      %v3481 = vpop.f32.mrf.mxu0
      %v3482 = vadd.f32 0.0, %v3481
      %3483 = vmatmul.f32.gmra.mxu0 %v3372
      %v3484 = vpop.f32.mrf.mxu0
      %v3485 = vadd.f32 0.0, %v3484
      %3486 = vmatmul.f32.gmra.mxu0 %v3375
      %v3487 = vpop.f32.mrf.mxu0
      %v3488 = vadd.f32 0.0, %v3487
      %3489 = vmatmul.f32.gmra.mxu0 %v3378
      %v3490 = vpop.f32.mrf.mxu0
      %v3491 = vadd.f32 0.0, %v3490
      %3492 = vmatmul.f32.gmra.mxu0 %v3381
      %v3493 = vpop.f32.mrf.mxu0
      %v3494 = vadd.f32 0.0, %v3493
      %3495 = vmatmul.f32.gmra.mxu0 %v3384
      %v3496 = vpop.f32.mrf.mxu0
      %v3497 = vadd.f32 0.0, %v3496
      %3498 = vmatmul.f32.gmra.mxu0 %v3387
      %v3499 = vpop.f32.mrf.mxu0
      %v3500 = vadd.f32 0.0, %v3499
      %3501 = vmatmul.f32.gmra.mxu0 %v3390
      %v3502 = vpop.f32.mrf.mxu0
      %v3503 = vadd.f32 0.0, %v3502
      %3504 = vmatmul.f32.gmra.mxu0 %v3393
      %v3505 = vpop.f32.mrf.mxu0
      %v3506 = vadd.f32 0.0, %v3505
      %3507 = vmatmul.f32.gmra.mxu0 %v3396
      %v3508 = vpop.f32.mrf.mxu0
      %v3509 = vadd.f32 0.0, %v3508
      %3510 = vmatmul.f32.gmra.mxu0 %v3399
      %v3511 = vpop.f32.mrf.mxu0
      %v3512 = vadd.f32 0.0, %v3511
      %3513 = vmatmul.f32.gmra.mxu0 %v3402
      %v3514 = vpop.f32.mrf.mxu0
      %v3515 = vadd.f32 0.0, %v3514
      %3516 = vmatmul.f32.gmra.mxu0 %v3405
      %v3517 = vpop.f32.mrf.mxu0
      %v3518 = vadd.f32 0.0, %v3517
      %3519 = vmatmul.f32.gmra.mxu0 %v3408
      %v3520 = vpop.f32.mrf.mxu0
      %v3521 = vadd.f32 0.0, %v3520
      %3522 = vmatmul.f32.gmra.mxu0 %v3411
      %v3523 = vpop.f32.mrf.mxu0
      %v3524 = vadd.f32 0.0, %v3523
      %3525 = vmatmul.f32.gmra.mxu0 %v3414
      %v3526 = vpop.f32.mrf.mxu0
      %v3527 = vadd.f32 0.0, %v3526
      %3528 = vmatmul.f32.gmra.mxu0 %v3417
      %v3529 = vpop.f32.mrf.mxu0
      %v3530 = vadd.f32 0.0, %v3529
      %3531 = vmatmul.f32.gmra.mxu0 %v3420
      %v3532 = vpop.f32.mrf.mxu0
      %v3533 = vadd.f32 0.0, %v3532
      %3534 = vmatmul.f32.gmra.mxu0 %v3423
      %v3535 = vpop.f32.mrf.mxu0
      %v3536 = vadd.f32 0.0, %v3535
      %3537 = vmatmul.f32.gmra.mxu0 %v3426
      %v3538 = vpop.f32.mrf.mxu0
      %v3539 = vadd.f32 0.0, %v3538
      %3540 = vmatmul.f32.gmra.mxu0 %v3429
      %v3541 = vpop.f32.mrf.mxu0
      %v3542 = vadd.f32 0.0, %v3541
      %3543 = vdwg.mxu0
      %v3544 = vadd.f32 %v3271, %v3449
      %v3545 = vadd.f32 %v3272, %v3452
      %v3546 = vadd.f32 %v3273, %v3455
      %v3547 = vadd.f32 %v3274, %v3458
      %v3548 = vadd.f32 %v3275, %v3461
      %v3549 = vadd.f32 %v3276, %v3464
      %v3550 = vadd.f32 %v3277, %v3467
      %v3551 = vadd.f32 %v3278, %v3470
      %v3552 = vadd.f32 %v3279, %v3473
      %v3553 = vadd.f32 %v3280, %v3476
      %v3554 = vadd.f32 %v3281, %v3479
      %v3555 = vadd.f32 %v3282, %v3482
      %v3556 = vadd.f32 %v3283, %v3485
      %v3557 = vadd.f32 %v3284, %v3488
      %v3558 = vadd.f32 %v3285, %v3491
      %v3559 = vadd.f32 %v3286, %v3494
      %v3560 = vadd.f32 %v3287, %v3497
      %v3561 = vadd.f32 %v3288, %v3500
      %v3562 = vadd.f32 %v3289, %v3503
      %v3563 = vadd.f32 %v3290, %v3506
      %v3564 = vadd.f32 %v3291, %v3509
      %v3565 = vadd.f32 %v3292, %v3512
      %v3566 = vadd.f32 %v3293, %v3515
      %v3567 = vadd.f32 %v3294, %v3518
      %v3568 = vadd.f32 %v3295, %v3521
      %v3569 = vadd.f32 %v3296, %v3524
      %v3570 = vadd.f32 %v3297, %v3527
      %v3571 = vadd.f32 %v3298, %v3530
      %v3572 = vadd.f32 %v3299, %v3533
      %v3573 = vadd.f32 %v3300, %v3536
      %v3574 = vadd.f32 %v3301, %v3539
      %v3575 = vadd.f32 %v3302, %v3542
      %3576 = vst.msk [vmem:[%s3078] sm:$0xff] %vm567, %v3544
      %3577 = vst.msk [vmem:[%s3078 + $0x8] sm:$0xff] %vm567, %v3545
      %3578 = vst.msk [vmem:[%s3078 + $0x10] sm:$0xff] %vm567, %v3546
      %3579 = vst.msk [vmem:[%s3078 + $0x18] sm:$0xff] %vm567, %v3547
      %3580 = vst.msk [vmem:[%s3078 + $0x20] sm:$0xff] %vm567, %v3548
      %3581 = vst.msk [vmem:[%s3078 + $0x28] sm:$0xff] %vm567, %v3549
      %3582 = vst.msk [vmem:[%s3078 + $0x30] sm:$0xff] %vm567, %v3550
      %3583 = vst.msk [vmem:[%s3078 + $0x38] sm:$0xff] %vm567, %v3551
      %3584 = vst.msk [vmem:[%s3078 + $0x40] sm:$0xff] %vm567, %v3552
      %3585 = vst.msk [vmem:[%s3078 + $0x48] sm:$0xff] %vm567, %v3553
      %3586 = vst.msk [vmem:[%s3078 + $0x50] sm:$0xff] %vm567, %v3554
      %3587 = vst.msk [vmem:[%s3078 + $0x58] sm:$0xff] %vm567, %v3555
      %3588 = vst.msk [vmem:[%s3078 + $0x60] sm:$0xff] %vm567, %v3556
      %3589 = vst.msk [vmem:[%s3078 + $0x68] sm:$0xff] %vm567, %v3557
      %3590 = vst.msk [vmem:[%s3078 + $0x70] sm:$0xff] %vm567, %v3558
      %3591 = vst.msk [vmem:[%s3078 + $0x78] sm:$0xff] %vm567, %v3559
      %3592 = vst.msk [vmem:[%s3078 + $0x80] sm:$0xff] %vm567, %v3560
      %3593 = vst.msk [vmem:[%s3078 + $0x88] sm:$0xff] %vm567, %v3561
      %3594 = vst.msk [vmem:[%s3078 + $0x90] sm:$0xff] %vm567, %v3562
      %3595 = vst.msk [vmem:[%s3078 + $0x98] sm:$0xff] %vm567, %v3563
      %3596 = vst.msk [vmem:[%s3078 + $0xa0] sm:$0xff] %vm567, %v3564
      %3597 = vst.msk [vmem:[%s3078 + $0xa8] sm:$0xff] %vm567, %v3565
      %3598 = vst.msk [vmem:[%s3078 + $0xb0] sm:$0xff] %vm567, %v3566
      %3599 = vst.msk [vmem:[%s3078 + $0xb8] sm:$0xff] %vm567, %v3567
      %3600 = vst.msk [vmem:[%s3078 + $0xc0] sm:$0xff] %vm567, %v3568
      %3601 = vst.msk [vmem:[%s3078 + $0xc8] sm:$0xff] %vm567, %v3569
      %3602 = vst.msk [vmem:[%s3078 + $0xd0] sm:$0xff] %vm567, %v3570
      %3603 = vst.msk [vmem:[%s3078 + $0xd8] sm:$0xff] %vm567, %v3571
      %3604 = vst.msk [vmem:[%s3078 + $0xe0] sm:$0xff] %vm567, %v3572
      %3605 = vst.msk [vmem:[%s3078 + $0xe8] sm:$0xff] %vm567, %v3573
      %3606 = vst.msk [vmem:[%s3078 + $0xf0] sm:$0xff] %vm567, %v3574
      %3607 = vst.msk [vmem:[%s3078 + $0xf8] sm:$0xff] %vm567, %v3575
      %3608 = vst.msk [vmem:[%s2340] sm:$0xff] %vm1505, %v2469
      %3609 = vst.msk [vmem:[%s2340 + $0x8] sm:$0xff] %vm1505, %v2470
      %3610 = vst.msk [vmem:[%s2340 + $0x10] sm:$0xff] %vm1505, %v2471
      %3611 = vst.msk [vmem:[%s2340 + $0x18] sm:$0xff] %vm1505, %v2472
      %3612 = vst.msk [vmem:[%s2340 + $0x20] sm:$0xff] %vm1505, %v2473
      %3613 = vst.msk [vmem:[%s2340 + $0x28] sm:$0xff] %vm1505, %v2474
      %3614 = vst.msk [vmem:[%s2340 + $0x30] sm:$0xff] %vm1505, %v2475
      %3615 = vst.msk [vmem:[%s2340 + $0x38] sm:$0xff] %vm1505, %v2476
      %3616 = vst.msk [vmem:[%s2340 + $0x40] sm:$0xff] %vm1505, %v2477
      %3617 = vst.msk [vmem:[%s2340 + $0x48] sm:$0xff] %vm1505, %v2478
      %3618 = vst.msk [vmem:[%s2340 + $0x50] sm:$0xff] %vm1505, %v2479
      %3619 = vst.msk [vmem:[%s2340 + $0x58] sm:$0xff] %vm1505, %v2480
      %3620 = vst.msk [vmem:[%s2340 + $0x60] sm:$0xff] %vm1505, %v2481
      %3621 = vst.msk [vmem:[%s2340 + $0x68] sm:$0xff] %vm1505, %v2482
      %3622 = vst.msk [vmem:[%s2340 + $0x70] sm:$0xff] %vm1505, %v2483
      %3623 = vst.msk [vmem:[%s2340 + $0x78] sm:$0xff] %vm1505, %v2484
      %3624 = vst.msk [vmem:[%s2340 + $0x80] sm:$0xff] %vm1505, %v2485
      %3625 = vst.msk [vmem:[%s2340 + $0x88] sm:$0xff] %vm1505, %v2486
      %3626 = vst.msk [vmem:[%s2340 + $0x90] sm:$0xff] %vm1505, %v2487
      %3627 = vst.msk [vmem:[%s2340 + $0x98] sm:$0xff] %vm1505, %v2488
      %3628 = vst.msk [vmem:[%s2340 + $0xa0] sm:$0xff] %vm1505, %v2489
      %3629 = vst.msk [vmem:[%s2340 + $0xa8] sm:$0xff] %vm1505, %v2490
      %3630 = vst.msk [vmem:[%s2340 + $0xb0] sm:$0xff] %vm1505, %v2491
      %3631 = vst.msk [vmem:[%s2340 + $0xb8] sm:$0xff] %vm1505, %v2492
      %3632 = vst.msk [vmem:[%s2340 + $0xc0] sm:$0xff] %vm1505, %v2493
      %3633 = vst.msk [vmem:[%s2340 + $0xc8] sm:$0xff] %vm1505, %v2494
      %3634 = vst.msk [vmem:[%s2340 + $0xd0] sm:$0xff] %vm1505, %v2495
      %3635 = vst.msk [vmem:[%s2340 + $0xd8] sm:$0xff] %vm1505, %v2496
      %3636 = vst.msk [vmem:[%s2340 + $0xe0] sm:$0xff] %vm1505, %v2497
      %3637 = vst.msk [vmem:[%s2340 + $0xe8] sm:$0xff] %vm1505, %v2498
      %3638 = vst.msk [vmem:[%s2340 + $0xf0] sm:$0xff] %vm1505, %v2499
      %3639 = vst.msk [vmem:[%s2340 + $0xf8] sm:$0xff] %vm1505, %v2500
      // Predicated region
      $region37: #{conv_cross_attention_forward.13} parent=31 // pred_check
        %p3640 = pneg %p289
      $region38: #{conv_cross_attention_forward.13} parent=31 // pred_check_branch
        %3642 = sbr.rel (%p3640) target = $region40
      $region39: #{conv_cross_attention_forward.13} parent=31 // pred_region
        %v3643 = vld [vmem:[#allocation3] sm:$0xff]
        %v3644 = vld [vmem:[#allocation3 + $0x8] sm:$0xff]
        %v3645 = vld [vmem:[#allocation3 + $0x10] sm:$0xff]
        %v3646 = vld [vmem:[#allocation3 + $0x18] sm:$0xff]
        %v3647 = vld [vmem:[#allocation3 + $0x20] sm:$0xff]
        %v3648 = vld [vmem:[#allocation3 + $0x28] sm:$0xff]
        %v3649 = vld [vmem:[#allocation3 + $0x30] sm:$0xff]
        %v3650 = vld [vmem:[#allocation3 + $0x38] sm:$0xff]
        %v3651 = vld [vmem:[#allocation3 + $0x40] sm:$0xff]
        %v3652 = vld [vmem:[#allocation3 + $0x48] sm:$0xff]
        %v3653 = vld [vmem:[#allocation3 + $0x50] sm:$0xff]
        %v3654 = vld [vmem:[#allocation3 + $0x58] sm:$0xff]
        %v3655 = vld [vmem:[#allocation3 + $0x60] sm:$0xff]
        %v3656 = vld [vmem:[#allocation3 + $0x68] sm:$0xff]
        %v3657 = vld [vmem:[#allocation3 + $0x70] sm:$0xff]
        %v3658 = vld [vmem:[#allocation3 + $0x78] sm:$0xff]
        %v3659 = vld [vmem:[#allocation3 + $0x80] sm:$0xff]
        %v3660 = vld [vmem:[#allocation3 + $0x88] sm:$0xff]
        %v3661 = vld [vmem:[#allocation3 + $0x90] sm:$0xff]
        %v3662 = vld [vmem:[#allocation3 + $0x98] sm:$0xff]
        %v3663 = vld [vmem:[#allocation3 + $0xa0] sm:$0xff]
        %v3664 = vld [vmem:[#allocation3 + $0xa8] sm:$0xff]
        %v3665 = vld [vmem:[#allocation3 + $0xb0] sm:$0xff]
        %v3666 = vld [vmem:[#allocation3 + $0xb8] sm:$0xff]
        %v3667 = vld [vmem:[#allocation3 + $0xc0] sm:$0xff]
        %v3668 = vld [vmem:[#allocation3 + $0xc8] sm:$0xff]
        %v3669 = vld [vmem:[#allocation3 + $0xd0] sm:$0xff]
        %v3670 = vld [vmem:[#allocation3 + $0xd8] sm:$0xff]
        %v3671 = vld [vmem:[#allocation3 + $0xe0] sm:$0xff]
        %v3672 = vld [vmem:[#allocation3 + $0xe8] sm:$0xff]
        %v3673 = vld [vmem:[#allocation3 + $0xf0] sm:$0xff]
        %v3674 = vld [vmem:[#allocation3 + $0xf8] sm:$0xff]
        %v3675 = vrcp.pop %v3643
        %v3676 = vrcp.pop %v3644
        %v3677 = vrcp.pop %v3645
        %v3678 = vrcp.pop %v3646
        %v3679 = vrcp.pop %v3647
        %v3680 = vrcp.pop %v3648
        %v3681 = vrcp.pop %v3649
        %v3682 = vrcp.pop %v3650
        %v3683 = vrcp.pop %v3651
        %v3684 = vrcp.pop %v3652
        %v3685 = vrcp.pop %v3653
        %v3686 = vrcp.pop %v3654
        %v3687 = vrcp.pop %v3655
        %v3688 = vrcp.pop %v3656
        %v3689 = vrcp.pop %v3657
        %v3690 = vrcp.pop %v3658
        %v3691 = vrcp.pop %v3659
        %v3692 = vrcp.pop %v3660
        %v3693 = vrcp.pop %v3661
        %v3694 = vrcp.pop %v3662
        %v3695 = vrcp.pop %v3663
        %v3696 = vrcp.pop %v3664
        %v3697 = vrcp.pop %v3665
        %v3698 = vrcp.pop %v3666
        %v3699 = vrcp.pop %v3667
        %v3700 = vrcp.pop %v3668
        %v3701 = vrcp.pop %v3669
        %v3702 = vrcp.pop %v3670
        %v3703 = vrcp.pop %v3671
        %v3704 = vrcp.pop %v3672
        %v3705 = vrcp.pop %v3673
        %v3706 = vrcp.pop %v3674
        %v3707 = vld [vmem:[#allocation4] sm:$0xff]
        %v3708 = vld [vmem:[#allocation4 + $0x8] sm:$0xff]
        %v3709 = vld [vmem:[#allocation4 + $0x10] sm:$0xff]
        %v3710 = vld [vmem:[#allocation4 + $0x18] sm:$0xff]
        %v3711 = vld [vmem:[#allocation4 + $0x20] sm:$0xff]
        %v3712 = vld [vmem:[#allocation4 + $0x28] sm:$0xff]
        %v3713 = vld [vmem:[#allocation4 + $0x30] sm:$0xff]
        %v3714 = vld [vmem:[#allocation4 + $0x38] sm:$0xff]
        %v3715 = vld [vmem:[#allocation4 + $0x40] sm:$0xff]
        %v3716 = vld [vmem:[#allocation4 + $0x48] sm:$0xff]
        %v3717 = vld [vmem:[#allocation4 + $0x50] sm:$0xff]
        %v3718 = vld [vmem:[#allocation4 + $0x58] sm:$0xff]
        %v3719 = vld [vmem:[#allocation4 + $0x60] sm:$0xff]
        %v3720 = vld [vmem:[#allocation4 + $0x68] sm:$0xff]
        %v3721 = vld [vmem:[#allocation4 + $0x70] sm:$0xff]
        %v3722 = vld [vmem:[#allocation4 + $0x78] sm:$0xff]
        %v3723 = vld [vmem:[#allocation4 + $0x80] sm:$0xff]
        %v3724 = vld [vmem:[#allocation4 + $0x88] sm:$0xff]
        %v3725 = vld [vmem:[#allocation4 + $0x90] sm:$0xff]
        %v3726 = vld [vmem:[#allocation4 + $0x98] sm:$0xff]
        %v3727 = vld [vmem:[#allocation4 + $0xa0] sm:$0xff]
        %v3728 = vld [vmem:[#allocation4 + $0xa8] sm:$0xff]
        %v3729 = vld [vmem:[#allocation4 + $0xb0] sm:$0xff]
        %v3730 = vld [vmem:[#allocation4 + $0xb8] sm:$0xff]
        %v3731 = vld [vmem:[#allocation4 + $0xc0] sm:$0xff]
        %v3732 = vld [vmem:[#allocation4 + $0xc8] sm:$0xff]
        %v3733 = vld [vmem:[#allocation4 + $0xd0] sm:$0xff]
        %v3734 = vld [vmem:[#allocation4 + $0xd8] sm:$0xff]
        %v3735 = vld [vmem:[#allocation4 + $0xe0] sm:$0xff]
        %v3736 = vld [vmem:[#allocation4 + $0xe8] sm:$0xff]
        %v3737 = vld [vmem:[#allocation4 + $0xf0] sm:$0xff]
        %v3738 = vld [vmem:[#allocation4 + $0xf8] sm:$0xff]
        %3740 = vset.pattern.permute.xlu0 0
        %3741 = vperm.xlu0 %3740, %v3675
        %v3742 = vpop.permute.xlu0 %3741
        %3745 = vset.pattern.permute.xlu0 0
        %3746 = vperm.xlu0 %3745, %v3676
        %v3747 = vpop.permute.xlu0 %3746
        %3750 = vset.pattern.permute.xlu0 0
        %3751 = vperm.xlu0 %3750, %v3677
        %v3752 = vpop.permute.xlu0 %3751
        %3755 = vset.pattern.permute.xlu0 0
        %3756 = vperm.xlu0 %3755, %v3678
        %v3757 = vpop.permute.xlu0 %3756
        %3760 = vset.pattern.permute.xlu0 0
        %3761 = vperm.xlu0 %3760, %v3679
        %v3762 = vpop.permute.xlu0 %3761
        %3765 = vset.pattern.permute.xlu0 0
        %3766 = vperm.xlu0 %3765, %v3680
        %v3767 = vpop.permute.xlu0 %3766
        %3770 = vset.pattern.permute.xlu0 0
        %3771 = vperm.xlu0 %3770, %v3681
        %v3772 = vpop.permute.xlu0 %3771
        %3775 = vset.pattern.permute.xlu0 0
        %3776 = vperm.xlu0 %3775, %v3682
        %v3777 = vpop.permute.xlu0 %3776
        %3780 = vset.pattern.permute.xlu0 0
        %3781 = vperm.xlu0 %3780, %v3683
        %v3782 = vpop.permute.xlu0 %3781
        %3785 = vset.pattern.permute.xlu0 0
        %3786 = vperm.xlu0 %3785, %v3684
        %v3787 = vpop.permute.xlu0 %3786
        %3790 = vset.pattern.permute.xlu0 0
        %3791 = vperm.xlu0 %3790, %v3685
        %v3792 = vpop.permute.xlu0 %3791
        %3795 = vset.pattern.permute.xlu0 0
        %3796 = vperm.xlu0 %3795, %v3686
        %v3797 = vpop.permute.xlu0 %3796
        %3800 = vset.pattern.permute.xlu0 0
        %3801 = vperm.xlu0 %3800, %v3687
        %v3802 = vpop.permute.xlu0 %3801
        %3805 = vset.pattern.permute.xlu0 0
        %3806 = vperm.xlu0 %3805, %v3688
        %v3807 = vpop.permute.xlu0 %3806
        %3810 = vset.pattern.permute.xlu0 0
        %3811 = vperm.xlu0 %3810, %v3689
        %v3812 = vpop.permute.xlu0 %3811
        %3815 = vset.pattern.permute.xlu0 0
        %3816 = vperm.xlu0 %3815, %v3690
        %v3817 = vpop.permute.xlu0 %3816
        %3820 = vset.pattern.permute.xlu0 0
        %3821 = vperm.xlu0 %3820, %v3691
        %v3822 = vpop.permute.xlu0 %3821
        %3825 = vset.pattern.permute.xlu0 0
        %3826 = vperm.xlu0 %3825, %v3692
        %v3827 = vpop.permute.xlu0 %3826
        %3830 = vset.pattern.permute.xlu0 0
        %3831 = vperm.xlu0 %3830, %v3693
        %v3832 = vpop.permute.xlu0 %3831
        %3835 = vset.pattern.permute.xlu0 0
        %3836 = vperm.xlu0 %3835, %v3694
        %v3837 = vpop.permute.xlu0 %3836
        %3840 = vset.pattern.permute.xlu0 0
        %3841 = vperm.xlu0 %3840, %v3695
        %v3842 = vpop.permute.xlu0 %3841
        %3845 = vset.pattern.permute.xlu0 0
        %3846 = vperm.xlu0 %3845, %v3696
        %v3847 = vpop.permute.xlu0 %3846
        %3850 = vset.pattern.permute.xlu0 0
        %3851 = vperm.xlu0 %3850, %v3697
        %v3852 = vpop.permute.xlu0 %3851
        %3855 = vset.pattern.permute.xlu0 0
        %3856 = vperm.xlu0 %3855, %v3698
        %v3857 = vpop.permute.xlu0 %3856
        %3860 = vset.pattern.permute.xlu0 0
        %3861 = vperm.xlu0 %3860, %v3699
        %v3862 = vpop.permute.xlu0 %3861
        %3865 = vset.pattern.permute.xlu0 0
        %3866 = vperm.xlu0 %3865, %v3700
        %v3867 = vpop.permute.xlu0 %3866
        %3870 = vset.pattern.permute.xlu0 0
        %3871 = vperm.xlu0 %3870, %v3701
        %v3872 = vpop.permute.xlu0 %3871
        %3875 = vset.pattern.permute.xlu0 0
        %3876 = vperm.xlu0 %3875, %v3702
        %v3877 = vpop.permute.xlu0 %3876
        %3880 = vset.pattern.permute.xlu0 0
        %3881 = vperm.xlu0 %3880, %v3703
        %v3882 = vpop.permute.xlu0 %3881
        %3885 = vset.pattern.permute.xlu0 0
        %3886 = vperm.xlu0 %3885, %v3704
        %v3887 = vpop.permute.xlu0 %3886
        %3890 = vset.pattern.permute.xlu0 0
        %3891 = vperm.xlu0 %3890, %v3705
        %v3892 = vpop.permute.xlu0 %3891
        %3895 = vset.pattern.permute.xlu0 0
        %3896 = vperm.xlu0 %3895, %v3706
        %v3897 = vpop.permute.xlu0 %3896
        %v3899 = vmul.f32 %v3707, %v3742
        %v3900 = vmul.f32 %v3708, %v3747
        %v3901 = vmul.f32 %v3709, %v3752
        %v3902 = vmul.f32 %v3710, %v3757
        %v3903 = vmul.f32 %v3711, %v3762
        %v3904 = vmul.f32 %v3712, %v3767
        %v3905 = vmul.f32 %v3713, %v3772
        %v3906 = vmul.f32 %v3714, %v3777
        %v3907 = vmul.f32 %v3715, %v3782
        %v3908 = vmul.f32 %v3716, %v3787
        %v3909 = vmul.f32 %v3717, %v3792
        %v3910 = vmul.f32 %v3718, %v3797
        %v3911 = vmul.f32 %v3719, %v3802
        %v3912 = vmul.f32 %v3720, %v3807
        %v3913 = vmul.f32 %v3721, %v3812
        %v3914 = vmul.f32 %v3722, %v3817
        %v3915 = vmul.f32 %v3723, %v3822
        %v3916 = vmul.f32 %v3724, %v3827
        %v3917 = vmul.f32 %v3725, %v3832
        %v3918 = vmul.f32 %v3726, %v3837
        %v3919 = vmul.f32 %v3727, %v3842
        %v3920 = vmul.f32 %v3728, %v3847
        %v3921 = vmul.f32 %v3729, %v3852
        %v3922 = vmul.f32 %v3730, %v3857
        %v3923 = vmul.f32 %v3731, %v3862
        %v3924 = vmul.f32 %v3732, %v3867
        %v3925 = vmul.f32 %v3733, %v3872
        %v3926 = vmul.f32 %v3734, %v3877
        %v3927 = vmul.f32 %v3735, %v3882
        %v3928 = vmul.f32 %v3736, %v3887
        %v3929 = vmul.f32 %v3737, %v3892
        %v3930 = vmul.f32 %v3738, %v3897
        %v3931 = vld [vmem:[%s2853] sm:$0xff]
        %v3932 = vld [vmem:[%s2853 + $0x8] sm:$0xff]
        %v3933 = vld [vmem:[%s2853 + $0x10] sm:$0xff]
        %v3934 = vld [vmem:[%s2853 + $0x18] sm:$0xff]
        %v3935 = vld [vmem:[%s2853 + $0x20] sm:$0xff]
        %v3936 = vld [vmem:[%s2853 + $0x28] sm:$0xff]
        %v3937 = vld [vmem:[%s2853 + $0x30] sm:$0xff]
        %v3938 = vld [vmem:[%s2853 + $0x38] sm:$0xff]
        %v3939 = vld [vmem:[%s2853 + $0x40] sm:$0xff]
        %v3940 = vld [vmem:[%s2853 + $0x48] sm:$0xff]
        %v3941 = vld [vmem:[%s2853 + $0x50] sm:$0xff]
        %v3942 = vld [vmem:[%s2853 + $0x58] sm:$0xff]
        %v3943 = vld [vmem:[%s2853 + $0x60] sm:$0xff]
        %v3944 = vld [vmem:[%s2853 + $0x68] sm:$0xff]
        %v3945 = vld [vmem:[%s2853 + $0x70] sm:$0xff]
        %v3946 = vld [vmem:[%s2853 + $0x78] sm:$0xff]
        %v3947 = vld [vmem:[%s2853 + $0x80] sm:$0xff]
        %v3948 = vld [vmem:[%s2853 + $0x88] sm:$0xff]
        %v3949 = vld [vmem:[%s2853 + $0x90] sm:$0xff]
        %v3950 = vld [vmem:[%s2853 + $0x98] sm:$0xff]
        %v3951 = vld [vmem:[%s2853 + $0xa0] sm:$0xff]
        %v3952 = vld [vmem:[%s2853 + $0xa8] sm:$0xff]
        %v3953 = vld [vmem:[%s2853 + $0xb0] sm:$0xff]
        %v3954 = vld [vmem:[%s2853 + $0xb8] sm:$0xff]
        %v3955 = vld [vmem:[%s2853 + $0xc0] sm:$0xff]
        %v3956 = vld [vmem:[%s2853 + $0xc8] sm:$0xff]
        %v3957 = vld [vmem:[%s2853 + $0xd0] sm:$0xff]
        %v3958 = vld [vmem:[%s2853 + $0xd8] sm:$0xff]
        %v3959 = vld [vmem:[%s2853 + $0xe0] sm:$0xff]
        %v3960 = vld [vmem:[%s2853 + $0xe8] sm:$0xff]
        %v3961 = vld [vmem:[%s2853 + $0xf0] sm:$0xff]
        %v3962 = vld [vmem:[%s2853 + $0xf8] sm:$0xff]
        %v3963 = vrcp.pop %v3931
        %v3964 = vrcp.pop %v3932
        %v3965 = vrcp.pop %v3933
        %v3966 = vrcp.pop %v3934
        %v3967 = vrcp.pop %v3935
        %v3968 = vrcp.pop %v3936
        %v3969 = vrcp.pop %v3937
        %v3970 = vrcp.pop %v3938
        %v3971 = vrcp.pop %v3939
        %v3972 = vrcp.pop %v3940
        %v3973 = vrcp.pop %v3941
        %v3974 = vrcp.pop %v3942
        %v3975 = vrcp.pop %v3943
        %v3976 = vrcp.pop %v3944
        %v3977 = vrcp.pop %v3945
        %v3978 = vrcp.pop %v3946
        %v3979 = vrcp.pop %v3947
        %v3980 = vrcp.pop %v3948
        %v3981 = vrcp.pop %v3949
        %v3982 = vrcp.pop %v3950
        %v3983 = vrcp.pop %v3951
        %v3984 = vrcp.pop %v3952
        %v3985 = vrcp.pop %v3953
        %v3986 = vrcp.pop %v3954
        %v3987 = vrcp.pop %v3955
        %v3988 = vrcp.pop %v3956
        %v3989 = vrcp.pop %v3957
        %v3990 = vrcp.pop %v3958
        %v3991 = vrcp.pop %v3959
        %v3992 = vrcp.pop %v3960
        %v3993 = vrcp.pop %v3961
        %v3994 = vrcp.pop %v3962
        %v3995 = vld [vmem:[%s3078] sm:$0xff]
        %v3996 = vld [vmem:[%s3078 + $0x8] sm:$0xff]
        %v3997 = vld [vmem:[%s3078 + $0x10] sm:$0xff]
        %v3998 = vld [vmem:[%s3078 + $0x18] sm:$0xff]
        %v3999 = vld [vmem:[%s3078 + $0x20] sm:$0xff]
        %v4000 = vld [vmem:[%s3078 + $0x28] sm:$0xff]
        %v4001 = vld [vmem:[%s3078 + $0x30] sm:$0xff]
        %v4002 = vld [vmem:[%s3078 + $0x38] sm:$0xff]
        %v4003 = vld [vmem:[%s3078 + $0x40] sm:$0xff]
        %v4004 = vld [vmem:[%s3078 + $0x48] sm:$0xff]
        %v4005 = vld [vmem:[%s3078 + $0x50] sm:$0xff]
        %v4006 = vld [vmem:[%s3078 + $0x58] sm:$0xff]
        %v4007 = vld [vmem:[%s3078 + $0x60] sm:$0xff]
        %v4008 = vld [vmem:[%s3078 + $0x68] sm:$0xff]
        %v4009 = vld [vmem:[%s3078 + $0x70] sm:$0xff]
        %v4010 = vld [vmem:[%s3078 + $0x78] sm:$0xff]
        %v4011 = vld [vmem:[%s3078 + $0x80] sm:$0xff]
        %v4012 = vld [vmem:[%s3078 + $0x88] sm:$0xff]
        %v4013 = vld [vmem:[%s3078 + $0x90] sm:$0xff]
        %v4014 = vld [vmem:[%s3078 + $0x98] sm:$0xff]
        %v4015 = vld [vmem:[%s3078 + $0xa0] sm:$0xff]
        %v4016 = vld [vmem:[%s3078 + $0xa8] sm:$0xff]
        %v4017 = vld [vmem:[%s3078 + $0xb0] sm:$0xff]
        %v4018 = vld [vmem:[%s3078 + $0xb8] sm:$0xff]
        %v4019 = vld [vmem:[%s3078 + $0xc0] sm:$0xff]
        %v4020 = vld [vmem:[%s3078 + $0xc8] sm:$0xff]
        %v4021 = vld [vmem:[%s3078 + $0xd0] sm:$0xff]
        %v4022 = vld [vmem:[%s3078 + $0xd8] sm:$0xff]
        %v4023 = vld [vmem:[%s3078 + $0xe0] sm:$0xff]
        %v4024 = vld [vmem:[%s3078 + $0xe8] sm:$0xff]
        %v4025 = vld [vmem:[%s3078 + $0xf0] sm:$0xff]
        %v4026 = vld [vmem:[%s3078 + $0xf8] sm:$0xff]
        %4028 = vset.pattern.permute.xlu0 0
        %4029 = vperm.xlu0 %4028, %v3963
        %v4030 = vpop.permute.xlu0 %4029
        %4033 = vset.pattern.permute.xlu0 0
        %4034 = vperm.xlu0 %4033, %v3964
        %v4035 = vpop.permute.xlu0 %4034
        %4038 = vset.pattern.permute.xlu0 0
        %4039 = vperm.xlu0 %4038, %v3965
        %v4040 = vpop.permute.xlu0 %4039
        %4043 = vset.pattern.permute.xlu0 0
        %4044 = vperm.xlu0 %4043, %v3966
        %v4045 = vpop.permute.xlu0 %4044
        %4048 = vset.pattern.permute.xlu0 0
        %4049 = vperm.xlu0 %4048, %v3967
        %v4050 = vpop.permute.xlu0 %4049
        %4053 = vset.pattern.permute.xlu0 0
        %4054 = vperm.xlu0 %4053, %v3968
        %v4055 = vpop.permute.xlu0 %4054
        %4058 = vset.pattern.permute.xlu0 0
        %4059 = vperm.xlu0 %4058, %v3969
        %v4060 = vpop.permute.xlu0 %4059
        %4063 = vset.pattern.permute.xlu0 0
        %4064 = vperm.xlu0 %4063, %v3970
        %v4065 = vpop.permute.xlu0 %4064
        %4068 = vset.pattern.permute.xlu0 0
        %4069 = vperm.xlu0 %4068, %v3971
        %v4070 = vpop.permute.xlu0 %4069
        %4073 = vset.pattern.permute.xlu0 0
        %4074 = vperm.xlu0 %4073, %v3972
        %v4075 = vpop.permute.xlu0 %4074
        %4078 = vset.pattern.permute.xlu0 0
        %4079 = vperm.xlu0 %4078, %v3973
        %v4080 = vpop.permute.xlu0 %4079
        %4083 = vset.pattern.permute.xlu0 0
        %4084 = vperm.xlu0 %4083, %v3974
        %v4085 = vpop.permute.xlu0 %4084
        %4088 = vset.pattern.permute.xlu0 0
        %4089 = vperm.xlu0 %4088, %v3975
        %v4090 = vpop.permute.xlu0 %4089
        %4093 = vset.pattern.permute.xlu0 0
        %4094 = vperm.xlu0 %4093, %v3976
        %v4095 = vpop.permute.xlu0 %4094
        %4098 = vset.pattern.permute.xlu0 0
        %4099 = vperm.xlu0 %4098, %v3977
        %v4100 = vpop.permute.xlu0 %4099
        %4103 = vset.pattern.permute.xlu0 0
        %4104 = vperm.xlu0 %4103, %v3978
        %v4105 = vpop.permute.xlu0 %4104
        %4108 = vset.pattern.permute.xlu0 0
        %4109 = vperm.xlu0 %4108, %v3979
        %v4110 = vpop.permute.xlu0 %4109
        %4113 = vset.pattern.permute.xlu0 0
        %4114 = vperm.xlu0 %4113, %v3980
        %v4115 = vpop.permute.xlu0 %4114
        %4118 = vset.pattern.permute.xlu0 0
        %4119 = vperm.xlu0 %4118, %v3981
        %v4120 = vpop.permute.xlu0 %4119
        %4123 = vset.pattern.permute.xlu0 0
        %4124 = vperm.xlu0 %4123, %v3982
        %v4125 = vpop.permute.xlu0 %4124
        %4128 = vset.pattern.permute.xlu0 0
        %4129 = vperm.xlu0 %4128, %v3983
        %v4130 = vpop.permute.xlu0 %4129
        %4133 = vset.pattern.permute.xlu0 0
        %4134 = vperm.xlu0 %4133, %v3984
        %v4135 = vpop.permute.xlu0 %4134
        %4138 = vset.pattern.permute.xlu0 0
        %4139 = vperm.xlu0 %4138, %v3985
        %v4140 = vpop.permute.xlu0 %4139
        %4143 = vset.pattern.permute.xlu0 0
        %4144 = vperm.xlu0 %4143, %v3986
        %v4145 = vpop.permute.xlu0 %4144
        %4148 = vset.pattern.permute.xlu0 0
        %4149 = vperm.xlu0 %4148, %v3987
        %v4150 = vpop.permute.xlu0 %4149
        %4153 = vset.pattern.permute.xlu0 0
        %4154 = vperm.xlu0 %4153, %v3988
        %v4155 = vpop.permute.xlu0 %4154
        %4158 = vset.pattern.permute.xlu0 0
        %4159 = vperm.xlu0 %4158, %v3989
        %v4160 = vpop.permute.xlu0 %4159
        %4163 = vset.pattern.permute.xlu0 0
        %4164 = vperm.xlu0 %4163, %v3990
        %v4165 = vpop.permute.xlu0 %4164
        %4168 = vset.pattern.permute.xlu0 0
        %4169 = vperm.xlu0 %4168, %v3991
        %v4170 = vpop.permute.xlu0 %4169
        %4173 = vset.pattern.permute.xlu0 0
        %4174 = vperm.xlu0 %4173, %v3992
        %v4175 = vpop.permute.xlu0 %4174
        %4178 = vset.pattern.permute.xlu0 0
        %4179 = vperm.xlu0 %4178, %v3993
        %v4180 = vpop.permute.xlu0 %4179
        %4183 = vset.pattern.permute.xlu0 0
        %4184 = vperm.xlu0 %4183, %v3994
        %v4185 = vpop.permute.xlu0 %4184
        %v4187 = vmul.f32 %v3995, %v4030
        %v4188 = vmul.f32 %v3996, %v4035
        %v4189 = vmul.f32 %v3997, %v4040
        %v4190 = vmul.f32 %v3998, %v4045
        %v4191 = vmul.f32 %v3999, %v4050
        %v4192 = vmul.f32 %v4000, %v4055
        %v4193 = vmul.f32 %v4001, %v4060
        %v4194 = vmul.f32 %v4002, %v4065
        %v4195 = vmul.f32 %v4003, %v4070
        %v4196 = vmul.f32 %v4004, %v4075
        %v4197 = vmul.f32 %v4005, %v4080
        %v4198 = vmul.f32 %v4006, %v4085
        %v4199 = vmul.f32 %v4007, %v4090
        %v4200 = vmul.f32 %v4008, %v4095
        %v4201 = vmul.f32 %v4009, %v4100
        %v4202 = vmul.f32 %v4010, %v4105
        %v4203 = vmul.f32 %v4011, %v4110
        %v4204 = vmul.f32 %v4012, %v4115
        %v4205 = vmul.f32 %v4013, %v4120
        %v4206 = vmul.f32 %v4014, %v4125
        %v4207 = vmul.f32 %v4015, %v4130
        %v4208 = vmul.f32 %v4016, %v4135
        %v4209 = vmul.f32 %v4017, %v4140
        %v4210 = vmul.f32 %v4018, %v4145
        %v4211 = vmul.f32 %v4019, %v4150
        %v4212 = vmul.f32 %v4020, %v4155
        %v4213 = vmul.f32 %v4021, %v4160
        %v4214 = vmul.f32 %v4022, %v4165
        %v4215 = vmul.f32 %v4023, %v4170
        %v4216 = vmul.f32 %v4024, %v4175
        %v4217 = vmul.f32 %v4025, %v4180
        %v4218 = vmul.f32 %v4026, %v4185
        %4251 = vrot.lane.b32.xlu0 %v4187, 64
        %v4252 = vpop.permute.xlu0 %4251
        %4253 = vrot.lane.b32.xlu0 %v4188, 64
        %v4254 = vpop.permute.xlu0 %4253
        %4255 = vrot.lane.b32.xlu0 %v4189, 64
        %v4256 = vpop.permute.xlu0 %4255
        %4257 = vrot.lane.b32.xlu0 %v4190, 64
        %v4258 = vpop.permute.xlu0 %4257
        %4259 = vrot.lane.b32.xlu0 %v4191, 64
        %v4260 = vpop.permute.xlu0 %4259
        %4261 = vrot.lane.b32.xlu0 %v4192, 64
        %v4262 = vpop.permute.xlu0 %4261
        %4263 = vrot.lane.b32.xlu0 %v4193, 64
        %v4264 = vpop.permute.xlu0 %4263
        %4265 = vrot.lane.b32.xlu0 %v4194, 64
        %v4266 = vpop.permute.xlu0 %4265
        %4267 = vrot.lane.b32.xlu0 %v4195, 64
        %v4268 = vpop.permute.xlu0 %4267
        %4269 = vrot.lane.b32.xlu0 %v4196, 64
        %v4270 = vpop.permute.xlu0 %4269
        %4271 = vrot.lane.b32.xlu0 %v4197, 64
        %v4272 = vpop.permute.xlu0 %4271
        %4273 = vrot.lane.b32.xlu0 %v4198, 64
        %v4274 = vpop.permute.xlu0 %4273
        %4275 = vrot.lane.b32.xlu0 %v4199, 64
        %v4276 = vpop.permute.xlu0 %4275
        %4277 = vrot.lane.b32.xlu0 %v4200, 64
        %v4278 = vpop.permute.xlu0 %4277
        %4279 = vrot.lane.b32.xlu0 %v4201, 64
        %v4280 = vpop.permute.xlu0 %4279
        %4281 = vrot.lane.b32.xlu0 %v4202, 64
        %v4282 = vpop.permute.xlu0 %4281
        %4283 = vrot.lane.b32.xlu0 %v4203, 64
        %v4284 = vpop.permute.xlu0 %4283
        %4285 = vrot.lane.b32.xlu0 %v4204, 64
        %v4286 = vpop.permute.xlu0 %4285
        %4287 = vrot.lane.b32.xlu0 %v4205, 64
        %v4288 = vpop.permute.xlu0 %4287
        %4289 = vrot.lane.b32.xlu0 %v4206, 64
        %v4290 = vpop.permute.xlu0 %4289
        %4291 = vrot.lane.b32.xlu0 %v4207, 64
        %v4292 = vpop.permute.xlu0 %4291
        %4293 = vrot.lane.b32.xlu0 %v4208, 64
        %v4294 = vpop.permute.xlu0 %4293
        %4295 = vrot.lane.b32.xlu0 %v4209, 64
        %v4296 = vpop.permute.xlu0 %4295
        %4297 = vrot.lane.b32.xlu0 %v4210, 64
        %v4298 = vpop.permute.xlu0 %4297
        %4299 = vrot.lane.b32.xlu0 %v4211, 64
        %v4300 = vpop.permute.xlu0 %4299
        %4301 = vrot.lane.b32.xlu0 %v4212, 64
        %v4302 = vpop.permute.xlu0 %4301
        %4303 = vrot.lane.b32.xlu0 %v4213, 64
        %v4304 = vpop.permute.xlu0 %4303
        %4305 = vrot.lane.b32.xlu0 %v4214, 64
        %v4306 = vpop.permute.xlu0 %4305
        %4307 = vrot.lane.b32.xlu0 %v4215, 64
        %v4308 = vpop.permute.xlu0 %4307
        %4309 = vrot.lane.b32.xlu0 %v4216, 64
        %v4310 = vpop.permute.xlu0 %4309
        %4311 = vrot.lane.b32.xlu0 %v4217, 64
        %v4312 = vpop.permute.xlu0 %4311
        %4313 = vrot.lane.b32.xlu0 %v4218, 64
        %v4314 = vpop.permute.xlu0 %4313
        %v4347 = vsel %vm567, %v3899, %v4252
        %v4348 = vsel %vm567, %v3900, %v4254
        %v4349 = vsel %vm567, %v3901, %v4256
        %v4350 = vsel %vm567, %v3902, %v4258
        %v4351 = vsel %vm567, %v3903, %v4260
        %v4352 = vsel %vm567, %v3904, %v4262
        %v4353 = vsel %vm567, %v3905, %v4264
        %v4354 = vsel %vm567, %v3906, %v4266
        %v4355 = vsel %vm567, %v3907, %v4268
        %v4356 = vsel %vm567, %v3908, %v4270
        %v4357 = vsel %vm567, %v3909, %v4272
        %v4358 = vsel %vm567, %v3910, %v4274
        %v4359 = vsel %vm567, %v3911, %v4276
        %v4360 = vsel %vm567, %v3912, %v4278
        %v4361 = vsel %vm567, %v3913, %v4280
        %v4362 = vsel %vm567, %v3914, %v4282
        %v4363 = vsel %vm567, %v3915, %v4284
        %v4364 = vsel %vm567, %v3916, %v4286
        %v4365 = vsel %vm567, %v3917, %v4288
        %v4366 = vsel %vm567, %v3918, %v4290
        %v4367 = vsel %vm567, %v3919, %v4292
        %v4368 = vsel %vm567, %v3920, %v4294
        %v4369 = vsel %vm567, %v3921, %v4296
        %v4370 = vsel %vm567, %v3922, %v4298
        %v4371 = vsel %vm567, %v3923, %v4300
        %v4372 = vsel %vm567, %v3924, %v4302
        %v4373 = vsel %vm567, %v3925, %v4304
        %v4374 = vsel %vm567, %v3926, %v4306
        %v4375 = vsel %vm567, %v3927, %v4308
        %v4376 = vsel %vm567, %v3928, %v4310
        %v4377 = vsel %vm567, %v3929, %v4312
        %v4378 = vsel %vm567, %v3930, %v4314
        %4379 = vst [vmem:[%s287] sm:$0xff] %v4347
        %4380 = vst [vmem:[%s287 + $0x8] sm:$0xff] %v4348
        %4381 = vst [vmem:[%s287 + $0x10] sm:$0xff] %v4349
        %4382 = vst [vmem:[%s287 + $0x18] sm:$0xff] %v4350
        %4383 = vst [vmem:[%s287 + $0x20] sm:$0xff] %v4351
        %4384 = vst [vmem:[%s287 + $0x28] sm:$0xff] %v4352
        %4385 = vst [vmem:[%s287 + $0x30] sm:$0xff] %v4353
        %4386 = vst [vmem:[%s287 + $0x38] sm:$0xff] %v4354
        %4387 = vst [vmem:[%s287 + $0x40] sm:$0xff] %v4355
        %4388 = vst [vmem:[%s287 + $0x48] sm:$0xff] %v4356
        %4389 = vst [vmem:[%s287 + $0x50] sm:$0xff] %v4357
        %4390 = vst [vmem:[%s287 + $0x58] sm:$0xff] %v4358
        %4391 = vst [vmem:[%s287 + $0x60] sm:$0xff] %v4359
        %4392 = vst [vmem:[%s287 + $0x68] sm:$0xff] %v4360
        %4393 = vst [vmem:[%s287 + $0x70] sm:$0xff] %v4361
        %4394 = vst [vmem:[%s287 + $0x78] sm:$0xff] %v4362
        %4395 = vst [vmem:[%s287 + $0x80] sm:$0xff] %v4363
        %4396 = vst [vmem:[%s287 + $0x88] sm:$0xff] %v4364
        %4397 = vst [vmem:[%s287 + $0x90] sm:$0xff] %v4365
        %4398 = vst [vmem:[%s287 + $0x98] sm:$0xff] %v4366
        %4399 = vst [vmem:[%s287 + $0xa0] sm:$0xff] %v4367
        %4400 = vst [vmem:[%s287 + $0xa8] sm:$0xff] %v4368
        %4401 = vst [vmem:[%s287 + $0xb0] sm:$0xff] %v4369
        %4402 = vst [vmem:[%s287 + $0xb8] sm:$0xff] %v4370
        %4403 = vst [vmem:[%s287 + $0xc0] sm:$0xff] %v4371
        %4404 = vst [vmem:[%s287 + $0xc8] sm:$0xff] %v4372
        %4405 = vst [vmem:[%s287 + $0xd0] sm:$0xff] %v4373
        %4406 = vst [vmem:[%s287 + $0xd8] sm:$0xff] %v4374
        %4407 = vst [vmem:[%s287 + $0xe0] sm:$0xff] %v4375
        %4408 = vst [vmem:[%s287 + $0xe8] sm:$0xff] %v4376
        %4409 = vst [vmem:[%s287 + $0xf0] sm:$0xff] %v4377
        %4410 = vst [vmem:[%s287 + $0xf8] sm:$0xff] %v4378
      $region40: #{conv_cross_attention_forward.13} parent=31 // pred_fallthru
        _
      %s4411 = smul.u32 32, %s20
      %p4412 = scmp.lt.s32.totalorder %s19, 1
      %s4413 = scalar_select %p4412, %s19, 1
      %p4414 = scmp.lt.s32.totalorder %s4411, 31
      %s4415 = scalar_select %p4414, %s4411, 31
      %s4416 = smul.addr %s4413, 32
      %s4417 = sadd.s32 %s4415, %s4416
      %s4418 = smul.addr %s4417, 8
      %s4419 = scalar_lea.vmem %s3, %s4418
      // Predicated region
      $region41: #{conv_cross_attention_forward.13} parent=31 // pred_check
        %p4420 = pneg %p137
      $region42: #{conv_cross_attention_forward.13} parent=31 // pred_check_branch
        %4422 = sbr.rel (%p4420) target = $region44
      $region43: #{conv_cross_attention_forward.13} parent=31 // pred_region
        %s4423 = smul.u32 32, %s20
      $region44: #{conv_cross_attention_forward.13} parent=31 // pred_fallthru
        _
    $region32: #{conv_cross_attention_forward.13} parent=5 // pred_fallthru
      _
    %p4424 = scmp.le.s32.totalorder 2, %s9
    // Predicated region
    $region45: #{conv_cross_attention_forward.13} parent=5 // pred_check
      %p4425 = pneg %p4424
    $region46: #{conv_cross_attention_forward.13} parent=5 // pred_check_branch
      %4427 = sbr.rel (%p4425) target = $region48
    $region47: #{conv_cross_attention_forward.13} parent=5 // pred_region
      %s4428 = ssub.s32 %s9, 2
      // Predicated region
      $region49: #{conv_cross_attention_forward.13} parent=47 // pred_check
        %p4429 = pneg %p143
      $region50: #{conv_cross_attention_forward.13} parent=47 // pred_check_branch
        %4431 = sbr.rel (%p4429) target = $region52
      $region51: #{conv_cross_attention_forward.13} parent=47 // pred_region
        %s4432 = smul.u32 32, %s23
        %p4433 = scmp.lt.s32.totalorder %s22, 1
        %s4434 = scalar_select %p4433, %s22, 1
        %p4435 = scmp.lt.s32.totalorder %s4432, 31
        %s4436 = scalar_select %p4435, %s4432, 31
        %s4437 = smul.addr %s4434, 32
        %s4438 = sadd.s32 %s4436, %s4437
        %s4439 = smul.addr %s4438, 8
        %s4440 = scalar_lea.vmem %s3, %s4439
      $region52: #{conv_cross_attention_forward.13} parent=47 // pred_fallthru
        _
    $region48: #{conv_cross_attention_forward.13} parent=5 // pred_fallthru
      _
  $region6: #{conv_cross_attention_forward.13} parent=0 // loop_footer
    %s13 = sadd.s32 1, %s9
  $region7: #{conv_cross_attention_forward.13} parent=0 // loop_footer_branch
    %8 = sbr.rel target = $region3
  $region8: #{conv_cross_attention_forward.13} parent=0 // loop_exit
    _

</llo_original>
